<compile_context>
chip_gen: v7x
topology: tpu7x:2x2x1
jax: 0.10.0
libtpu: 0.0.40
codegen_flags: <defaults>
</compile_context>

<pallas_src>
import functools

import jax
import jax.numpy as jnp
from jax import lax
from jax.experimental import pallas as pl
from jax.experimental.pallas import tpu as pltpu


def embedder_kernel(x_ref, h0_ref, wn_ref, bn_ref,
                    wih_ref, whh_ref, bgi_ref, bhn_ref,
                    wfc_ref, bfc_ref,
                    out_ref, hout_ref,
                    seq_ref, gi_ref,
                    *, n_layers, seq_len, batch_pad, hidden_pad):
    T, BP, Hp = seq_len, batch_pad, hidden_pad

    # ---- Stage 1: x_emb = sigmoid(x @ Wn + bn), one lane-dense matmul ------
    xe = jax.nn.sigmoid(
        jnp.dot(x_ref[...], wn_ref[...], preferred_element_type=jnp.float32)
        + bn_ref[...])
    out_ref[...] = xe          # residual stored directly in the output buffer
    seq_ref[...] = xe          # GRU layer-0 input

    # ---- Stage 2: stacked GRU (PyTorch gate order r, z, n) ------------------
    for l in range(n_layers):
        # Input-to-hidden projections for ALL timesteps & all 3 gates in one
        # fused matmul (off the serial critical path).  b_ih and b_hh_{r,z}
        # are pre-folded into bgi; b_hh_n must stay inside the r* term.
        gi_ref[...] = (jnp.dot(seq_ref[...], wih_ref[l],
                               preferred_element_type=jnp.float32)
                       + bgi_ref[l])

        # Hoisted, loop-constant broadcast of b_hh_n.
        bhn = jnp.broadcast_to(bhn_ref[l], (BP, Hp))

        def gru_body(t, h, l=l, bhn=bhn):
            base = pl.multiple_of(t * BP, BP)       # BP is a multiple of 8
            rows = pl.ds(base, BP)
            gi = gi_ref[rows, :]                    # (BP, 3*Hp), lane-dense
            # Single fused recurrent matmul per step: (BP,Hp) x (Hp,3Hp).
            gh = jnp.dot(h, whh_ref[l], preferred_element_type=jnp.float32)
            # Lane-tile-aligned gate slices (Hp is a multiple of 128).
            r = jax.nn.sigmoid(gi[:, 0 * Hp:1 * Hp] + gh[:, 0 * Hp:1 * Hp])
            z = jax.nn.sigmoid(gi[:, 1 * Hp:2 * Hp] + gh[:, 1 * Hp:2 * Hp])
            n = jnp.tanh(gi[:, 2 * Hp:3 * Hp]
                         + r * (gh[:, 2 * Hp:3 * Hp] + bhn))
            hnew = (1.0 - z) * n + z * h
            seq_ref[rows, :] = hnew                 # next layer's input
            return hnew

        h_final = lax.fori_loop(0, T, gru_body, h0_ref[l],
                                unroll=True if T <= 16 else 8)
        hout_ref[l] = h_final

    # ---- Stage 3: out = sigmoid(seq @ Wfc + bfc) + x_emb, one matmul --------
    out_ref[...] = (jax.nn.sigmoid(
        jnp.dot(seq_ref[...], wfc_ref[...],
                preferred_element_type=jnp.float32)
        + bfc_ref[...]) + out_ref[...])


def _pack_params(p, Hp):
    """Fuse gates (r,z,n along output dim), fold biases, pad H -> Hp."""
    L, _, H, _ = p['wih'].shape
    padHH = lambda w: jnp.pad(w, ((0, 0), (0, 0), (0, Hp - H), (0, Hp - H)))
    # (L,3,Hp,Hp) -> (L,Hp,3,Hp) -> (L,Hp,3*Hp): gate-major column blocks.
    wih_f = padHH(p['wih']).transpose(0, 2, 1, 3).reshape(L, Hp, 3 * Hp)
    whh_f = padHH(p['whh']).transpose(0, 2, 1, 3).reshape(L, Hp, 3 * Hp)
    # Fold b_ih (all gates) + b_hh (gates r,z only) into the gi bias.
    mask = jnp.array([1.0, 1.0, 0.0], jnp.float32).reshape(1, 3, 1, 1)
    bgi = p['bih'] + p['bhh'] * mask                               # (L,3,1,H)
    bgi_f = jnp.pad(bgi, ((0, 0), (0, 0), (0, 0), (0, Hp - H))
                    ).transpose(0, 2, 1, 3).reshape(L, 1, 3 * Hp)
    bhn_f = jnp.pad(p['bhh'][:, 2], ((0, 0), (0, 0), (0, Hp - H)))  # (L,1,Hp)
    wn_f = jnp.pad(p['wn'], ((0, 0), (0, Hp - H)))
    bn_f = jnp.pad(p['bn'], ((0, 0), (0, Hp - H)))
    wfc_f = jnp.pad(p['wfc'], ((0, Hp - H), (0, Hp - H)))
    bfc_f = jnp.pad(p['bfc'], ((0, 0), (0, Hp - H)))
    return wn_f, bn_f, wih_f, whh_f, bgi_f, bhn_f, wfc_f, bfc_f


def embedder_forward(x, h0, params):
    """x: (B, T, input_dim) float32, h0: (n_layers, B, H) float32."""
    B, T, D = x.shape
    L, _, H = h0.shape
    BP = ((B + 7) // 8) * 8                 # pad batch to full sublane tiles
    Hp = ((H + 127) // 128) * 128           # pad hidden to full lane tiles
    TBP = T * BP

    # time-major, batch-padded, flattened -> lane-dense 2-D operands
    x_p = jnp.pad(x, ((0, BP - B), (0, 0), (0, 0)))              # (BP, T, D)
    x_flat = jnp.transpose(x_p, (1, 0, 2)).reshape(TBP, D)       # (T*BP, D)
    h0_p = jnp.pad(h0, ((0, 0), (0, BP - B), (0, Hp - H)))       # (L, BP, Hp)

    wn_f, bn_f, wih_f, whh_f, bgi_f, bhn_f, wfc_f, bfc_f = _pack_params(params, Hp)

    vm = pl.BlockSpec(memory_space=pltpu.MemorySpace.VMEM)
    kernel = functools.partial(embedder_kernel, n_layers=L, seq_len=T,
                               batch_pad=BP, hidden_pad=Hp)

    # Explicit VMEM budget: inputs + outputs + scratch, with margin.
    footprint = 4 * (TBP * D + L * BP * Hp                       # x, h0
                     + D * Hp + Hp + 2 * L * Hp * 3 * Hp         # wn, bn, wih, whh
                     + L * 3 * Hp + L * Hp + Hp * Hp + Hp        # biases, wfc, bfc
                     + TBP * Hp + L * BP * Hp                    # out, hout
                     + TBP * Hp + TBP * 3 * Hp)                  # seq, gi scratch
    vmem_limit = min(2 * footprint + (2 << 20), 96 * (1 << 20))

    out_flat, h_out = pl.pallas_call(
        kernel,
        out_shape=(jax.ShapeDtypeStruct((TBP, Hp), jnp.float32),
                   jax.ShapeDtypeStruct((L, BP, Hp), jnp.float32)),
        in_specs=[vm] * 10,
        out_specs=(vm, vm),
        scratch_shapes=[pltpu.VMEM((TBP, Hp), jnp.float32),       # layer sequence
                        pltpu.VMEM((TBP, 3 * Hp), jnp.float32)],  # fused gi (all t)
        compiler_params=pltpu.CompilerParams(vmem_limit_bytes=int(vmem_limit)),
    )(x_flat, h0_p, wn_f, bn_f, wih_f, whh_f, bgi_f, bhn_f, wfc_f, bfc_f)

    out = out_flat.reshape(T, BP, Hp)[:, :B, :H].transpose(1, 0, 2)  # (B, T, H)
    return out, h_out[:, :B, :H]


def init_params(key, input_dim, hidden_dim, n_layers):
    H, D, L = hidden_dim, input_dim, n_layers
    ks = jax.random.split(key, 8)
    u = lambda k, shape, fan: jax.random.uniform(
        k, shape, jnp.float32, -1.0 / jnp.sqrt(fan), 1.0 / jnp.sqrt(fan))
    return dict(
        wn=u(ks[0], (D, H), D), bn=u(ks[1], (1, H), D),
        # per-gate blocks, gate order r, z, n; stored (in_features, out_features)
        wih=u(ks[2], (L, 3, H, H), H), whh=u(ks[3], (L, 3, H, H), H),
        bih=u(ks[4], (L, 3, 1, H), H), bhh=u(ks[5], (L, 3, 1, H), H),
        wfc=u(ks[6], (H, H), H), bfc=u(ks[7], (1, H), H),
    )


def reference_forward(x, h0, p):
    """Plain-JAX reference mirroring torch semantics (for validation)."""
    L = h0.shape[0]
    T = x.shape[1]
    x_emb = jax.nn.sigmoid(x @ p['wn'] + p['bn'][0])             # (B, T, H)
    seq = x_emb
    h_finals = []
    for l in range(L):
        h = h0[l]
        outs = []
        for t in range(T):
            xt = seq[:, t, :]
            r = jax.nn.sigmoid(xt @ p['wih'][l, 0] + p['bih'][l, 0, 0]
                               + h @ p['whh'][l, 0] + p['bhh'][l, 0, 0])
            z = jax.nn.sigmoid(xt @ p['wih'][l, 1] + p['bih'][l, 1, 0]
                               + h @ p['whh'][l, 1] + p['bhh'][l, 1, 0])
            n = jnp.tanh(xt @ p['wih'][l, 2] + p['bih'][l, 2, 0]
                         + r * (h @ p['whh'][l, 2] + p['bhh'][l, 2, 0]))
            h = (1.0 - z) * n + z * h
            outs.append(h)
        seq = jnp.stack(outs, axis=1)
        h_finals.append(h)
    out = jax.nn.sigmoid(seq @ p['wfc'] + p['bfc'][0]) + x_emb
    return out, jnp.stack(h_finals, axis=0)


if __name__ == "__main__":
    B, T, D, H, L = 2, 8, 4, 32, 2   # batch, seq, input_dim, hidden_dim, n_layers

    key = jax.random.PRNGKey(0)
    kx, kp = jax.random.split(key)
    x = jax.random.normal(kx, (B, T, D), jnp.float32)
    h0 = jnp.zeros((L, B, H), jnp.float32)          # Embedder.init_hidden()
    params = init_params(kp, D, H, L)

    out, h_out = jax.block_until_ready(embedder_forward(x, h0, params))

    out_ref_v, h_ref = reference_forward(x, h0, params)
    assert out.shape == (B, T, H) and h_out.shape == (L, B, H)
    assert float(jnp.max(jnp.abs(out - out_ref_v))) < 1e-3
    assert float(jnp.max(jnp.abs(h_out - h_ref))) < 1e-3

    print("KERNEL_OK")
</pallas_src>

<mosaic_0001>
module attributes {stable_mosaic.version = 11 : i64} {
  func.func @embedder_kernel(%arg0: memref<64x4xf32, #tpu.memory_space<vmem>>, %arg1: memref<2x8x128xf32, #tpu.memory_space<vmem>>, %arg2: memref<4x128xf32, #tpu.memory_space<vmem>>, %arg3: memref<1x128xf32, #tpu.memory_space<vmem>>, %arg4: memref<2x128x384xf32, #tpu.memory_space<vmem>>, %arg5: memref<2x128x384xf32, #tpu.memory_space<vmem>>, %arg6: memref<2x1x384xf32, #tpu.memory_space<vmem>>, %arg7: memref<2x1x128xf32, #tpu.memory_space<vmem>>, %arg8: memref<128x128xf32, #tpu.memory_space<vmem>>, %arg9: memref<1x128xf32, #tpu.memory_space<vmem>>, %arg10: memref<64x128xf32, #tpu.memory_space<vmem>>, %arg11: memref<2x8x128xf32, #tpu.memory_space<vmem>>, %arg12: memref<64x128xf32, #tpu.memory_space<vmem>>, %arg13: memref<64x384xf32, #tpu.memory_space<vmem>>) attributes {dimension_semantics = [], scalar_prefetch = 0 : i64, scratch_operands = 2 : i64, tpu.core_type = #tpu.core_type<tc>} {
    %c0 = arith.constant 0 : index
    %c0_0 = arith.constant 0 : index
    %0 = vector.load %arg0[%c0, %c0_0] : memref<64x4xf32, #tpu.memory_space<vmem>>, vector<64x4xf32>
    %c0_1 = arith.constant 0 : index
    %c0_2 = arith.constant 0 : index
    %1 = vector.load %arg2[%c0_1, %c0_2] : memref<4x128xf32, #tpu.memory_space<vmem>>, vector<4x128xf32>
    %cst = arith.constant dense<0.000000e+00> : vector<64x128xf32>
    %2 = tpu.matmul %0, %1, %cst {dimension_numbers = #tpu.dot_dimension_numbers<[1], [0], [0], [1], [0, 0, 1, 1], [], []>} : vector<64x4xf32>, vector<4x128xf32>, vector<64x128xf32> -> vector<64x128xf32>
    %c0_3 = arith.constant 0 : index
    %c0_4 = arith.constant 0 : index
    %3 = vector.load %arg3[%c0_3, %c0_4] : memref<1x128xf32, #tpu.memory_space<vmem>>, vector<1x128xf32>
    %4 = vector.broadcast %3 : vector<1x128xf32> to vector<64x128xf32>
    %5 = arith.addf %2, %4 : vector<64x128xf32>
    %6 = arith.negf %5 : vector<64x128xf32>
    %7 = math.exp %6 : vector<64x128xf32>
    %cst_5 = arith.constant 1.000000e+00 : f32
    %8 = vector.broadcast %cst_5 : f32 to vector<64x128xf32>
    %9 = arith.addf %8, %7 : vector<64x128xf32>
    %10 = arith.divf %8, %9 : vector<64x128xf32>
    %c0_6 = arith.constant 0 : index
    %c0_7 = arith.constant 0 : index
    %11 = vector.load %arg10[%c0_6, %c0_7] : memref<64x128xf32, #tpu.memory_space<vmem>>, vector<64x128xf32>
    tpu.vector_store %arg10[%c0_6, %c0_7], %10 {strides = array<i32>} : memref<64x128xf32, #tpu.memory_space<vmem>>, vector<64x128xf32>,
    %c0_8 = arith.constant 0 : index
    %c0_9 = arith.constant 0 : index
    %12 = vector.load %arg12[%c0_8, %c0_9] : memref<64x128xf32, #tpu.memory_space<vmem>>, vector<64x128xf32>
    tpu.vector_store %arg12[%c0_8, %c0_9], %10 {strides = array<i32>} : memref<64x128xf32, #tpu.memory_space<vmem>>, vector<64x128xf32>,
    %c0_10 = arith.constant 0 : index
    %c0_11 = arith.constant 0 : index
    %13 = vector.load %arg12[%c0_10, %c0_11] : memref<64x128xf32, #tpu.memory_space<vmem>>, vector<64x128xf32>
    %c0_12 = arith.constant 0 : index
    %c0_13 = arith.constant 0 : index
    %c0_14 = arith.constant 0 : index
    %14 = vector.load %arg4[%c0_12, %c0_13, %c0_14] : memref<2x128x384xf32, #tpu.memory_space<vmem>>, vector<1x128x384xf32>
    %15 = vector.shape_cast %14 : vector<1x128x384xf32> to vector<128x384xf32>
    %cst_15 = arith.constant dense<0.000000e+00> : vector<64x384xf32>
    %16 = tpu.matmul %13, %15, %cst_15 {dimension_numbers = #tpu.dot_dimension_numbers<[1], [0], [0], [1], [0, 0, 1, 1], [], []>} : vector<64x128xf32>, vector<128x384xf32>, vector<64x384xf32> -> vector<64x384xf32>
    %c0_16 = arith.constant 0 : index
    %c0_17 = arith.constant 0 : index
    %c0_18 = arith.constant 0 : index
    %17 = vector.load %arg6[%c0_16, %c0_17, %c0_18] : memref<2x1x384xf32, #tpu.memory_space<vmem>>, vector<1x1x384xf32>
    %18 = vector.shape_cast %17 : vector<1x1x384xf32> to vector<1x384xf32>
    %19 = vector.broadcast %18 : vector<1x384xf32> to vector<64x384xf32>
    %20 = arith.addf %16, %19 : vector<64x384xf32>
    %c0_19 = arith.constant 0 : index
    %c0_20 = arith.constant 0 : index
    %21 = vector.load %arg13[%c0_19, %c0_20] : memref<64x384xf32, #tpu.memory_space<vmem>>, vector<64x384xf32>
    tpu.vector_store %arg13[%c0_19, %c0_20], %20 {strides = array<i32>} : memref<64x384xf32, #tpu.memory_space<vmem>>, vector<64x384xf32>,
    %c0_21 = arith.constant 0 : index
    %c0_22 = arith.constant 0 : index
    %c0_23 = arith.constant 0 : index
    %22 = vector.load %arg7[%c0_21, %c0_22, %c0_23] : memref<2x1x128xf32, #tpu.memory_space<vmem>>, vector<1x1x128xf32>
    %23 = vector.shape_cast %22 : vector<1x1x128xf32> to vector<1x128xf32>
    %24 = vector.shape_cast %23 : vector<1x128xf32> to vector<1x128xf32>
    %25 = vector.broadcast %24 : vector<1x128xf32> to vector<8x128xf32>
    %c0_24 = arith.constant 0 : index
    %c0_25 = arith.constant 0 : index
    %c0_26 = arith.constant 0 : index
    %26 = vector.load %arg1[%c0_24, %c0_25, %c0_26] : memref<2x8x128xf32, #tpu.memory_space<vmem>>, vector<1x8x128xf32>
    %27 = vector.shape_cast %26 : vector<1x8x128xf32> to vector<8x128xf32>
    %c0_i32 = arith.constant 0 : i32
    %c8_i32 = arith.constant 8 : i32
    %28 = arith.muli %c0_i32, %c8_i32 : i32
    %29 = tpu.assume_multiple %28, 8 : i32
    %30 = arith.index_cast %29 : i32 to index
    %c0_27 = arith.constant 0 : index
    %31 = vector.load %arg13[%30, %c0_27] : memref<64x384xf32, #tpu.memory_space<vmem>>, vector<8x384xf32>
    %c0_28 = arith.constant 0 : index
    %c0_29 = arith.constant 0 : index
    %c0_30 = arith.constant 0 : index
    %32 = vector.load %arg5[%c0_28, %c0_29, %c0_30] : memref<2x128x384xf32, #tpu.memory_space<vmem>>, vector<1x128x384xf32>
    %33 = vector.shape_cast %32 : vector<1x128x384xf32> to vector<128x384xf32>
    %cst_31 = arith.constant dense<0.000000e+00> : vector<8x384xf32>
    %34 = tpu.matmul %27, %33, %cst_31 {dimension_numbers = #tpu.dot_dimension_numbers<[1], [0], [0], [1], [0, 0, 1, 1], [], []>} : vector<8x128xf32>, vector<128x384xf32>, vector<8x384xf32> -> vector<8x384xf32>
    %35 = vector.extract_strided_slice %31 {offsets = [0, 0], sizes = [8, 128], strides = [1, 1]} : vector<8x384xf32> to vector<8x128xf32>
    %36 = vector.extract_strided_slice %34 {offsets = [0, 0], sizes = [8, 128], strides = [1, 1]} : vector<8x384xf32> to vector<8x128xf32>
    %37 = arith.addf %35, %36 : vector<8x128xf32>
    %38 = arith.negf %37 : vector<8x128xf32>
    %39 = math.exp %38 : vector<8x128xf32>
    %cst_32 = arith.constant 1.000000e+00 : f32
    %40 = vector.broadcast %cst_32 : f32 to vector<8x128xf32>
    %41 = arith.addf %40, %39 : vector<8x128xf32>
    %42 = arith.divf %40, %41 : vector<8x128xf32>
    %43 = vector.extract_strided_slice %31 {offsets = [0, 128], sizes = [8, 128], strides = [1, 1]} : vector<8x384xf32> to vector<8x128xf32>
    %44 = vector.extract_strided_slice %34 {offsets = [0, 128], sizes = [8, 128], strides = [1, 1]} : vector<8x384xf32> to vector<8x128xf32>
    %45 = arith.addf %43, %44 : vector<8x128xf32>
    %46 = arith.negf %45 : vector<8x128xf32>
    %47 = math.exp %46 : vector<8x128xf32>
    %cst_33 = arith.constant 1.000000e+00 : f32
    %48 = vector.broadcast %cst_33 : f32 to vector<8x128xf32>
    %49 = arith.addf %48, %47 : vector<8x128xf32>
    %50 = arith.divf %48, %49 : vector<8x128xf32>
    %51 = vector.extract_strided_slice %31 {offsets = [0, 256], sizes = [8, 128], strides = [1, 1]} : vector<8x384xf32> to vector<8x128xf32>
    %52 = vector.extract_strided_slice %34 {offsets = [0, 256], sizes = [8, 128], strides = [1, 1]} : vector<8x384xf32> to vector<8x128xf32>
    %53 = arith.addf %52, %25 : vector<8x128xf32>
    %54 = arith.mulf %42, %53 : vector<8x128xf32>
    %55 = arith.addf %51, %54 : vector<8x128xf32>
    %56 = math.tanh %55 : vector<8x128xf32>
    %cst_34 = arith.constant 1.000000e+00 : f32
    %57 = vector.broadcast %cst_34 : f32 to vector<8x128xf32>
    %58 = arith.subf %57, %50 : vector<8x128xf32>
    %59 = arith.mulf %58, %56 : vector<8x128xf32>
    %60 = arith.mulf %50, %27 : vector<8x128xf32>
    %61 = arith.addf %59, %60 : vector<8x128xf32>
    %62 = arith.index_cast %29 : i32 to index
    %c0_35 = arith.constant 0 : index
    %63 = vector.load %arg12[%62, %c0_35] : memref<64x128xf32, #tpu.memory_space<vmem>>, vector<8x128xf32>
    tpu.vector_store %arg12[%62, %c0_35], %61 {strides = array<i32>} : memref<64x128xf32, #tpu.memory_space<vmem>>, vector<8x128xf32>,
    %c1_i32 = arith.constant 1 : i32
    %c8_i32_36 = arith.constant 8 : i32
    %64 = arith.muli %c1_i32, %c8_i32_36 : i32
    %65 = tpu.assume_multiple %64, 8 : i32
    %66 = arith.index_cast %65 : i32 to index
    %c0_37 = arith.constant 0 : index
    %67 = vector.load %arg13[%66, %c0_37] : memref<64x384xf32, #tpu.memory_space<vmem>>, vector<8x384xf32>
    %c0_38 = arith.constant 0 : index
    %c0_39 = arith.constant 0 : index
    %c0_40 = arith.constant 0 : index
    %68 = vector.load %arg5[%c0_38, %c0_39, %c0_40] : memref<2x128x384xf32, #tpu.memory_space<vmem>>, vector<1x128x384xf32>
    %69 = vector.shape_cast %68 : vector<1x128x384xf32> to vector<128x384xf32>
    %cst_41 = arith.constant dense<0.000000e+00> : vector<8x384xf32>
    %70 = tpu.matmul %61, %69, %cst_41 {dimension_numbers = #tpu.dot_dimension_numbers<[1], [0], [0], [1], [0, 0, 1, 1], [], []>} : vector<8x128xf32>, vector<128x384xf32>, vector<8x384xf32> -> vector<8x384xf32>
    %71 = vector.extract_strided_slice %67 {offsets = [0, 0], sizes = [8, 128], strides = [1, 1]} : vector<8x384xf32> to vector<8x128xf32>
    %72 = vector.extract_strided_slice %70 {offsets = [0, 0], sizes = [8, 128], strides = [1, 1]} : vector<8x384xf32> to vector<8x128xf32>
    %73 = arith.addf %71, %72 : vector<8x128xf32>
    %74 = arith.negf %73 : vector<8x128xf32>
    %75 = math.exp %74 : vector<8x128xf32>
    %cst_42 = arith.constant 1.000000e+00 : f32
    %76 = vector.broadcast %cst_42 : f32 to vector<8x128xf32>
    %77 = arith.addf %76, %75 : vector<8x128xf32>
    %78 = arith.divf %76, %77 : vector<8x128xf32>
    %79 = vector.extract_strided_slice %67 {offsets = [0, 128], sizes = [8, 128], strides = [1, 1]} : vector<8x384xf32> to vector<8x128xf32>
    %80 = vector.extract_strided_slice %70 {offsets = [0, 128], sizes = [8, 128], strides = [1, 1]} : vector<8x384xf32> to vector<8x128xf32>
    %81 = arith.addf %79, %80 : vector<8x128xf32>
    %82 = arith.negf %81 : vector<8x128xf32>
    %83 = math.exp %82 : vector<8x128xf32>
    %cst_43 = arith.constant 1.000000e+00 : f32
    %84 = vector.broadcast %cst_43 : f32 to vector<8x128xf32>
    %85 = arith.addf %84, %83 : vector<8x128xf32>
    %86 = arith.divf %84, %85 : vector<8x128xf32>
    %87 = vector.extract_strided_slice %67 {offsets = [0, 256], sizes = [8, 128], strides = [1, 1]} : vector<8x384xf32> to vector<8x128xf32>
    %88 = vector.extract_strided_slice %70 {offsets = [0, 256], sizes = [8, 128], strides = [1, 1]} : vector<8x384xf32> to vector<8x128xf32>
    %89 = arith.addf %88, %25 : vector<8x128xf32>
    %90 = arith.mulf %78, %89 : vector<8x128xf32>
    %91 = arith.addf %87, %90 : vector<8x128xf32>
    %92 = math.tanh %91 : vector<8x128xf32>
    %cst_44 = arith.constant 1.000000e+00 : f32
    %93 = vector.broadcast %cst_44 : f32 to vector<8x128xf32>
    %94 = arith.subf %93, %86 : vector<8x128xf32>
    %95 = arith.mulf %94, %92 : vector<8x128xf32>
    %96 = arith.mulf %86, %61 : vector<8x128xf32>
    %97 = arith.addf %95, %96 : vector<8x128xf32>
    %98 = arith.index_cast %65 : i32 to index
    %c0_45 = arith.constant 0 : index
    %99 = vector.load %arg12[%98, %c0_45] : memref<64x128xf32, #tpu.memory_space<vmem>>, vector<8x128xf32>
    tpu.vector_store %arg12[%98, %c0_45], %97 {strides = array<i32>} : memref<64x128xf32, #tpu.memory_space<vmem>>, vector<8x128xf32>,
    %c2_i32 = arith.constant 2 : i32
    %c8_i32_46 = arith.constant 8 : i32
    %100 = arith.muli %c2_i32, %c8_i32_46 : i32
    %101 = tpu.assume_multiple %100, 8 : i32
    %102 = arith.index_cast %101 : i32 to index
    %c0_47 = arith.constant 0 : index
    %103 = vector.load %arg13[%102, %c0_47] : memref<64x384xf32, #tpu.memory_space<vmem>>, vector<8x384xf32>
    %c0_48 = arith.constant 0 : index
    %c0_49 = arith.constant 0 : index
    %c0_50 = arith.constant 0 : index
    %104 = vector.load %arg5[%c0_48, %c0_49, %c0_50] : memref<2x128x384xf32, #tpu.memory_space<vmem>>, vector<1x128x384xf32>
    %105 = vector.shape_cast %104 : vector<1x128x384xf32> to vector<128x384xf32>
    %cst_51 = arith.constant dense<0.000000e+00> : vector<8x384xf32>
    %106 = tpu.matmul %97, %105, %cst_51 {dimension_numbers = #tpu.dot_dimension_numbers<[1], [0], [0], [1], [0, 0, 1, 1], [], []>} : vector<8x128xf32>, vector<128x384xf32>, vector<8x384xf32> -> vector<8x384xf32>
    %107 = vector.extract_strided_slice %103 {offsets = [0, 0], sizes = [8, 128], strides = [1, 1]} : vector<8x384xf32> to vector<8x128xf32>
    %108 = vector.extract_strided_slice %106 {offsets = [0, 0], sizes = [8, 128], strides = [1, 1]} : vector<8x384xf32> to vector<8x128xf32>
    %109 = arith.addf %107, %108 : vector<8x128xf32>
    %110 = arith.negf %109 : vector<8x128xf32>
    %111 = math.exp %110 : vector<8x128xf32>
    %cst_52 = arith.constant 1.000000e+00 : f32
    %112 = vector.broadcast %cst_52 : f32 to vector<8x128xf32>
    %113 = arith.addf %112, %111 : vector<8x128xf32>
    %114 = arith.divf %112, %113 : vector<8x128xf32>
    %115 = vector.extract_strided_slice %103 {offsets = [0, 128], sizes = [8, 128], strides = [1, 1]} : vector<8x384xf32> to vector<8x128xf32>
    %116 = vector.extract_strided_slice %106 {offsets = [0, 128], sizes = [8, 128], strides = [1, 1]} : vector<8x384xf32> to vector<8x128xf32>
    %117 = arith.addf %115, %116 : vector<8x128xf32>
    %118 = arith.negf %117 : vector<8x128xf32>
    %119 = math.exp %118 : vector<8x128xf32>
    %cst_53 = arith.constant 1.000000e+00 : f32
    %120 = vector.broadcast %cst_53 : f32 to vector<8x128xf32>
    %121 = arith.addf %120, %119 : vector<8x128xf32>
    %122 = arith.divf %120, %121 : vector<8x128xf32>
    %123 = vector.extract_strided_slice %103 {offsets = [0, 256], sizes = [8, 128], strides = [1, 1]} : vector<8x384xf32> to vector<8x128xf32>
    %124 = vector.extract_strided_slice %106 {offsets = [0, 256], sizes = [8, 128], strides = [1, 1]} : vector<8x384xf32> to vector<8x128xf32>
    %125 = arith.addf %124, %25 : vector<8x128xf32>
    %126 = arith.mulf %114, %125 : vector<8x128xf32>
    %127 = arith.addf %123, %126 : vector<8x128xf32>
    %128 = math.tanh %127 : vector<8x128xf32>
    %cst_54 = arith.constant 1.000000e+00 : f32
    %129 = vector.broadcast %cst_54 : f32 to vector<8x128xf32>
    %130 = arith.subf %129, %122 : vector<8x128xf32>
    %131 = arith.mulf %130, %128 : vector<8x128xf32>
    %132 = arith.mulf %122, %97 : vector<8x128xf32>
    %133 = arith.addf %131, %132 : vector<8x128xf32>
    %134 = arith.index_cast %101 : i32 to index
    %c0_55 = arith.constant 0 : index
    %135 = vector.load %arg12[%134, %c0_55] : memref<64x128xf32, #tpu.memory_space<vmem>>, vector<8x128xf32>
    tpu.vector_store %arg12[%134, %c0_55], %133 {strides = array<i32>} : memref<64x128xf32, #tpu.memory_space<vmem>>, vector<8x128xf32>,
    %c3_i32 = arith.constant 3 : i32
    %c8_i32_56 = arith.constant 8 : i32
    %136 = arith.muli %c3_i32, %c8_i32_56 : i32
    %137 = tpu.assume_multiple %136, 8 : i32
    %138 = arith.index_cast %137 : i32 to index
    %c0_57 = arith.constant 0 : index
    %139 = vector.load %arg13[%138, %c0_57] : memref<64x384xf32, #tpu.memory_space<vmem>>, vector<8x384xf32>
    %c0_58 = arith.constant 0 : index
    %c0_59 = arith.constant 0 : index
    %c0_60 = arith.constant 0 : index
    %140 = vector.load %arg5[%c0_58, %c0_59, %c0_60] : memref<2x128x384xf32, #tpu.memory_space<vmem>>, vector<1x128x384xf32>
    %141 = vector.shape_cast %140 : vector<1x128x384xf32> to vector<128x384xf32>
    %cst_61 = arith.constant dense<0.000000e+00> : vector<8x384xf32>
    %142 = tpu.matmul %133, %141, %cst_61 {dimension_numbers = #tpu.dot_dimension_numbers<[1], [0], [0], [1], [0, 0, 1, 1], [], []>} : vector<8x128xf32>, vector<128x384xf32>, vector<8x384xf32> -> vector<8x384xf32>
    %143 = vector.extract_strided_slice %139 {offsets = [0, 0], sizes = [8, 128], strides = [1, 1]} : vector<8x384xf32> to vector<8x128xf32>
    %144 = vector.extract_strided_slice %142 {offsets = [0, 0], sizes = [8, 128], strides = [1, 1]} : vector<8x384xf32> to vector<8x128xf32>
    %145 = arith.addf %143, %144 : vector<8x128xf32>
    %146 = arith.negf %145 : vector<8x128xf32>
    %147 = math.exp %146 : vector<8x128xf32>
    %cst_62 = arith.constant 1.000000e+00 : f32
    %148 = vector.broadcast %cst_62 : f32 to vector<8x128xf32>
    %149 = arith.addf %148, %147 : vector<8x128xf32>
    %150 = arith.divf %148, %149 : vector<8x128xf32>
    %151 = vector.extract_strided_slice %139 {offsets = [0, 128], sizes = [8, 128], strides = [1, 1]} : vector<8x384xf32> to vector<8x128xf32>
    %152 = vector.extract_strided_slice %142 {offsets = [0, 128], sizes = [8, 128], strides = [1, 1]} : vector<8x384xf32> to vector<8x128xf32>
    %153 = arith.addf %151, %152 : vector<8x128xf32>
    %154 = arith.negf %153 : vector<8x128xf32>
    %155 = math.exp %154 : vector<8x128xf32>
    %cst_63 = arith.constant 1.000000e+00 : f32
    %156 = vector.broadcast %cst_63 : f32 to vector<8x128xf32>
    %157 = arith.addf %156, %155 : vector<8x128xf32>
    %158 = arith.divf %156, %157 : vector<8x128xf32>
    %159 = vector.extract_strided_slice %139 {offsets = [0, 256], sizes = [8, 128], strides = [1, 1]} : vector<8x384xf32> to vector<8x128xf32>
    %160 = vector.extract_strided_slice %142 {offsets = [0, 256], sizes = [8, 128], strides = [1, 1]} : vector<8x384xf32> to vector<8x128xf32>
    %161 = arith.addf %160, %25 : vector<8x128xf32>
    %162 = arith.mulf %150, %161 : vector<8x128xf32>
    %163 = arith.addf %159, %162 : vector<8x128xf32>
    %164 = math.tanh %163 : vector<8x128xf32>
    %cst_64 = arith.constant 1.000000e+00 : f32
    %165 = vector.broadcast %cst_64 : f32 to vector<8x128xf32>
    %166 = arith.subf %165, %158 : vector<8x128xf32>
    %167 = arith.mulf %166, %164 : vector<8x128xf32>
    %168 = arith.mulf %158, %133 : vector<8x128xf32>
    %169 = arith.addf %167, %168 : vector<8x128xf32>
    %170 = arith.index_cast %137 : i32 to index
    %c0_65 = arith.constant 0 : index
    %171 = vector.load %arg12[%170, %c0_65] : memref<64x128xf32, #tpu.memory_space<vmem>>, vector<8x128xf32>
    tpu.vector_store %arg12[%170, %c0_65], %169 {strides = array<i32>} : memref<64x128xf32, #tpu.memory_space<vmem>>, vector<8x128xf32>,
    %c4_i32 = arith.constant 4 : i32
    %c8_i32_66 = arith.constant 8 : i32
    %172 = arith.muli %c4_i32, %c8_i32_66 : i32
    %173 = tpu.assume_multiple %172, 8 : i32
    %174 = arith.index_cast %173 : i32 to index
    %c0_67 = arith.constant 0 : index
    %175 = vector.load %arg13[%174, %c0_67] : memref<64x384xf32, #tpu.memory_space<vmem>>, vector<8x384xf32>
    %c0_68 = arith.constant 0 : index
    %c0_69 = arith.constant 0 : index
    %c0_70 = arith.constant 0 : index
    %176 = vector.load %arg5[%c0_68, %c0_69, %c0_70] : memref<2x128x384xf32, #tpu.memory_space<vmem>>, vector<1x128x384xf32>
    %177 = vector.shape_cast %176 : vector<1x128x384xf32> to vector<128x384xf32>
    %cst_71 = arith.constant dense<0.000000e+00> : vector<8x384xf32>
    %178 = tpu.matmul %169, %177, %cst_71 {dimension_numbers = #tpu.dot_dimension_numbers<[1], [0], [0], [1], [0, 0, 1, 1], [], []>} : vector<8x128xf32>, vector<128x384xf32>, vector<8x384xf32> -> vector<8x384xf32>
    %179 = vector.extract_strided_slice %175 {offsets = [0, 0], sizes = [8, 128], strides = [1, 1]} : vector<8x384xf32> to vector<8x128xf32>
    %180 = vector.extract_strided_slice %178 {offsets = [0, 0], sizes = [8, 128], strides = [1, 1]} : vector<8x384xf32> to vector<8x128xf32>
    %181 = arith.addf %179, %180 : vector<8x128xf32>
    %182 = arith.negf %181 : vector<8x128xf32>
    %183 = math.exp %182 : vector<8x128xf32>
    %cst_72 = arith.constant 1.000000e+00 : f32
    %184 = vector.broadcast %cst_72 : f32 to vector<8x128xf32>
    %185 = arith.addf %184, %183 : vector<8x128xf32>
    %186 = arith.divf %184, %185 : vector<8x128xf32>
    %187 = vector.extract_strided_slice %175 {offsets = [0, 128], sizes = [8, 128], strides = [1, 1]} : vector<8x384xf32> to vector<8x128xf32>
    %188 = vector.extract_strided_slice %178 {offsets = [0, 128], sizes = [8, 128], strides = [1, 1]} : vector<8x384xf32> to vector<8x128xf32>
    %189 = arith.addf %187, %188 : vector<8x128xf32>
    %190 = arith.negf %189 : vector<8x128xf32>
    %191 = math.exp %190 : vector<8x128xf32>
    %cst_73 = arith.constant 1.000000e+00 : f32
    %192 = vector.broadcast %cst_73 : f32 to vector<8x128xf32>
    %193 = arith.addf %192, %191 : vector<8x128xf32>
    %194 = arith.divf %192, %193 : vector<8x128xf32>
    %195 = vector.extract_strided_slice %175 {offsets = [0, 256], sizes = [8, 128], strides = [1, 1]} : vector<8x384xf32> to vector<8x128xf32>
    %196 = vector.extract_strided_slice %178 {offsets = [0, 256], sizes = [8, 128], strides = [1, 1]} : vector<8x384xf32> to vector<8x128xf32>
    %197 = arith.addf %196, %25 : vector<8x128xf32>
    %198 = arith.mulf %186, %197 : vector<8x128xf32>
    %199 = arith.addf %195, %198 : vector<8x128xf32>
    %200 = math.tanh %199 : vector<8x128xf32>
    %cst_74 = arith.constant 1.000000e+00 : f32
    %201 = vector.broadcast %cst_74 : f32 to vector<8x128xf32>
    %202 = arith.subf %201, %194 : vector<8x128xf32>
    %203 = arith.mulf %202, %200 : vector<8x128xf32>
    %204 = arith.mulf %194, %169 : vector<8x128xf32>
    %205 = arith.addf %203, %204 : vector<8x128xf32>
    %206 = arith.index_cast %173 : i32 to index
    %c0_75 = arith.constant 0 : index
    %207 = vector.load %arg12[%206, %c0_75] : memref<64x128xf32, #tpu.memory_space<vmem>>, vector<8x128xf32>
    tpu.vector_store %arg12[%206, %c0_75], %205 {strides = array<i32>} : memref<64x128xf32, #tpu.memory_space<vmem>>, vector<8x128xf32>,
    %c5_i32 = arith.constant 5 : i32
    %c8_i32_76 = arith.constant 8 : i32
    %208 = arith.muli %c5_i32, %c8_i32_76 : i32
    %209 = tpu.assume_multiple %208, 8 : i32
    %210 = arith.index_cast %209 : i32 to index
    %c0_77 = arith.constant 0 : index
    %211 = vector.load %arg13[%210, %c0_77] : memref<64x384xf32, #tpu.memory_space<vmem>>, vector<8x384xf32>
    %c0_78 = arith.constant 0 : index
    %c0_79 = arith.constant 0 : index
    %c0_80 = arith.constant 0 : index
    %212 = vector.load %arg5[%c0_78, %c0_79, %c0_80] : memref<2x128x384xf32, #tpu.memory_space<vmem>>, vector<1x128x384xf32>
    %213 = vector.shape_cast %212 : vector<1x128x384xf32> to vector<128x384xf32>
    %cst_81 = arith.constant dense<0.000000e+00> : vector<8x384xf32>
    %214 = tpu.matmul %205, %213, %cst_81 {dimension_numbers = #tpu.dot_dimension_numbers<[1], [0], [0], [1], [0, 0, 1, 1], [], []>} : vector<8x128xf32>, vector<128x384xf32>, vector<8x384xf32> -> vector<8x384xf32>
    %215 = vector.extract_strided_slice %211 {offsets = [0, 0], sizes = [8, 128], strides = [1, 1]} : vector<8x384xf32> to vector<8x128xf32>
    %216 = vector.extract_strided_slice %214 {offsets = [0, 0], sizes = [8, 128], strides = [1, 1]} : vector<8x384xf32> to vector<8x128xf32>
    %217 = arith.addf %215, %216 : vector<8x128xf32>
    %218 = arith.negf %217 : vector<8x128xf32>
    %219 = math.exp %218 : vector<8x128xf32>
    %cst_82 = arith.constant 1.000000e+00 : f32
    %220 = vector.broadcast %cst_82 : f32 to vector<8x128xf32>
    %221 = arith.addf %220, %219 : vector<8x128xf32>
    %222 = arith.divf %220, %221 : vector<8x128xf32>
    %223 = vector.extract_strided_slice %211 {offsets = [0, 128], sizes = [8, 128], strides = [1, 1]} : vector<8x384xf32> to vector<8x128xf32>
    %224 = vector.extract_strided_slice %214 {offsets = [0, 128], sizes = [8, 128], strides = [1, 1]} : vector<8x384xf32> to vector<8x128xf32>
    %225 = arith.addf %223, %224 : vector<8x128xf32>
    %226 = arith.negf %225 : vector<8x128xf32>
    %227 = math.exp %226 : vector<8x128xf32>
    %cst_83 = arith.constant 1.000000e+00 : f32
    %228 = vector.broadcast %cst_83 : f32 to vector<8x128xf32>
    %229 = arith.addf %228, %227 : vector<8x128xf32>
    %230 = arith.divf %228, %229 : vector<8x128xf32>
    %231 = vector.extract_strided_slice %211 {offsets = [0, 256], sizes = [8, 128], strides = [1, 1]} : vector<8x384xf32> to vector<8x128xf32>
    %232 = vector.extract_strided_slice %214 {offsets = [0, 256], sizes = [8, 128], strides = [1, 1]} : vector<8x384xf32> to vector<8x128xf32>
    %233 = arith.addf %232, %25 : vector<8x128xf32>
    %234 = arith.mulf %222, %233 : vector<8x128xf32>
    %235 = arith.addf %231, %234 : vector<8x128xf32>
    %236 = math.tanh %235 : vector<8x128xf32>
    %cst_84 = arith.constant 1.000000e+00 : f32
    %237 = vector.broadcast %cst_84 : f32 to vector<8x128xf32>
    %238 = arith.subf %237, %230 : vector<8x128xf32>
    %239 = arith.mulf %238, %236 : vector<8x128xf32>
    %240 = arith.mulf %230, %205 : vector<8x128xf32>
    %241 = arith.addf %239, %240 : vector<8x128xf32>
    %242 = arith.index_cast %209 : i32 to index
    %c0_85 = arith.constant 0 : index
    %243 = vector.load %arg12[%242, %c0_85] : memref<64x128xf32, #tpu.memory_space<vmem>>, vector<8x128xf32>
    tpu.vector_store %arg12[%242, %c0_85], %241 {strides = array<i32>} : memref<64x128xf32, #tpu.memory_space<vmem>>, vector<8x128xf32>,
    %c6_i32 = arith.constant 6 : i32
    %c8_i32_86 = arith.constant 8 : i32
    %244 = arith.muli %c6_i32, %c8_i32_86 : i32
    %245 = tpu.assume_multiple %244, 8 : i32
    %246 = arith.index_cast %245 : i32 to index
    %c0_87 = arith.constant 0 : index
    %247 = vector.load %arg13[%246, %c0_87] : memref<64x384xf32, #tpu.memory_space<vmem>>, vector<8x384xf32>
    %c0_88 = arith.constant 0 : index
    %c0_89 = arith.constant 0 : index
    %c0_90 = arith.constant 0 : index
    %248 = vector.load %arg5[%c0_88, %c0_89, %c0_90] : memref<2x128x384xf32, #tpu.memory_space<vmem>>, vector<1x128x384xf32>
    %249 = vector.shape_cast %248 : vector<1x128x384xf32> to vector<128x384xf32>
    %cst_91 = arith.constant dense<0.000000e+00> : vector<8x384xf32>
    %250 = tpu.matmul %241, %249, %cst_91 {dimension_numbers = #tpu.dot_dimension_numbers<[1], [0], [0], [1], [0, 0, 1, 1], [], []>} : vector<8x128xf32>, vector<128x384xf32>, vector<8x384xf32> -> vector<8x384xf32>
    %251 = vector.extract_strided_slice %247 {offsets = [0, 0], sizes = [8, 128], strides = [1, 1]} : vector<8x384xf32> to vector<8x128xf32>
    %252 = vector.extract_strided_slice %250 {offsets = [0, 0], sizes = [8, 128], strides = [1, 1]} : vector<8x384xf32> to vector<8x128xf32>
    %253 = arith.addf %251, %252 : vector<8x128xf32>
    %254 = arith.negf %253 : vector<8x128xf32>
    %255 = math.exp %254 : vector<8x128xf32>
    %cst_92 = arith.constant 1.000000e+00 : f32
    %256 = vector.broadcast %cst_92 : f32 to vector<8x128xf32>
    %257 = arith.addf %256, %255 : vector<8x128xf32>
    %258 = arith.divf %256, %257 : vector<8x128xf32>
    %259 = vector.extract_strided_slice %247 {offsets = [0, 128], sizes = [8, 128], strides = [1, 1]} : vector<8x384xf32> to vector<8x128xf32>
    %260 = vector.extract_strided_slice %250 {offsets = [0, 128], sizes = [8, 128], strides = [1, 1]} : vector<8x384xf32> to vector<8x128xf32>
    %261 = arith.addf %259, %260 : vector<8x128xf32>
    %262 = arith.negf %261 : vector<8x128xf32>
    %263 = math.exp %262 : vector<8x128xf32>
    %cst_93 = arith.constant 1.000000e+00 : f32
    %264 = vector.broadcast %cst_93 : f32 to vector<8x128xf32>
    %265 = arith.addf %264, %263 : vector<8x128xf32>
    %266 = arith.divf %264, %265 : vector<8x128xf32>
    %267 = vector.extract_strided_slice %247 {offsets = [0, 256], sizes = [8, 128], strides = [1, 1]} : vector<8x384xf32> to vector<8x128xf32>
    %268 = vector.extract_strided_slice %250 {offsets = [0, 256], sizes = [8, 128], strides = [1, 1]} : vector<8x384xf32> to vector<8x128xf32>
    %269 = arith.addf %268, %25 : vector<8x128xf32>
    %270 = arith.mulf %258, %269 : vector<8x128xf32>
    %271 = arith.addf %267, %270 : vector<8x128xf32>
    %272 = math.tanh %271 : vector<8x128xf32>
    %cst_94 = arith.constant 1.000000e+00 : f32
    %273 = vector.broadcast %cst_94 : f32 to vector<8x128xf32>
    %274 = arith.subf %273, %266 : vector<8x128xf32>
    %275 = arith.mulf %274, %272 : vector<8x128xf32>
    %276 = arith.mulf %266, %241 : vector<8x128xf32>
    %277 = arith.addf %275, %276 : vector<8x128xf32>
    %278 = arith.index_cast %245 : i32 to index
    %c0_95 = arith.constant 0 : index
    %279 = vector.load %arg12[%278, %c0_95] : memref<64x128xf32, #tpu.memory_space<vmem>>, vector<8x128xf32>
    tpu.vector_store %arg12[%278, %c0_95], %277 {strides = array<i32>} : memref<64x128xf32, #tpu.memory_space<vmem>>, vector<8x128xf32>,
    %c7_i32 = arith.constant 7 : i32
    %c8_i32_96 = arith.constant 8 : i32
    %280 = arith.muli %c7_i32, %c8_i32_96 : i32
    %281 = tpu.assume_multiple %280, 8 : i32
    %282 = arith.index_cast %281 : i32 to index
    %c0_97 = arith.constant 0 : index
    %283 = vector.load %arg13[%282, %c0_97] : memref<64x384xf32, #tpu.memory_space<vmem>>, vector<8x384xf32>
    %c0_98 = arith.constant 0 : index
    %c0_99 = arith.constant 0 : index
    %c0_100 = arith.constant 0 : index
    %284 = vector.load %arg5[%c0_98, %c0_99, %c0_100] : memref<2x128x384xf32, #tpu.memory_space<vmem>>, vector<1x128x384xf32>
    %285 = vector.shape_cast %284 : vector<1x128x384xf32> to vector<128x384xf32>
    %cst_101 = arith.constant dense<0.000000e+00> : vector<8x384xf32>
    %286 = tpu.matmul %277, %285, %cst_101 {dimension_numbers = #tpu.dot_dimension_numbers<[1], [0], [0], [1], [0, 0, 1, 1], [], []>} : vector<8x128xf32>, vector<128x384xf32>, vector<8x384xf32> -> vector<8x384xf32>
    %287 = vector.extract_strided_slice %283 {offsets = [0, 0], sizes = [8, 128], strides = [1, 1]} : vector<8x384xf32> to vector<8x128xf32>
    %288 = vector.extract_strided_slice %286 {offsets = [0, 0], sizes = [8, 128], strides = [1, 1]} : vector<8x384xf32> to vector<8x128xf32>
    %289 = arith.addf %287, %288 : vector<8x128xf32>
    %290 = arith.negf %289 : vector<8x128xf32>
    %291 = math.exp %290 : vector<8x128xf32>
    %cst_102 = arith.constant 1.000000e+00 : f32
    %292 = vector.broadcast %cst_102 : f32 to vector<8x128xf32>
    %293 = arith.addf %292, %291 : vector<8x128xf32>
    %294 = arith.divf %292, %293 : vector<8x128xf32>
    %295 = vector.extract_strided_slice %283 {offsets = [0, 128], sizes = [8, 128], strides = [1, 1]} : vector<8x384xf32> to vector<8x128xf32>
    %296 = vector.extract_strided_slice %286 {offsets = [0, 128], sizes = [8, 128], strides = [1, 1]} : vector<8x384xf32> to vector<8x128xf32>
    %297 = arith.addf %295, %296 : vector<8x128xf32>
    %298 = arith.negf %297 : vector<8x128xf32>
    %299 = math.exp %298 : vector<8x128xf32>
    %cst_103 = arith.constant 1.000000e+00 : f32
    %300 = vector.broadcast %cst_103 : f32 to vector<8x128xf32>
    %301 = arith.addf %300, %299 : vector<8x128xf32>
    %302 = arith.divf %300, %301 : vector<8x128xf32>
    %303 = vector.extract_strided_slice %283 {offsets = [0, 256], sizes = [8, 128], strides = [1, 1]} : vector<8x384xf32> to vector<8x128xf32>
    %304 = vector.extract_strided_slice %286 {offsets = [0, 256], sizes = [8, 128], strides = [1, 1]} : vector<8x384xf32> to vector<8x128xf32>
    %305 = arith.addf %304, %25 : vector<8x128xf32>
    %306 = arith.mulf %294, %305 : vector<8x128xf32>
    %307 = arith.addf %303, %306 : vector<8x128xf32>
    %308 = math.tanh %307 : vector<8x128xf32>
    %cst_104 = arith.constant 1.000000e+00 : f32
    %309 = vector.broadcast %cst_104 : f32 to vector<8x128xf32>
    %310 = arith.subf %309, %302 : vector<8x128xf32>
    %311 = arith.mulf %310, %308 : vector<8x128xf32>
    %312 = arith.mulf %302, %277 : vector<8x128xf32>
    %313 = arith.addf %311, %312 : vector<8x128xf32>
    %314 = arith.index_cast %281 : i32 to index
    %c0_105 = arith.constant 0 : index
    %315 = vector.load %arg12[%314, %c0_105] : memref<64x128xf32, #tpu.memory_space<vmem>>, vector<8x128xf32>
    tpu.vector_store %arg12[%314, %c0_105], %313 {strides = array<i32>} : memref<64x128xf32, #tpu.memory_space<vmem>>, vector<8x128xf32>,
    %c8_i32_106 = arith.constant 8 : i32
    %c0_107 = arith.constant 0 : index
    %c0_108 = arith.constant 0 : index
    %c0_109 = arith.constant 0 : index
    %316 = vector.load %arg11[%c0_107, %c0_108, %c0_109] : memref<2x8x128xf32, #tpu.memory_space<vmem>>, vector<1x8x128xf32>
    %317 = vector.shape_cast %316 : vector<1x8x128xf32> to vector<8x128xf32>
    %318 = vector.shape_cast %313 : vector<8x128xf32> to vector<1x8x128xf32>
    tpu.vector_store %arg11[%c0_107, %c0_108, %c0_109], %318 {strides = array<i32>} : memref<2x8x128xf32, #tpu.memory_space<vmem>>, vector<1x8x128xf32>,
    %c0_110 = arith.constant 0 : index
    %c0_111 = arith.constant 0 : index
    %319 = vector.load %arg12[%c0_110, %c0_111] : memref<64x128xf32, #tpu.memory_space<vmem>>, vector<64x128xf32>
    %c1 = arith.constant 1 : index
    %c0_112 = arith.constant 0 : index
    %c0_113 = arith.constant 0 : index
    %320 = vector.load %arg4[%c1, %c0_112, %c0_113] : memref<2x128x384xf32, #tpu.memory_space<vmem>>, vector<1x128x384xf32>
    %321 = vector.shape_cast %320 : vector<1x128x384xf32> to vector<128x384xf32>
    %cst_114 = arith.constant dense<0.000000e+00> : vector<64x384xf32>
    %322 = tpu.matmul %319, %321, %cst_114 {dimension_numbers = #tpu.dot_dimension_numbers<[1], [0], [0], [1], [0, 0, 1, 1], [], []>} : vector<64x128xf32>, vector<128x384xf32>, vector<64x384xf32> -> vector<64x384xf32>
    %c1_115 = arith.constant 1 : index
    %c0_116 = arith.constant 0 : index
    %c0_117 = arith.constant 0 : index
    %323 = vector.load %arg6[%c1_115, %c0_116, %c0_117] : memref<2x1x384xf32, #tpu.memory_space<vmem>>, vector<1x1x384xf32>
    %324 = vector.shape_cast %323 : vector<1x1x384xf32> to vector<1x384xf32>
    %325 = vector.broadcast %324 : vector<1x384xf32> to vector<64x384xf32>
    %326 = arith.addf %322, %325 : vector<64x384xf32>
    %c0_118 = arith.constant 0 : index
    %c0_119 = arith.constant 0 : index
    %327 = vector.load %arg13[%c0_118, %c0_119] : memref<64x384xf32, #tpu.memory_space<vmem>>, vector<64x384xf32>
    tpu.vector_store %arg13[%c0_118, %c0_119], %326 {strides = array<i32>} : memref<64x384xf32, #tpu.memory_space<vmem>>, vector<64x384xf32>,
    %c1_120 = arith.constant 1 : index
    %c0_121 = arith.constant 0 : index
    %c0_122 = arith.constant 0 : index
    %328 = vector.load %arg7[%c1_120, %c0_121, %c0_122] : memref<2x1x128xf32, #tpu.memory_space<vmem>>, vector<1x1x128xf32>
    %329 = vector.shape_cast %328 : vector<1x1x128xf32> to vector<1x128xf32>
    %330 = vector.shape_cast %329 : vector<1x128xf32> to vector<1x128xf32>
    %331 = vector.broadcast %330 : vector<1x128xf32> to vector<8x128xf32>
    %c1_123 = arith.constant 1 : index
    %c0_124 = arith.constant 0 : index
    %c0_125 = arith.constant 0 : index
    %332 = vector.load %arg1[%c1_123, %c0_124, %c0_125] : memref<2x8x128xf32, #tpu.memory_space<vmem>>, vector<1x8x128xf32>
    %333 = vector.shape_cast %332 : vector<1x8x128xf32> to vector<8x128xf32>
    %c0_i32_126 = arith.constant 0 : i32
    %c8_i32_127 = arith.constant 8 : i32
    %334 = arith.muli %c0_i32_126, %c8_i32_127 : i32
    %335 = tpu.assume_multiple %334, 8 : i32
    %336 = arith.index_cast %335 : i32 to index
    %c0_128 = arith.constant 0 : index
    %337 = vector.load %arg13[%336, %c0_128] : memref<64x384xf32, #tpu.memory_space<vmem>>, vector<8x384xf32>
    %c1_129 = arith.constant 1 : index
    %c0_130 = arith.constant 0 : index
    %c0_131 = arith.constant 0 : index
    %338 = vector.load %arg5[%c1_129, %c0_130, %c0_131] : memref<2x128x384xf32, #tpu.memory_space<vmem>>, vector<1x128x384xf32>
    %339 = vector.shape_cast %338 : vector<1x128x384xf32> to vector<128x384xf32>
    %cst_132 = arith.constant dense<0.000000e+00> : vector<8x384xf32>
    %340 = tpu.matmul %333, %339, %cst_132 {dimension_numbers = #tpu.dot_dimension_numbers<[1], [0], [0], [1], [0, 0, 1, 1], [], []>} : vector<8x128xf32>, vector<128x384xf32>, vector<8x384xf32> -> vector<8x384xf32>
    %341 = vector.extract_strided_slice %337 {offsets = [0, 0], sizes = [8, 128], strides = [1, 1]} : vector<8x384xf32> to vector<8x128xf32>
    %342 = vector.extract_strided_slice %340 {offsets = [0, 0], sizes = [8, 128], strides = [1, 1]} : vector<8x384xf32> to vector<8x128xf32>
    %343 = arith.addf %341, %342 : vector<8x128xf32>
    %344 = arith.negf %343 : vector<8x128xf32>
    %345 = math.exp %344 : vector<8x128xf32>
    %cst_133 = arith.constant 1.000000e+00 : f32
    %346 = vector.broadcast %cst_133 : f32 to vector<8x128xf32>
    %347 = arith.addf %346, %345 : vector<8x128xf32>
    %348 = arith.divf %346, %347 : vector<8x128xf32>
    %349 = vector.extract_strided_slice %337 {offsets = [0, 128], sizes = [8, 128], strides = [1, 1]} : vector<8x384xf32> to vector<8x128xf32>
    %350 = vector.extract_strided_slice %340 {offsets = [0, 128], sizes = [8, 128], strides = [1, 1]} : vector<8x384xf32> to vector<8x128xf32>
    %351 = arith.addf %349, %350 : vector<8x128xf32>
    %352 = arith.negf %351 : vector<8x128xf32>
    %353 = math.exp %352 : vector<8x128xf32>
    %cst_134 = arith.constant 1.000000e+00 : f32
    %354 = vector.broadcast %cst_134 : f32 to vector<8x128xf32>
    %355 = arith.addf %354, %353 : vector<8x128xf32>
    %356 = arith.divf %354, %355 : vector<8x128xf32>
    %357 = vector.extract_strided_slice %337 {offsets = [0, 256], sizes = [8, 128], strides = [1, 1]} : vector<8x384xf32> to vector<8x128xf32>
    %358 = vector.extract_strided_slice %340 {offsets = [0, 256], sizes = [8, 128], strides = [1, 1]} : vector<8x384xf32> to vector<8x128xf32>
    %359 = arith.addf %358, %331 : vector<8x128xf32>
    %360 = arith.mulf %348, %359 : vector<8x128xf32>
    %361 = arith.addf %357, %360 : vector<8x128xf32>
    %362 = math.tanh %361 : vector<8x128xf32>
    %cst_135 = arith.constant 1.000000e+00 : f32
    %363 = vector.broadcast %cst_135 : f32 to vector<8x128xf32>
    %364 = arith.subf %363, %356 : vector<8x128xf32>
    %365 = arith.mulf %364, %362 : vector<8x128xf32>
    %366 = arith.mulf %356, %333 : vector<8x128xf32>
    %367 = arith.addf %365, %366 : vector<8x128xf32>
    %368 = arith.index_cast %335 : i32 to index
    %c0_136 = arith.constant 0 : index
    %369 = vector.load %arg12[%368, %c0_136] : memref<64x128xf32, #tpu.memory_space<vmem>>, vector<8x128xf32>
    tpu.vector_store %arg12[%368, %c0_136], %367 {strides = array<i32>} : memref<64x128xf32, #tpu.memory_space<vmem>>, vector<8x128xf32>,
    %c1_i32_137 = arith.constant 1 : i32
    %c8_i32_138 = arith.constant 8 : i32
    %370 = arith.muli %c1_i32_137, %c8_i32_138 : i32
    %371 = tpu.assume_multiple %370, 8 : i32
    %372 = arith.index_cast %371 : i32 to index
    %c0_139 = arith.constant 0 : index
    %373 = vector.load %arg13[%372, %c0_139] : memref<64x384xf32, #tpu.memory_space<vmem>>, vector<8x384xf32>
    %c1_140 = arith.constant 1 : index
    %c0_141 = arith.constant 0 : index
    %c0_142 = arith.constant 0 : index
    %374 = vector.load %arg5[%c1_140, %c0_141, %c0_142] : memref<2x128x384xf32, #tpu.memory_space<vmem>>, vector<1x128x384xf32>
    %375 = vector.shape_cast %374 : vector<1x128x384xf32> to vector<128x384xf32>
    %cst_143 = arith.constant dense<0.000000e+00> : vector<8x384xf32>
    %376 = tpu.matmul %367, %375, %cst_143 {dimension_numbers = #tpu.dot_dimension_numbers<[1], [0], [0], [1], [0, 0, 1, 1], [], []>} : vector<8x128xf32>, vector<128x384xf32>, vector<8x384xf32> -> vector<8x384xf32>
    %377 = vector.extract_strided_slice %373 {offsets = [0, 0], sizes = [8, 128], strides = [1, 1]} : vector<8x384xf32> to vector<8x128xf32>
    %378 = vector.extract_strided_slice %376 {offsets = [0, 0], sizes = [8, 128], strides = [1, 1]} : vector<8x384xf32> to vector<8x128xf32>
    %379 = arith.addf %377, %378 : vector<8x128xf32>
    %380 = arith.negf %379 : vector<8x128xf32>
    %381 = math.exp %380 : vector<8x128xf32>
    %cst_144 = arith.constant 1.000000e+00 : f32
    %382 = vector.broadcast %cst_144 : f32 to vector<8x128xf32>
    %383 = arith.addf %382, %381 : vector<8x128xf32>
    %384 = arith.divf %382, %383 : vector<8x128xf32>
    %385 = vector.extract_strided_slice %373 {offsets = [0, 128], sizes = [8, 128], strides = [1, 1]} : vector<8x384xf32> to vector<8x128xf32>
    %386 = vector.extract_strided_slice %376 {offsets = [0, 128], sizes = [8, 128], strides = [1, 1]} : vector<8x384xf32> to vector<8x128xf32>
    %387 = arith.addf %385, %386 : vector<8x128xf32>
    %388 = arith.negf %387 : vector<8x128xf32>
    %389 = math.exp %388 : vector<8x128xf32>
    %cst_145 = arith.constant 1.000000e+00 : f32
    %390 = vector.broadcast %cst_145 : f32 to vector<8x128xf32>
    %391 = arith.addf %390, %389 : vector<8x128xf32>
    %392 = arith.divf %390, %391 : vector<8x128xf32>
    %393 = vector.extract_strided_slice %373 {offsets = [0, 256], sizes = [8, 128], strides = [1, 1]} : vector<8x384xf32> to vector<8x128xf32>
    %394 = vector.extract_strided_slice %376 {offsets = [0, 256], sizes = [8, 128], strides = [1, 1]} : vector<8x384xf32> to vector<8x128xf32>
    %395 = arith.addf %394, %331 : vector<8x128xf32>
    %396 = arith.mulf %384, %395 : vector<8x128xf32>
    %397 = arith.addf %393, %396 : vector<8x128xf32>
    %398 = math.tanh %397 : vector<8x128xf32>
    %cst_146 = arith.constant 1.000000e+00 : f32
    %399 = vector.broadcast %cst_146 : f32 to vector<8x128xf32>
    %400 = arith.subf %399, %392 : vector<8x128xf32>
    %401 = arith.mulf %400, %398 : vector<8x128xf32>
    %402 = arith.mulf %392, %367 : vector<8x128xf32>
    %403 = arith.addf %401, %402 : vector<8x128xf32>
    %404 = arith.index_cast %371 : i32 to index
    %c0_147 = arith.constant 0 : index
    %405 = vector.load %arg12[%404, %c0_147] : memref<64x128xf32, #tpu.memory_space<vmem>>, vector<8x128xf32>
    tpu.vector_store %arg12[%404, %c0_147], %403 {strides = array<i32>} : memref<64x128xf32, #tpu.memory_space<vmem>>, vector<8x128xf32>,
    %c2_i32_148 = arith.constant 2 : i32
    %c8_i32_149 = arith.constant 8 : i32
    %406 = arith.muli %c2_i32_148, %c8_i32_149 : i32
    %407 = tpu.assume_multiple %406, 8 : i32
    %408 = arith.index_cast %407 : i32 to index
    %c0_150 = arith.constant 0 : index
    %409 = vector.load %arg13[%408, %c0_150] : memref<64x384xf32, #tpu.memory_space<vmem>>, vector<8x384xf32>
    %c1_151 = arith.constant 1 : index
    %c0_152 = arith.constant 0 : index
    %c0_153 = arith.constant 0 : index
    %410 = vector.load %arg5[%c1_151, %c0_152, %c0_153] : memref<2x128x384xf32, #tpu.memory_space<vmem>>, vector<1x128x384xf32>
    %411 = vector.shape_cast %410 : vector<1x128x384xf32> to vector<128x384xf32>
    %cst_154 = arith.constant dense<0.000000e+00> : vector<8x384xf32>
    %412 = tpu.matmul %403, %411, %cst_154 {dimension_numbers = #tpu.dot_dimension_numbers<[1], [0], [0], [1], [0, 0, 1, 1], [], []>} : vector<8x128xf32>, vector<128x384xf32>, vector<8x384xf32> -> vector<8x384xf32>
    %413 = vector.extract_strided_slice %409 {offsets = [0, 0], sizes = [8, 128], strides = [1, 1]} : vector<8x384xf32> to vector<8x128xf32>
    %414 = vector.extract_strided_slice %412 {offsets = [0, 0], sizes = [8, 128], strides = [1, 1]} : vector<8x384xf32> to vector<8x128xf32>
    %415 = arith.addf %413, %414 : vector<8x128xf32>
    %416 = arith.negf %415 : vector<8x128xf32>
    %417 = math.exp %416 : vector<8x128xf32>
    %cst_155 = arith.constant 1.000000e+00 : f32
    %418 = vector.broadcast %cst_155 : f32 to vector<8x128xf32>
    %419 = arith.addf %418, %417 : vector<8x128xf32>
    %420 = arith.divf %418, %419 : vector<8x128xf32>
    %421 = vector.extract_strided_slice %409 {offsets = [0, 128], sizes = [8, 128], strides = [1, 1]} : vector<8x384xf32> to vector<8x128xf32>
    %422 = vector.extract_strided_slice %412 {offsets = [0, 128], sizes = [8, 128], strides = [1, 1]} : vector<8x384xf32> to vector<8x128xf32>
    %423 = arith.addf %421, %422 : vector<8x128xf32>
    %424 = arith.negf %423 : vector<8x128xf32>
    %425 = math.exp %424 : vector<8x128xf32>
    %cst_156 = arith.constant 1.000000e+00 : f32
    %426 = vector.broadcast %cst_156 : f32 to vector<8x128xf32>
    %427 = arith.addf %426, %425 : vector<8x128xf32>
    %428 = arith.divf %426, %427 : vector<8x128xf32>
    %429 = vector.extract_strided_slice %409 {offsets = [0, 256], sizes = [8, 128], strides = [1, 1]} : vector<8x384xf32> to vector<8x128xf32>
    %430 = vector.extract_strided_slice %412 {offsets = [0, 256], sizes = [8, 128], strides = [1, 1]} : vector<8x384xf32> to vector<8x128xf32>
    %431 = arith.addf %430, %331 : vector<8x128xf32>
    %432 = arith.mulf %420, %431 : vector<8x128xf32>
    %433 = arith.addf %429, %432 : vector<8x128xf32>
    %434 = math.tanh %433 : vector<8x128xf32>
    %cst_157 = arith.constant 1.000000e+00 : f32
    %435 = vector.broadcast %cst_157 : f32 to vector<8x128xf32>
    %436 = arith.subf %435, %428 : vector<8x128xf32>
    %437 = arith.mulf %436, %434 : vector<8x128xf32>
    %438 = arith.mulf %428, %403 : vector<8x128xf32>
    %439 = arith.addf %437, %438 : vector<8x128xf32>
    %440 = arith.index_cast %407 : i32 to index
    %c0_158 = arith.constant 0 : index
    %441 = vector.load %arg12[%440, %c0_158] : memref<64x128xf32, #tpu.memory_space<vmem>>, vector<8x128xf32>
    tpu.vector_store %arg12[%440, %c0_158], %439 {strides = array<i32>} : memref<64x128xf32, #tpu.memory_space<vmem>>, vector<8x128xf32>,
    %c3_i32_159 = arith.constant 3 : i32
    %c8_i32_160 = arith.constant 8 : i32
    %442 = arith.muli %c3_i32_159, %c8_i32_160 : i32
    %443 = tpu.assume_multiple %442, 8 : i32
    %444 = arith.index_cast %443 : i32 to index
    %c0_161 = arith.constant 0 : index
    %445 = vector.load %arg13[%444, %c0_161] : memref<64x384xf32, #tpu.memory_space<vmem>>, vector<8x384xf32>
    %c1_162 = arith.constant 1 : index
    %c0_163 = arith.constant 0 : index
    %c0_164 = arith.constant 0 : index
    %446 = vector.load %arg5[%c1_162, %c0_163, %c0_164] : memref<2x128x384xf32, #tpu.memory_space<vmem>>, vector<1x128x384xf32>
    %447 = vector.shape_cast %446 : vector<1x128x384xf32> to vector<128x384xf32>
    %cst_165 = arith.constant dense<0.000000e+00> : vector<8x384xf32>
    %448 = tpu.matmul %439, %447, %cst_165 {dimension_numbers = #tpu.dot_dimension_numbers<[1], [0], [0], [1], [0, 0, 1, 1], [], []>} : vector<8x128xf32>, vector<128x384xf32>, vector<8x384xf32> -> vector<8x384xf32>
    %449 = vector.extract_strided_slice %445 {offsets = [0, 0], sizes = [8, 128], strides = [1, 1]} : vector<8x384xf32> to vector<8x128xf32>
    %450 = vector.extract_strided_slice %448 {offsets = [0, 0], sizes = [8, 128], strides = [1, 1]} : vector<8x384xf32> to vector<8x128xf32>
    %451 = arith.addf %449, %450 : vector<8x128xf32>
    %452 = arith.negf %451 : vector<8x128xf32>
    %453 = math.exp %452 : vector<8x128xf32>
    %cst_166 = arith.constant 1.000000e+00 : f32
    %454 = vector.broadcast %cst_166 : f32 to vector<8x128xf32>
    %455 = arith.addf %454, %453 : vector<8x128xf32>
    %456 = arith.divf %454, %455 : vector<8x128xf32>
    %457 = vector.extract_strided_slice %445 {offsets = [0, 128], sizes = [8, 128], strides = [1, 1]} : vector<8x384xf32> to vector<8x128xf32>
    %458 = vector.extract_strided_slice %448 {offsets = [0, 128], sizes = [8, 128], strides = [1, 1]} : vector<8x384xf32> to vector<8x128xf32>
    %459 = arith.addf %457, %458 : vector<8x128xf32>
    %460 = arith.negf %459 : vector<8x128xf32>
    %461 = math.exp %460 : vector<8x128xf32>
    %cst_167 = arith.constant 1.000000e+00 : f32
    %462 = vector.broadcast %cst_167 : f32 to vector<8x128xf32>
    %463 = arith.addf %462, %461 : vector<8x128xf32>
    %464 = arith.divf %462, %463 : vector<8x128xf32>
    %465 = vector.extract_strided_slice %445 {offsets = [0, 256], sizes = [8, 128], strides = [1, 1]} : vector<8x384xf32> to vector<8x128xf32>
    %466 = vector.extract_strided_slice %448 {offsets = [0, 256], sizes = [8, 128], strides = [1, 1]} : vector<8x384xf32> to vector<8x128xf32>
    %467 = arith.addf %466, %331 : vector<8x128xf32>
    %468 = arith.mulf %456, %467 : vector<8x128xf32>
    %469 = arith.addf %465, %468 : vector<8x128xf32>
    %470 = math.tanh %469 : vector<8x128xf32>
    %cst_168 = arith.constant 1.000000e+00 : f32
    %471 = vector.broadcast %cst_168 : f32 to vector<8x128xf32>
    %472 = arith.subf %471, %464 : vector<8x128xf32>
    %473 = arith.mulf %472, %470 : vector<8x128xf32>
    %474 = arith.mulf %464, %439 : vector<8x128xf32>
    %475 = arith.addf %473, %474 : vector<8x128xf32>
    %476 = arith.index_cast %443 : i32 to index
    %c0_169 = arith.constant 0 : index
    %477 = vector.load %arg12[%476, %c0_169] : memref<64x128xf32, #tpu.memory_space<vmem>>, vector<8x128xf32>
    tpu.vector_store %arg12[%476, %c0_169], %475 {strides = array<i32>} : memref<64x128xf32, #tpu.memory_space<vmem>>, vector<8x128xf32>,
    %c4_i32_170 = arith.constant 4 : i32
    %c8_i32_171 = arith.constant 8 : i32
    %478 = arith.muli %c4_i32_170, %c8_i32_171 : i32
    %479 = tpu.assume_multiple %478, 8 : i32
    %480 = arith.index_cast %479 : i32 to index
    %c0_172 = arith.constant 0 : index
    %481 = vector.load %arg13[%480, %c0_172] : memref<64x384xf32, #tpu.memory_space<vmem>>, vector<8x384xf32>
    %c1_173 = arith.constant 1 : index
    %c0_174 = arith.constant 0 : index
    %c0_175 = arith.constant 0 : index
    %482 = vector.load %arg5[%c1_173, %c0_174, %c0_175] : memref<2x128x384xf32, #tpu.memory_space<vmem>>, vector<1x128x384xf32>
    %483 = vector.shape_cast %482 : vector<1x128x384xf32> to vector<128x384xf32>
    %cst_176 = arith.constant dense<0.000000e+00> : vector<8x384xf32>
    %484 = tpu.matmul %475, %483, %cst_176 {dimension_numbers = #tpu.dot_dimension_numbers<[1], [0], [0], [1], [0, 0, 1, 1], [], []>} : vector<8x128xf32>, vector<128x384xf32>, vector<8x384xf32> -> vector<8x384xf32>
    %485 = vector.extract_strided_slice %481 {offsets = [0, 0], sizes = [8, 128], strides = [1, 1]} : vector<8x384xf32> to vector<8x128xf32>
    %486 = vector.extract_strided_slice %484 {offsets = [0, 0], sizes = [8, 128], strides = [1, 1]} : vector<8x384xf32> to vector<8x128xf32>
    %487 = arith.addf %485, %486 : vector<8x128xf32>
    %488 = arith.negf %487 : vector<8x128xf32>
    %489 = math.exp %488 : vector<8x128xf32>
    %cst_177 = arith.constant 1.000000e+00 : f32
    %490 = vector.broadcast %cst_177 : f32 to vector<8x128xf32>
    %491 = arith.addf %490, %489 : vector<8x128xf32>
    %492 = arith.divf %490, %491 : vector<8x128xf32>
    %493 = vector.extract_strided_slice %481 {offsets = [0, 128], sizes = [8, 128], strides = [1, 1]} : vector<8x384xf32> to vector<8x128xf32>
    %494 = vector.extract_strided_slice %484 {offsets = [0, 128], sizes = [8, 128], strides = [1, 1]} : vector<8x384xf32> to vector<8x128xf32>
    %495 = arith.addf %493, %494 : vector<8x128xf32>
    %496 = arith.negf %495 : vector<8x128xf32>
    %497 = math.exp %496 : vector<8x128xf32>
    %cst_178 = arith.constant 1.000000e+00 : f32
    %498 = vector.broadcast %cst_178 : f32 to vector<8x128xf32>
    %499 = arith.addf %498, %497 : vector<8x128xf32>
    %500 = arith.divf %498, %499 : vector<8x128xf32>
    %501 = vector.extract_strided_slice %481 {offsets = [0, 256], sizes = [8, 128], strides = [1, 1]} : vector<8x384xf32> to vector<8x128xf32>
    %502 = vector.extract_strided_slice %484 {offsets = [0, 256], sizes = [8, 128], strides = [1, 1]} : vector<8x384xf32> to vector<8x128xf32>
    %503 = arith.addf %502, %331 : vector<8x128xf32>
    %504 = arith.mulf %492, %503 : vector<8x128xf32>
    %505 = arith.addf %501, %504 : vector<8x128xf32>
    %506 = math.tanh %505 : vector<8x128xf32>
    %cst_179 = arith.constant 1.000000e+00 : f32
    %507 = vector.broadcast %cst_179 : f32 to vector<8x128xf32>
    %508 = arith.subf %507, %500 : vector<8x128xf32>
    %509 = arith.mulf %508, %506 : vector<8x128xf32>
    %510 = arith.mulf %500, %475 : vector<8x128xf32>
    %511 = arith.addf %509, %510 : vector<8x128xf32>
    %512 = arith.index_cast %479 : i32 to index
    %c0_180 = arith.constant 0 : index
    %513 = vector.load %arg12[%512, %c0_180] : memref<64x128xf32, #tpu.memory_space<vmem>>, vector<8x128xf32>
    tpu.vector_store %arg12[%512, %c0_180], %511 {strides = array<i32>} : memref<64x128xf32, #tpu.memory_space<vmem>>, vector<8x128xf32>,
    %c5_i32_181 = arith.constant 5 : i32
    %c8_i32_182 = arith.constant 8 : i32
    %514 = arith.muli %c5_i32_181, %c8_i32_182 : i32
    %515 = tpu.assume_multiple %514, 8 : i32
    %516 = arith.index_cast %515 : i32 to index
    %c0_183 = arith.constant 0 : index
    %517 = vector.load %arg13[%516, %c0_183] : memref<64x384xf32, #tpu.memory_space<vmem>>, vector<8x384xf32>
    %c1_184 = arith.constant 1 : index
    %c0_185 = arith.constant 0 : index
    %c0_186 = arith.constant 0 : index
    %518 = vector.load %arg5[%c1_184, %c0_185, %c0_186] : memref<2x128x384xf32, #tpu.memory_space<vmem>>, vector<1x128x384xf32>
    %519 = vector.shape_cast %518 : vector<1x128x384xf32> to vector<128x384xf32>
    %cst_187 = arith.constant dense<0.000000e+00> : vector<8x384xf32>
    %520 = tpu.matmul %511, %519, %cst_187 {dimension_numbers = #tpu.dot_dimension_numbers<[1], [0], [0], [1], [0, 0, 1, 1], [], []>} : vector<8x128xf32>, vector<128x384xf32>, vector<8x384xf32> -> vector<8x384xf32>
    %521 = vector.extract_strided_slice %517 {offsets = [0, 0], sizes = [8, 128], strides = [1, 1]} : vector<8x384xf32> to vector<8x128xf32>
    %522 = vector.extract_strided_slice %520 {offsets = [0, 0], sizes = [8, 128], strides = [1, 1]} : vector<8x384xf32> to vector<8x128xf32>
    %523 = arith.addf %521, %522 : vector<8x128xf32>
    %524 = arith.negf %523 : vector<8x128xf32>
    %525 = math.exp %524 : vector<8x128xf32>
    %cst_188 = arith.constant 1.000000e+00 : f32
    %526 = vector.broadcast %cst_188 : f32 to vector<8x128xf32>
    %527 = arith.addf %526, %525 : vector<8x128xf32>
    %528 = arith.divf %526, %527 : vector<8x128xf32>
    %529 = vector.extract_strided_slice %517 {offsets = [0, 128], sizes = [8, 128], strides = [1, 1]} : vector<8x384xf32> to vector<8x128xf32>
    %530 = vector.extract_strided_slice %520 {offsets = [0, 128], sizes = [8, 128], strides = [1, 1]} : vector<8x384xf32> to vector<8x128xf32>
    %531 = arith.addf %529, %530 : vector<8x128xf32>
    %532 = arith.negf %531 : vector<8x128xf32>
    %533 = math.exp %532 : vector<8x128xf32>
    %cst_189 = arith.constant 1.000000e+00 : f32
    %534 = vector.broadcast %cst_189 : f32 to vector<8x128xf32>
    %535 = arith.addf %534, %533 : vector<8x128xf32>
    %536 = arith.divf %534, %535 : vector<8x128xf32>
    %537 = vector.extract_strided_slice %517 {offsets = [0, 256], sizes = [8, 128], strides = [1, 1]} : vector<8x384xf32> to vector<8x128xf32>
    %538 = vector.extract_strided_slice %520 {offsets = [0, 256], sizes = [8, 128], strides = [1, 1]} : vector<8x384xf32> to vector<8x128xf32>
    %539 = arith.addf %538, %331 : vector<8x128xf32>
    %540 = arith.mulf %528, %539 : vector<8x128xf32>
    %541 = arith.addf %537, %540 : vector<8x128xf32>
    %542 = math.tanh %541 : vector<8x128xf32>
    %cst_190 = arith.constant 1.000000e+00 : f32
    %543 = vector.broadcast %cst_190 : f32 to vector<8x128xf32>
    %544 = arith.subf %543, %536 : vector<8x128xf32>
    %545 = arith.mulf %544, %542 : vector<8x128xf32>
    %546 = arith.mulf %536, %511 : vector<8x128xf32>
    %547 = arith.addf %545, %546 : vector<8x128xf32>
    %548 = arith.index_cast %515 : i32 to index
    %c0_191 = arith.constant 0 : index
    %549 = vector.load %arg12[%548, %c0_191] : memref<64x128xf32, #tpu.memory_space<vmem>>, vector<8x128xf32>
    tpu.vector_store %arg12[%548, %c0_191], %547 {strides = array<i32>} : memref<64x128xf32, #tpu.memory_space<vmem>>, vector<8x128xf32>,
    %c6_i32_192 = arith.constant 6 : i32
    %c8_i32_193 = arith.constant 8 : i32
    %550 = arith.muli %c6_i32_192, %c8_i32_193 : i32
    %551 = tpu.assume_multiple %550, 8 : i32
    %552 = arith.index_cast %551 : i32 to index
    %c0_194 = arith.constant 0 : index
    %553 = vector.load %arg13[%552, %c0_194] : memref<64x384xf32, #tpu.memory_space<vmem>>, vector<8x384xf32>
    %c1_195 = arith.constant 1 : index
    %c0_196 = arith.constant 0 : index
    %c0_197 = arith.constant 0 : index
    %554 = vector.load %arg5[%c1_195, %c0_196, %c0_197] : memref<2x128x384xf32, #tpu.memory_space<vmem>>, vector<1x128x384xf32>
    %555 = vector.shape_cast %554 : vector<1x128x384xf32> to vector<128x384xf32>
    %cst_198 = arith.constant dense<0.000000e+00> : vector<8x384xf32>
    %556 = tpu.matmul %547, %555, %cst_198 {dimension_numbers = #tpu.dot_dimension_numbers<[1], [0], [0], [1], [0, 0, 1, 1], [], []>} : vector<8x128xf32>, vector<128x384xf32>, vector<8x384xf32> -> vector<8x384xf32>
    %557 = vector.extract_strided_slice %553 {offsets = [0, 0], sizes = [8, 128], strides = [1, 1]} : vector<8x384xf32> to vector<8x128xf32>
    %558 = vector.extract_strided_slice %556 {offsets = [0, 0], sizes = [8, 128], strides = [1, 1]} : vector<8x384xf32> to vector<8x128xf32>
    %559 = arith.addf %557, %558 : vector<8x128xf32>
    %560 = arith.negf %559 : vector<8x128xf32>
    %561 = math.exp %560 : vector<8x128xf32>
    %cst_199 = arith.constant 1.000000e+00 : f32
    %562 = vector.broadcast %cst_199 : f32 to vector<8x128xf32>
    %563 = arith.addf %562, %561 : vector<8x128xf32>
    %564 = arith.divf %562, %563 : vector<8x128xf32>
    %565 = vector.extract_strided_slice %553 {offsets = [0, 128], sizes = [8, 128], strides = [1, 1]} : vector<8x384xf32> to vector<8x128xf32>
    %566 = vector.extract_strided_slice %556 {offsets = [0, 128], sizes = [8, 128], strides = [1, 1]} : vector<8x384xf32> to vector<8x128xf32>
    %567 = arith.addf %565, %566 : vector<8x128xf32>
    %568 = arith.negf %567 : vector<8x128xf32>
    %569 = math.exp %568 : vector<8x128xf32>
    %cst_200 = arith.constant 1.000000e+00 : f32
    %570 = vector.broadcast %cst_200 : f32 to vector<8x128xf32>
    %571 = arith.addf %570, %569 : vector<8x128xf32>
    %572 = arith.divf %570, %571 : vector<8x128xf32>
    %573 = vector.extract_strided_slice %553 {offsets = [0, 256], sizes = [8, 128], strides = [1, 1]} : vector<8x384xf32> to vector<8x128xf32>
    %574 = vector.extract_strided_slice %556 {offsets = [0, 256], sizes = [8, 128], strides = [1, 1]} : vector<8x384xf32> to vector<8x128xf32>
    %575 = arith.addf %574, %331 : vector<8x128xf32>
    %576 = arith.mulf %564, %575 : vector<8x128xf32>
    %577 = arith.addf %573, %576 : vector<8x128xf32>
    %578 = math.tanh %577 : vector<8x128xf32>
    %cst_201 = arith.constant 1.000000e+00 : f32
    %579 = vector.broadcast %cst_201 : f32 to vector<8x128xf32>
    %580 = arith.subf %579, %572 : vector<8x128xf32>
    %581 = arith.mulf %580, %578 : vector<8x128xf32>
    %582 = arith.mulf %572, %547 : vector<8x128xf32>
    %583 = arith.addf %581, %582 : vector<8x128xf32>
    %584 = arith.index_cast %551 : i32 to index
    %c0_202 = arith.constant 0 : index
    %585 = vector.load %arg12[%584, %c0_202] : memref<64x128xf32, #tpu.memory_space<vmem>>, vector<8x128xf32>
    tpu.vector_store %arg12[%584, %c0_202], %583 {strides = array<i32>} : memref<64x128xf32, #tpu.memory_space<vmem>>, vector<8x128xf32>,
    %c7_i32_203 = arith.constant 7 : i32
    %c8_i32_204 = arith.constant 8 : i32
    %586 = arith.muli %c7_i32_203, %c8_i32_204 : i32
    %587 = tpu.assume_multiple %586, 8 : i32
    %588 = arith.index_cast %587 : i32 to index
    %c0_205 = arith.constant 0 : index
    %589 = vector.load %arg13[%588, %c0_205] : memref<64x384xf32, #tpu.memory_space<vmem>>, vector<8x384xf32>
    %c1_206 = arith.constant 1 : index
    %c0_207 = arith.constant 0 : index
    %c0_208 = arith.constant 0 : index
    %590 = vector.load %arg5[%c1_206, %c0_207, %c0_208] : memref<2x128x384xf32, #tpu.memory_space<vmem>>, vector<1x128x384xf32>
    %591 = vector.shape_cast %590 : vector<1x128x384xf32> to vector<128x384xf32>
    %cst_209 = arith.constant dense<0.000000e+00> : vector<8x384xf32>
    %592 = tpu.matmul %583, %591, %cst_209 {dimension_numbers = #tpu.dot_dimension_numbers<[1], [0], [0], [1], [0, 0, 1, 1], [], []>} : vector<8x128xf32>, vector<128x384xf32>, vector<8x384xf32> -> vector<8x384xf32>
    %593 = vector.extract_strided_slice %589 {offsets = [0, 0], sizes = [8, 128], strides = [1, 1]} : vector<8x384xf32> to vector<8x128xf32>
    %594 = vector.extract_strided_slice %592 {offsets = [0, 0], sizes = [8, 128], strides = [1, 1]} : vector<8x384xf32> to vector<8x128xf32>
    %595 = arith.addf %593, %594 : vector<8x128xf32>
    %596 = arith.negf %595 : vector<8x128xf32>
    %597 = math.exp %596 : vector<8x128xf32>
    %cst_210 = arith.constant 1.000000e+00 : f32
    %598 = vector.broadcast %cst_210 : f32 to vector<8x128xf32>
    %599 = arith.addf %598, %597 : vector<8x128xf32>
    %600 = arith.divf %598, %599 : vector<8x128xf32>
    %601 = vector.extract_strided_slice %589 {offsets = [0, 128], sizes = [8, 128], strides = [1, 1]} : vector<8x384xf32> to vector<8x128xf32>
    %602 = vector.extract_strided_slice %592 {offsets = [0, 128], sizes = [8, 128], strides = [1, 1]} : vector<8x384xf32> to vector<8x128xf32>
    %603 = arith.addf %601, %602 : vector<8x128xf32>
    %604 = arith.negf %603 : vector<8x128xf32>
    %605 = math.exp %604 : vector<8x128xf32>
    %cst_211 = arith.constant 1.000000e+00 : f32
    %606 = vector.broadcast %cst_211 : f32 to vector<8x128xf32>
    %607 = arith.addf %606, %605 : vector<8x128xf32>
    %608 = arith.divf %606, %607 : vector<8x128xf32>
    %609 = vector.extract_strided_slice %589 {offsets = [0, 256], sizes = [8, 128], strides = [1, 1]} : vector<8x384xf32> to vector<8x128xf32>
    %610 = vector.extract_strided_slice %592 {offsets = [0, 256], sizes = [8, 128], strides = [1, 1]} : vector<8x384xf32> to vector<8x128xf32>
    %611 = arith.addf %610, %331 : vector<8x128xf32>
    %612 = arith.mulf %600, %611 : vector<8x128xf32>
    %613 = arith.addf %609, %612 : vector<8x128xf32>
    %614 = math.tanh %613 : vector<8x128xf32>
    %cst_212 = arith.constant 1.000000e+00 : f32
    %615 = vector.broadcast %cst_212 : f32 to vector<8x128xf32>
    %616 = arith.subf %615, %608 : vector<8x128xf32>
    %617 = arith.mulf %616, %614 : vector<8x128xf32>
    %618 = arith.mulf %608, %583 : vector<8x128xf32>
    %619 = arith.addf %617, %618 : vector<8x128xf32>
    %620 = arith.index_cast %587 : i32 to index
    %c0_213 = arith.constant 0 : index
    %621 = vector.load %arg12[%620, %c0_213] : memref<64x128xf32, #tpu.memory_space<vmem>>, vector<8x128xf32>
    tpu.vector_store %arg12[%620, %c0_213], %619 {strides = array<i32>} : memref<64x128xf32, #tpu.memory_space<vmem>>, vector<8x128xf32>,
    %c8_i32_214 = arith.constant 8 : i32
    %c1_215 = arith.constant 1 : index
    %c0_216 = arith.constant 0 : index
    %c0_217 = arith.constant 0 : index
    %622 = vector.load %arg11[%c1_215, %c0_216, %c0_217] : memref<2x8x128xf32, #tpu.memory_space<vmem>>, vector<1x8x128xf32>
    %623 = vector.shape_cast %622 : vector<1x8x128xf32> to vector<8x128xf32>
    %624 = vector.shape_cast %619 : vector<8x128xf32> to vector<1x8x128xf32>
    tpu.vector_store %arg11[%c1_215, %c0_216, %c0_217], %624 {strides = array<i32>} : memref<2x8x128xf32, #tpu.memory_space<vmem>>, vector<1x8x128xf32>,
    %c0_218 = arith.constant 0 : index
    %c0_219 = arith.constant 0 : index
    %625 = vector.load %arg12[%c0_218, %c0_219] : memref<64x128xf32, #tpu.memory_space<vmem>>, vector<64x128xf32>
    %c0_220 = arith.constant 0 : index
    %c0_221 = arith.constant 0 : index
    %626 = vector.load %arg8[%c0_220, %c0_221] : memref<128x128xf32, #tpu.memory_space<vmem>>, vector<128x128xf32>
    %cst_222 = arith.constant dense<0.000000e+00> : vector<64x128xf32>
    %627 = tpu.matmul %625, %626, %cst_222 {dimension_numbers = #tpu.dot_dimension_numbers<[1], [0], [0], [1], [0, 0, 1, 1], [], []>} : vector<64x128xf32>, vector<128x128xf32>, vector<64x128xf32> -> vector<64x128xf32>
    %c0_223 = arith.constant 0 : index
    %c0_224 = arith.constant 0 : index
    %628 = vector.load %arg9[%c0_223, %c0_224] : memref<1x128xf32, #tpu.memory_space<vmem>>, vector<1x128xf32>
    %629 = vector.broadcast %628 : vector<1x128xf32> to vector<64x128xf32>
    %630 = arith.addf %627, %629 : vector<64x128xf32>
    %631 = arith.negf %630 : vector<64x128xf32>
    %632 = math.exp %631 : vector<64x128xf32>
    %cst_225 = arith.constant 1.000000e+00 : f32
    %633 = vector.broadcast %cst_225 : f32 to vector<64x128xf32>
    %634 = arith.addf %633, %632 : vector<64x128xf32>
    %635 = arith.divf %633, %634 : vector<64x128xf32>
    %c0_226 = arith.constant 0 : index
    %c0_227 = arith.constant 0 : index
    %636 = vector.load %arg10[%c0_226, %c0_227] : memref<64x128xf32, #tpu.memory_space<vmem>>, vector<64x128xf32>
    %637 = arith.addf %635, %636 : vector<64x128xf32>
    %c0_228 = arith.constant 0 : index
    %c0_229 = arith.constant 0 : index
    %638 = vector.load %arg10[%c0_228, %c0_229] : memref<64x128xf32, #tpu.memory_space<vmem>>, vector<64x128xf32>
    tpu.vector_store %arg10[%c0_228, %c0_229], %637 {strides = array<i32>} : memref<64x128xf32, #tpu.memory_space<vmem>>, vector<64x128xf32>,
    return
  }
}

</mosaic_0001>

<llo_original>
// kernel: tpu_custom_call.1
$region0: #{tpu_custom_call.1}
  #allocation0 [shape = 'u32[]', space=smem, size = 0x4, offset = 0x4, fixed_abs, tag = 'smem constant byte address 0x4 - core index']
  #allocation1 [shape = 'u32[144,128]{1,0:T(1,128)}', space=vmem, size = 0x12000, scoped, tag = 'internal scratch']
  #allocation2 [shape = 'f32[64,128]{1,0:T(8,128)}', space=vmem, size = 0x8000, scoped, tag = 'scratch operand']
  #allocation3 [shape = 'f32[64,384]{1,0:T(8,128)}', space=vmem, size = 0x18000, scoped, tag = 'scratch operand']
  %s0 = inlined_call_operand.vmem [shape: f32[64,4], index: 0, kind: input, shape index: {}]
  %s1 = inlined_call_operand.vmem [shape: f32[2,8,128], index: 1, kind: input, shape index: {}]
  %s2 = inlined_call_operand.vmem [shape: f32[4,128], index: 2, kind: input, shape index: {}]
  %s3 = inlined_call_operand.vmem [shape: f32[1,128], index: 3, kind: input, shape index: {}]
  %s4 = inlined_call_operand.hbm [shape: f32[2,128,384], index: 4, kind: input, shape index: {}]
  %s5 = inlined_call_operand.hbm [shape: f32[2,128,384], index: 5, kind: input, shape index: {}]
  %s6 = inlined_call_operand.vmem [shape: f32[2,1,384], index: 6, kind: input, shape index: {}]
  %s7 = inlined_call_operand.vmem [shape: f32[2,1,128], index: 7, kind: input, shape index: {}]
  %s8 = inlined_call_operand.hbm [shape: f32[128,128], index: 8, kind: input, shape index: {}]
  %s9 = inlined_call_operand.vmem [shape: f32[1,128], index: 9, kind: input, shape index: {}]
  %s10 = inlined_call_operand.hbm [shape: f32[64,128], index: 10, kind: output, shape index: {0}]
  %s11 = inlined_call_operand.hbm [shape: f32[2,8,128], index: 11, kind: output, shape index: {1}]
  %12 = xla_tuple %s10, %s11
  %s13 = sld [smem:[#allocation0]]
  $region70: #{tpu_custom_call.1} parent=0
    _
  %s15 = ssub.s32 1, %s13
  %s16 = scalar_select 0, %s15, %s13
  $region1: #{tpu_custom_call.1} parent=0
    #allocation4 [shape = 'u8[393216]{0}', space=vmem, size = 0x60000, scoped, tag = 'input window, operand 4, single buffered']
    #allocation5 [shape = 's32[1]{0}', space=sflag, size = 0x4, scoped, tag = 'scoped memory for tpu_custom_call.1']
    #allocation6 [shape = 's32[1]{0}', space=sflag, size = 0x4, scoped, tag = 'scoped memory for tpu_custom_call.1']
    #allocation7 [shape = 'u8[393216]{0}', space=vmem, size = 0x60000, scoped, tag = 'input window, operand 5, single buffered']
    #allocation8 [shape = 's32[1]{0}', space=sflag, size = 0x4, scoped, tag = 'scoped memory for tpu_custom_call.1']
    #allocation9 [shape = 'u8[65536]{0}', space=vmem, size = 0x10000, scoped, tag = 'input window, operand 8, single buffered']
    #allocation10 [shape = 'u8[32768]{0}', space=vmem, size = 0x8000, scoped, tag = 'output window, operand 0, single buffered']
    #allocation11 [shape = 'u8[8192]{0}', space=vmem, size = 0x2000, scoped, tag = 'output window, operand 1, single buffered']
    #allocation12 [shape = 's32[1]{0}', space=sflag, size = 0x4, scoped, tag = 'scoped memory for tpu_custom_call.1']
    %17 = vsyncpa [#allocation5], 0
    %18 = vsyncpa [#allocation8], 0
    %19 = vsyncpa [#allocation6], 0
    %20 = vsyncpa [#allocation12], 0
    // Predicated region
    $region2: #{tpu_custom_call.1} parent=1 // pred_check
      _
    $region3: #{tpu_custom_call.1} parent=1 // pred_check_branch
      %22 = sbr.rel (0) target = $region5
    $region4: #{tpu_custom_call.1} parent=1 // pred_region
      _
    $region5: #{tpu_custom_call.1} parent=1 // pred_fallthru
      _
    // Predicated region
    $region6: #{tpu_custom_call.1} parent=1 // pred_check
      _
    $region7: #{tpu_custom_call.1} parent=1 // pred_check_branch
      %24 = sbr.rel (0) target = $region9
    $region8: #{tpu_custom_call.1} parent=1 // pred_region
      _
    $region9: #{tpu_custom_call.1} parent=1 // pred_fallthru
      _
    // Predicated region
    $region10: #{tpu_custom_call.1} parent=1 // pred_check
      _
    $region11: #{tpu_custom_call.1} parent=1 // pred_check_branch
      %26 = sbr.rel (0) target = $region13
    $region12: #{tpu_custom_call.1} parent=1 // pred_region
      _
    $region13: #{tpu_custom_call.1} parent=1 // pred_fallthru
      _
    // Predicated region
    $region14: #{tpu_custom_call.1} parent=1 // pred_check
      _
    $region15: #{tpu_custom_call.1} parent=1 // pred_check_branch
      %28 = sbr.rel (0) target = $region17
    $region16: #{tpu_custom_call.1} parent=1 // pred_region
      _
    $region17: #{tpu_custom_call.1} parent=1 // pred_fallthru
      _
    // Predicated region
    $region18: #{tpu_custom_call.1} parent=1 // pred_check
      _
    $region19: #{tpu_custom_call.1} parent=1 // pred_check_branch
      %30 = sbr.rel (0) target = $region21
    $region20: #{tpu_custom_call.1} parent=1 // pred_region
      %s32 = ssub.s32 12288, 12288
      %33 = vsyncadd [#allocation5], %s32
      %s34 = sshll.u32 [#allocation4], 4
      %s35 = int_to_ptr.vmem [resolvable:$true] %s34
      %40 = dma.hbm_to_vmem [thread:$0]  %s4, 12288, %s35, [#allocation5], 384, 384, 24
    $region21: #{tpu_custom_call.1} parent=1 // pred_fallthru
      _
    // Predicated region
    $region22: #{tpu_custom_call.1} parent=1 // pred_check
      _
    $region23: #{tpu_custom_call.1} parent=1 // pred_check_branch
      %42 = sbr.rel (0) target = $region25
    $region24: #{tpu_custom_call.1} parent=1 // pred_region
      %s44 = ssub.s32 12288, 12288
      %45 = vsyncadd [#allocation8], %s44
      %s46 = sshll.u32 [#allocation7], 4
      %s47 = int_to_ptr.vmem [resolvable:$true] %s46
      %52 = dma.hbm_to_vmem [thread:$0]  %s5, 12288, %s47, [#allocation8], 384, 384, 24
    $region25: #{tpu_custom_call.1} parent=1 // pred_fallthru
      _
    // Predicated region
    $region26: #{tpu_custom_call.1} parent=1 // pred_check
      _
    $region27: #{tpu_custom_call.1} parent=1 // pred_check_branch
      %54 = sbr.rel (0) target = $region29
    $region28: #{tpu_custom_call.1} parent=1 // pred_region
      _
    $region29: #{tpu_custom_call.1} parent=1 // pred_fallthru
      _
    // Predicated region
    $region30: #{tpu_custom_call.1} parent=1 // pred_check
      _
    $region31: #{tpu_custom_call.1} parent=1 // pred_check_branch
      %56 = sbr.rel (0) target = $region33
    $region32: #{tpu_custom_call.1} parent=1 // pred_region
      _
    $region33: #{tpu_custom_call.1} parent=1 // pred_fallthru
      _
    // Predicated region
    $region34: #{tpu_custom_call.1} parent=1 // pred_check
      _
    $region35: #{tpu_custom_call.1} parent=1 // pred_check_branch
      %58 = sbr.rel (0) target = $region37
    $region36: #{tpu_custom_call.1} parent=1 // pred_region
      %s60 = ssub.s32 2048, 2048
      %61 = vsyncadd [#allocation8], %s60
      %s62 = sshll.u32 [#allocation9], 4
      %s63 = int_to_ptr.vmem [resolvable:$true] %s62
      %68 = dma.hbm_to_vmem [thread:$0]  %s8, 2048, %s63, [#allocation8], 128, 128, 8
    $region37: #{tpu_custom_call.1} parent=1 // pred_fallthru
      _
    // Predicated region
    $region38: #{tpu_custom_call.1} parent=1 // pred_check
      _
    $region39: #{tpu_custom_call.1} parent=1 // pred_check_branch
      %70 = sbr.rel (0) target = $region41
    $region40: #{tpu_custom_call.1} parent=1 // pred_region
      _
    $region41: #{tpu_custom_call.1} parent=1 // pred_fallthru
      _
    // Predicated region
    $region42: #{tpu_custom_call.1} parent=1 // pred_check
      _
    $region43: #{tpu_custom_call.1} parent=1 // pred_check_branch
      %72 = sbr.rel (0) target = $region45
    $region44: #{tpu_custom_call.1} parent=1 // pred_region
      %73 = dma.done [#allocation5], 12288
    $region45: #{tpu_custom_call.1} parent=1 // pred_fallthru
      _
    // Predicated region
    $region46: #{tpu_custom_call.1} parent=1 // pred_check
      _
    $region47: #{tpu_custom_call.1} parent=1 // pred_check_branch
      %75 = sbr.rel (0) target = $region49
    $region48: #{tpu_custom_call.1} parent=1 // pred_region
      %76 = dma.done [#allocation8], 12288
    $region49: #{tpu_custom_call.1} parent=1 // pred_fallthru
      _
    // Predicated region
    $region50: #{tpu_custom_call.1} parent=1 // pred_check
      _
    $region51: #{tpu_custom_call.1} parent=1 // pred_check_branch
      %78 = sbr.rel (0) target = $region53
    $region52: #{tpu_custom_call.1} parent=1 // pred_region
      %79 = dma.done [#allocation8], 2048
    $region53: #{tpu_custom_call.1} parent=1 // pred_fallthru
      _
    %v80 = vld [vmem:[%s0] sm:$0xff]
    %v81 = vld [vmem:[%s0 + $0x8] sm:$0xff]
    %v82 = vld [vmem:[%s0 + $0x10] sm:$0xff]
    %v83 = vld [vmem:[%s0 + $0x18] sm:$0xff]
    %v84 = vld [vmem:[%s0 + $0x20] sm:$0xff]
    %v85 = vld [vmem:[%s0 + $0x28] sm:$0xff]
    %v86 = vld [vmem:[%s0 + $0x30] sm:$0xff]
    %v87 = vld [vmem:[%s0 + $0x38] sm:$0xff]
    %v88 = vld [vmem:[%s2] sm:$0xf]
    %v89 = vld [vmem:[%s3] sm:$0x1]
    %v91 = vlaneseq
    %v92 = vshrl.u32 %v91, 7
    %v93 = vsub.s32 0, %v92
    %v94 = vrot.slane %v89, %v93
    %vm96 = vcmask 31744
    %v98 = vsel %vm96, %v80, 0
    %v101 = vsel %vm96, %v81, 0
    %v104 = vsel %vm96, %v82, 0
    %v107 = vsel %vm96, %v83, 0
    %v110 = vsel %vm96, %v84, 0
    %v113 = vsel %vm96, %v85, 0
    %v116 = vsel %vm96, %v86, 0
    %v119 = vsel %vm96, %v87, 0
    %vm121 = vcmask 1043456
    %v123 = vsel %vm121, %v88, 0
    %125 = vmatprep.subr.mxu0 0.0
    %126 = vmatpush1.msra.mxu0 %v123
    %127 = vmatprep.subr.mxu0 0.0
    %128 = vmatpush1.msra.mxu0 0.0
    %129 = vmatprep.subr.mxu0 0.0
    %130 = vmatpush1.msra.mxu0 0.0
    %131 = vmatprep.subr.mxu0 0.0
    %132 = vmatpush1.msra.mxu0 0.0
    %133 = vmatprep.subr.mxu0 0.0
    %134 = vmatpush1.msra.mxu0 0.0
    %135 = vmatprep.subr.mxu0 0.0
    %136 = vmatpush1.msra.mxu0 0.0
    %137 = vmatprep.subr.mxu0 0.0
    %138 = vmatpush1.msra.mxu0 0.0
    %139 = vmatprep.subr.mxu0 0.0
    %140 = vmatpush1.msra.mxu0 0.0
    %141 = vmatprep.subr.mxu0 0.0
    %142 = vmatpush1.msra.mxu0 0.0
    %143 = vmatprep.subr.mxu0 0.0
    %144 = vmatpush1.msra.mxu0 0.0
    %145 = vmatprep.subr.mxu0 0.0
    %146 = vmatpush1.msra.mxu0 0.0
    %147 = vmatprep.subr.mxu0 0.0
    %148 = vmatpush1.msra.mxu0 0.0
    %149 = vmatprep.subr.mxu0 0.0
    %150 = vmatpush1.msra.mxu0 0.0
    %151 = vmatprep.subr.mxu0 0.0
    %152 = vmatpush1.msra.mxu0 0.0
    %153 = vmatprep.subr.mxu0 0.0
    %154 = vmatpush1.msra.mxu0 0.0
    %155 = vmatprep.subr.mxu0 0.0
    %156 = vmatpush1.msra.mxu0 0.0
    %157 = vmatprep.subr.mxu0 0.0
    %158 = vmatpush1.msra.mxu0 0.0
    %159 = vmatprep.subr.mxu0 0.0
    %160 = vmatpush1.msra.mxu0 0.0
    %161 = vmatprep.subr.mxu0 0.0
    %162 = vmatpush1.msra.mxu0 0.0
    %163 = vmatprep.subr.mxu0 0.0
    %164 = vmatpush1.msra.mxu0 0.0
    %165 = vmatprep.subr.mxu0 0.0
    %166 = vmatpush1.msra.mxu0 0.0
    %167 = vmatprep.subr.mxu0 0.0
    %168 = vmatpush1.msra.mxu0 0.0
    %169 = vmatprep.subr.mxu0 0.0
    %170 = vmatpush1.msra.mxu0 0.0
    %171 = vmatprep.subr.mxu0 0.0
    %172 = vmatpush1.msra.mxu0 0.0
    %173 = vmatprep.subr.mxu0 0.0
    %174 = vmatpush1.msra.mxu0 0.0
    %175 = vmatprep.subr.mxu0 0.0
    %176 = vmatpush1.msra.mxu0 0.0
    %177 = vmatprep.subr.mxu0 0.0
    %178 = vmatpush1.msra.mxu0 0.0
    %179 = vmatprep.subr.mxu0 0.0
    %180 = vmatpush1.msra.mxu0 0.0
    %181 = vmatprep.subr.mxu0 0.0
    %182 = vmatpush1.msra.mxu0 0.0
    %183 = vmatprep.subr.mxu0 0.0
    %184 = vmatpush1.msra.mxu0 0.0
    %185 = vmatprep.subr.mxu0 0.0
    %186 = vmatpush1.msra.mxu0 0.0
    %187 = vmatprep.subr.mxu0 0.0
    %188 = vmatpush1.msra.mxu0 0.0
    %189 = vmatprep.mubr.f32.mxu0 0.0
    %190 = vmatmul.mubr.f32.gmra.mrb[0].mxu0 %v98
    %v191 = vpop.f32.mrb[0].mxu0
    %v192 = vadd.f32 %v94, %v191
    %v193 = vpop.f32.mrb[0].mxu0
    %194 = vmatprep.mubr.f32.mxu0 0.0
    %195 = vmatmul.mubr.f32.gmra.mrb[0].mxu0 %v101
    %v196 = vpop.f32.mrb[0].mxu0
    %v197 = vadd.f32 %v94, %v196
    %v198 = vpop.f32.mrb[0].mxu0
    %199 = vmatprep.mubr.f32.mxu0 0.0
    %200 = vmatmul.mubr.f32.gmra.mrb[0].mxu0 %v104
    %v201 = vpop.f32.mrb[0].mxu0
    %v202 = vadd.f32 %v94, %v201
    %v203 = vpop.f32.mrb[0].mxu0
    %204 = vmatprep.mubr.f32.mxu0 0.0
    %205 = vmatmul.mubr.f32.gmra.mrb[0].mxu0 %v107
    %v206 = vpop.f32.mrb[0].mxu0
    %v207 = vadd.f32 %v94, %v206
    %v208 = vpop.f32.mrb[0].mxu0
    %209 = vmatprep.mubr.f32.mxu0 0.0
    %210 = vmatmul.mubr.f32.gmra.mrb[0].mxu0 %v110
    %v211 = vpop.f32.mrb[0].mxu0
    %v212 = vadd.f32 %v94, %v211
    %v213 = vpop.f32.mrb[0].mxu0
    %214 = vmatprep.mubr.f32.mxu0 0.0
    %215 = vmatmul.mubr.f32.gmra.mrb[0].mxu0 %v113
    %v216 = vpop.f32.mrb[0].mxu0
    %v217 = vadd.f32 %v94, %v216
    %v218 = vpop.f32.mrb[0].mxu0
    %219 = vmatprep.mubr.f32.mxu0 0.0
    %220 = vmatmul.mubr.f32.gmra.mrb[0].mxu0 %v116
    %v221 = vpop.f32.mrb[0].mxu0
    %v222 = vadd.f32 %v94, %v221
    %v223 = vpop.f32.mrb[0].mxu0
    %224 = vmatprep.mubr.f32.mxu0 0.0
    %225 = vmatmul.mubr.f32.gmra.mrb[0].mxu0 %v119
    %v226 = vpop.f32.mrb[0].mxu0
    %v227 = vadd.f32 %v94, %v226
    %v228 = vpop.f32.mrb[0].mxu0
    %229 = vdwg.mxu0
    %v230 = vxor.u32 %v192, 2147483648
    %v231 = vxor.u32 %v197, 2147483648
    %v232 = vxor.u32 %v202, 2147483648
    %v233 = vxor.u32 %v207, 2147483648
    %v234 = vxor.u32 %v212, 2147483648
    %v235 = vxor.u32 %v217, 2147483648
    %v236 = vxor.u32 %v222, 2147483648
    %v237 = vxor.u32 %v227, 2147483648
    %v238 = vmul.f32 %v230, 1.442695
    %v239 = vpow.pop %v238
    %v240 = vmul.f32 %v231, 1.442695
    %v241 = vpow.pop %v240
    %v242 = vmul.f32 %v232, 1.442695
    %v243 = vpow.pop %v242
    %v244 = vmul.f32 %v233, 1.442695
    %v245 = vpow.pop %v244
    %v246 = vmul.f32 %v234, 1.442695
    %v247 = vpow.pop %v246
    %v248 = vmul.f32 %v235, 1.442695
    %v249 = vpow.pop %v248
    %v250 = vmul.f32 %v236, 1.442695
    %v251 = vpow.pop %v250
    %v252 = vmul.f32 %v237, 1.442695
    %v253 = vpow.pop %v252
    %v254 = vadd.f32 %v239, 1.0
    %v255 = vadd.f32 %v241, 1.0
    %v256 = vadd.f32 %v243, 1.0
    %v257 = vadd.f32 %v245, 1.0
    %v258 = vadd.f32 %v247, 1.0
    %v259 = vadd.f32 %v249, 1.0
    %v260 = vadd.f32 %v251, 1.0
    %v261 = vadd.f32 %v253, 1.0
    %v262 = vrcp.pop %v254
    %v263 = vmul.f32 1.0, %v262
    %v264 = vrcp.pop %v255
    %v265 = vmul.f32 1.0, %v264
    %v266 = vrcp.pop %v256
    %v267 = vmul.f32 1.0, %v266
    %v268 = vrcp.pop %v257
    %v269 = vmul.f32 1.0, %v268
    %v270 = vrcp.pop %v258
    %v271 = vmul.f32 1.0, %v270
    %v272 = vrcp.pop %v259
    %v273 = vmul.f32 1.0, %v272
    %v274 = vrcp.pop %v260
    %v275 = vmul.f32 1.0, %v274
    %v276 = vrcp.pop %v261
    %v277 = vmul.f32 1.0, %v276
    %278 = vst [vmem:[#allocation10] sm:$0xff] %v263
    %279 = vst [vmem:[#allocation10 + $0x8] sm:$0xff] %v265
    %280 = vst [vmem:[#allocation10 + $0x10] sm:$0xff] %v267
    %281 = vst [vmem:[#allocation10 + $0x18] sm:$0xff] %v269
    %282 = vst [vmem:[#allocation10 + $0x20] sm:$0xff] %v271
    %283 = vst [vmem:[#allocation10 + $0x28] sm:$0xff] %v273
    %284 = vst [vmem:[#allocation10 + $0x30] sm:$0xff] %v275
    %285 = vst [vmem:[#allocation10 + $0x38] sm:$0xff] %v277
    %286 = vst [vmem:[#allocation2] sm:$0xff] %v263
    %287 = vst [vmem:[#allocation2 + $0x8] sm:$0xff] %v265
    %288 = vst [vmem:[#allocation2 + $0x10] sm:$0xff] %v267
    %289 = vst [vmem:[#allocation2 + $0x18] sm:$0xff] %v269
    %290 = vst [vmem:[#allocation2 + $0x20] sm:$0xff] %v271
    %291 = vst [vmem:[#allocation2 + $0x28] sm:$0xff] %v273
    %292 = vst [vmem:[#allocation2 + $0x30] sm:$0xff] %v275
    %293 = vst [vmem:[#allocation2 + $0x38] sm:$0xff] %v277
    %v294 = vld [vmem:[#allocation2] sm:$0xff]
    %v295 = vld [vmem:[#allocation2 + $0x8] sm:$0xff]
    %v296 = vld [vmem:[#allocation2 + $0x10] sm:$0xff]
    %v297 = vld [vmem:[#allocation2 + $0x18] sm:$0xff]
    %v298 = vld [vmem:[#allocation2 + $0x20] sm:$0xff]
    %v299 = vld [vmem:[#allocation2 + $0x28] sm:$0xff]
    %v300 = vld [vmem:[#allocation2 + $0x30] sm:$0xff]
    %v301 = vld [vmem:[#allocation2 + $0x38] sm:$0xff]
    %v302 = vld [vmem:[#allocation4] sm:$0xff]
    %v303 = vld [vmem:[#allocation4 + $0x8] sm:$0xff]
    %v304 = vld [vmem:[#allocation4 + $0x10] sm:$0xff]
    %v305 = vld [vmem:[#allocation4 + $0x18] sm:$0xff]
    %v306 = vld [vmem:[#allocation4 + $0x20] sm:$0xff]
    %v307 = vld [vmem:[#allocation4 + $0x28] sm:$0xff]
    %v308 = vld [vmem:[#allocation4 + $0x30] sm:$0xff]
    %v309 = vld [vmem:[#allocation4 + $0x38] sm:$0xff]
    %v310 = vld [vmem:[#allocation4 + $0x40] sm:$0xff]
    %v311 = vld [vmem:[#allocation4 + $0x48] sm:$0xff]
    %v312 = vld [vmem:[#allocation4 + $0x50] sm:$0xff]
    %v313 = vld [vmem:[#allocation4 + $0x58] sm:$0xff]
    %v314 = vld [vmem:[#allocation4 + $0x60] sm:$0xff]
    %v315 = vld [vmem:[#allocation4 + $0x68] sm:$0xff]
    %v316 = vld [vmem:[#allocation4 + $0x70] sm:$0xff]
    %v317 = vld [vmem:[#allocation4 + $0x78] sm:$0xff]
    %v318 = vld [vmem:[#allocation4 + $0x80] sm:$0xff]
    %v319 = vld [vmem:[#allocation4 + $0x88] sm:$0xff]
    %v320 = vld [vmem:[#allocation4 + $0x90] sm:$0xff]
    %v321 = vld [vmem:[#allocation4 + $0x98] sm:$0xff]
    %v322 = vld [vmem:[#allocation4 + $0xa0] sm:$0xff]
    %v323 = vld [vmem:[#allocation4 + $0xa8] sm:$0xff]
    %v324 = vld [vmem:[#allocation4 + $0xb0] sm:$0xff]
    %v325 = vld [vmem:[#allocation4 + $0xb8] sm:$0xff]
    %v326 = vld [vmem:[#allocation4 + $0xc0] sm:$0xff]
    %v327 = vld [vmem:[#allocation4 + $0xc8] sm:$0xff]
    %v328 = vld [vmem:[#allocation4 + $0xd0] sm:$0xff]
    %v329 = vld [vmem:[#allocation4 + $0xd8] sm:$0xff]
    %v330 = vld [vmem:[#allocation4 + $0xe0] sm:$0xff]
    %v331 = vld [vmem:[#allocation4 + $0xe8] sm:$0xff]
    %v332 = vld [vmem:[#allocation4 + $0xf0] sm:$0xff]
    %v333 = vld [vmem:[#allocation4 + $0xf8] sm:$0xff]
    %v334 = vld [vmem:[#allocation4 + $0x100] sm:$0xff]
    %v335 = vld [vmem:[#allocation4 + $0x108] sm:$0xff]
    %v336 = vld [vmem:[#allocation4 + $0x110] sm:$0xff]
    %v337 = vld [vmem:[#allocation4 + $0x118] sm:$0xff]
    %v338 = vld [vmem:[#allocation4 + $0x120] sm:$0xff]
    %v339 = vld [vmem:[#allocation4 + $0x128] sm:$0xff]
    %v340 = vld [vmem:[#allocation4 + $0x130] sm:$0xff]
    %v341 = vld [vmem:[#allocation4 + $0x138] sm:$0xff]
    %v342 = vld [vmem:[#allocation4 + $0x140] sm:$0xff]
    %v343 = vld [vmem:[#allocation4 + $0x148] sm:$0xff]
    %v344 = vld [vmem:[#allocation4 + $0x150] sm:$0xff]
    %v345 = vld [vmem:[#allocation4 + $0x158] sm:$0xff]
    %v346 = vld [vmem:[#allocation4 + $0x160] sm:$0xff]
    %v347 = vld [vmem:[#allocation4 + $0x168] sm:$0xff]
    %v348 = vld [vmem:[#allocation4 + $0x170] sm:$0xff]
    %v349 = vld [vmem:[#allocation4 + $0x178] sm:$0xff]
    %v350 = vld [vmem:[%s6] sm:$0x7]
    %v352 = vlaneseq
    %v353 = vshrl.u32 %v352, 7
    %v354 = vsub.s32 0, %v353
    %v355 = vrot.slane %v350, %v354
    %v356 = vlaneseq
    %v357 = vshrl.u32 %v356, 7
    %v358 = vsub.s32 1, %v357
    %v359 = vrot.slane %v350, %v358
    %v360 = vlaneseq
    %v361 = vshrl.u32 %v360, 7
    %v362 = vsub.s32 2, %v361
    %v363 = vrot.slane %v350, %v362
    %367 = vmatprep.subr.mxu0 %v303
    %368 = vmatpush1.msra.mxu0 %v302
    %369 = vmatprep.subr.mxu0 %v306
    %370 = vmatpush1.msra.mxu0 %v305
    %371 = vmatprep.subr.mxu0 %v309
    %372 = vmatpush1.msra.mxu0 %v308
    %373 = vmatprep.subr.mxu0 %v312
    %374 = vmatpush1.msra.mxu0 %v311
    %375 = vmatprep.subr.mxu0 %v315
    %376 = vmatpush1.msra.mxu0 %v314
    %377 = vmatprep.subr.mxu0 %v318
    %378 = vmatpush1.msra.mxu0 %v317
    %379 = vmatprep.subr.mxu0 %v321
    %380 = vmatpush1.msra.mxu0 %v320
    %381 = vmatprep.subr.mxu0 %v324
    %382 = vmatpush1.msra.mxu0 %v323
    %383 = vmatprep.subr.mxu0 %v327
    %384 = vmatpush1.msra.mxu0 %v326
    %385 = vmatprep.subr.mxu0 %v330
    %386 = vmatpush1.msra.mxu0 %v329
    %387 = vmatprep.subr.mxu0 %v333
    %388 = vmatpush1.msra.mxu0 %v332
    %389 = vmatprep.subr.mxu0 %v336
    %390 = vmatpush1.msra.mxu0 %v335
    %391 = vmatprep.subr.mxu0 %v339
    %392 = vmatpush1.msra.mxu0 %v338
    %393 = vmatprep.subr.mxu0 %v342
    %394 = vmatpush1.msra.mxu0 %v341
    %395 = vmatprep.subr.mxu0 %v345
    %396 = vmatpush1.msra.mxu0 %v344
    %397 = vmatprep.subr.mxu0 %v348
    %398 = vmatpush1.msra.mxu0 %v347
    %399 = vmatprep.subr.mxu0 0.0
    %400 = vmatpush1.msra.mxu0 0.0
    %401 = vmatprep.subr.mxu0 0.0
    %402 = vmatpush1.msra.mxu0 0.0
    %403 = vmatprep.subr.mxu0 0.0
    %404 = vmatpush1.msra.mxu0 0.0
    %405 = vmatprep.subr.mxu0 0.0
    %406 = vmatpush1.msra.mxu0 0.0
    %407 = vmatprep.subr.mxu0 0.0
    %408 = vmatpush1.msra.mxu0 0.0
    %409 = vmatprep.subr.mxu0 0.0
    %410 = vmatpush1.msra.mxu0 0.0
    %411 = vmatprep.subr.mxu0 0.0
    %412 = vmatpush1.msra.mxu0 0.0
    %413 = vmatprep.subr.mxu0 0.0
    %414 = vmatpush1.msra.mxu0 0.0
    %415 = vmatprep.subr.mxu0 0.0
    %416 = vmatpush1.msra.mxu0 0.0
    %417 = vmatprep.subr.mxu0 0.0
    %418 = vmatpush1.msra.mxu0 0.0
    %419 = vmatprep.subr.mxu0 0.0
    %420 = vmatpush1.msra.mxu0 0.0
    %421 = vmatprep.subr.mxu0 0.0
    %422 = vmatpush1.msra.mxu0 0.0
    %423 = vmatprep.subr.mxu0 0.0
    %424 = vmatpush1.msra.mxu0 0.0
    %425 = vmatprep.subr.mxu0 0.0
    %426 = vmatpush1.msra.mxu0 0.0
    %427 = vmatprep.subr.mxu0 0.0
    %428 = vmatpush1.msra.mxu0 0.0
    %429 = vmatprep.subr.mxu0 0.0
    %430 = vmatpush1.msra.mxu0 0.0
    %431 = vmatprep.mubr.f32.mxu0 0.0
    %432 = vmatmul.mubr.f32.gmra.mrb[0].mxu0 %v294
    %v433 = vpop.f32.mrb[0].mxu0
    %v434 = vadd.f32 %v355, %v433
    %v435 = vpop.f32.mrb[0].mxu0
    %v436 = vadd.f32 %v359, %v435
    %437 = vmatprep.mubr.f32.mxu0 0.0
    %438 = vmatmul.mubr.f32.gmra.mrb[0].mxu0 %v295
    %v439 = vpop.f32.mrb[0].mxu0
    %v440 = vadd.f32 %v355, %v439
    %v441 = vpop.f32.mrb[0].mxu0
    %v442 = vadd.f32 %v359, %v441
    %443 = vmatprep.mubr.f32.mxu0 0.0
    %444 = vmatmul.mubr.f32.gmra.mrb[0].mxu0 %v296
    %v445 = vpop.f32.mrb[0].mxu0
    %v446 = vadd.f32 %v355, %v445
    %v447 = vpop.f32.mrb[0].mxu0
    %v448 = vadd.f32 %v359, %v447
    %449 = vmatprep.mubr.f32.mxu0 0.0
    %450 = vmatmul.mubr.f32.gmra.mrb[0].mxu0 %v297
    %v451 = vpop.f32.mrb[0].mxu0
    %v452 = vadd.f32 %v355, %v451
    %v453 = vpop.f32.mrb[0].mxu0
    %v454 = vadd.f32 %v359, %v453
    %455 = vmatprep.mubr.f32.mxu0 0.0
    %456 = vmatmul.mubr.f32.gmra.mrb[0].mxu0 %v298
    %v457 = vpop.f32.mrb[0].mxu0
    %v458 = vadd.f32 %v355, %v457
    %v459 = vpop.f32.mrb[0].mxu0
    %v460 = vadd.f32 %v359, %v459
    %461 = vmatprep.mubr.f32.mxu0 0.0
    %462 = vmatmul.mubr.f32.gmra.mrb[0].mxu0 %v299
    %v463 = vpop.f32.mrb[0].mxu0
    %v464 = vadd.f32 %v355, %v463
    %v465 = vpop.f32.mrb[0].mxu0
    %v466 = vadd.f32 %v359, %v465
    %467 = vmatprep.mubr.f32.mxu0 0.0
    %468 = vmatmul.mubr.f32.gmra.mrb[0].mxu0 %v300
    %v469 = vpop.f32.mrb[0].mxu0
    %v470 = vadd.f32 %v355, %v469
    %v471 = vpop.f32.mrb[0].mxu0
    %v472 = vadd.f32 %v359, %v471
    %473 = vmatprep.mubr.f32.mxu0 0.0
    %474 = vmatmul.mubr.f32.gmra.mrb[0].mxu0 %v301
    %v475 = vpop.f32.mrb[0].mxu0
    %v476 = vadd.f32 %v355, %v475
    %v477 = vpop.f32.mrb[0].mxu0
    %v478 = vadd.f32 %v359, %v477
    %479 = vdwg.mxu0
    %480 = vmatprep.subr.mxu0 0.0
    %481 = vmatpush1.msra.mxu0 %v304
    %482 = vmatprep.subr.mxu0 0.0
    %483 = vmatpush1.msra.mxu0 %v307
    %484 = vmatprep.subr.mxu0 0.0
    %485 = vmatpush1.msra.mxu0 %v310
    %486 = vmatprep.subr.mxu0 0.0
    %487 = vmatpush1.msra.mxu0 %v313
    %488 = vmatprep.subr.mxu0 0.0
    %489 = vmatpush1.msra.mxu0 %v316
    %490 = vmatprep.subr.mxu0 0.0
    %491 = vmatpush1.msra.mxu0 %v319
    %492 = vmatprep.subr.mxu0 0.0
    %493 = vmatpush1.msra.mxu0 %v322
    %494 = vmatprep.subr.mxu0 0.0
    %495 = vmatpush1.msra.mxu0 %v325
    %496 = vmatprep.subr.mxu0 0.0
    %497 = vmatpush1.msra.mxu0 %v328
    %498 = vmatprep.subr.mxu0 0.0
    %499 = vmatpush1.msra.mxu0 %v331
    %500 = vmatprep.subr.mxu0 0.0
    %501 = vmatpush1.msra.mxu0 %v334
    %502 = vmatprep.subr.mxu0 0.0
    %503 = vmatpush1.msra.mxu0 %v337
    %504 = vmatprep.subr.mxu0 0.0
    %505 = vmatpush1.msra.mxu0 %v340
    %506 = vmatprep.subr.mxu0 0.0
    %507 = vmatpush1.msra.mxu0 %v343
    %508 = vmatprep.subr.mxu0 0.0
    %509 = vmatpush1.msra.mxu0 %v346
    %510 = vmatprep.subr.mxu0 0.0
    %511 = vmatpush1.msra.mxu0 %v349
    %512 = vmatprep.subr.mxu0 0.0
    %513 = vmatpush1.msra.mxu0 0.0
    %514 = vmatprep.subr.mxu0 0.0
    %515 = vmatpush1.msra.mxu0 0.0
    %516 = vmatprep.subr.mxu0 0.0
    %517 = vmatpush1.msra.mxu0 0.0
    %518 = vmatprep.subr.mxu0 0.0
    %519 = vmatpush1.msra.mxu0 0.0
    %520 = vmatprep.subr.mxu0 0.0
    %521 = vmatpush1.msra.mxu0 0.0
    %522 = vmatprep.subr.mxu0 0.0
    %523 = vmatpush1.msra.mxu0 0.0
    %524 = vmatprep.subr.mxu0 0.0
    %525 = vmatpush1.msra.mxu0 0.0
    %526 = vmatprep.subr.mxu0 0.0
    %527 = vmatpush1.msra.mxu0 0.0
    %528 = vmatprep.subr.mxu0 0.0
    %529 = vmatpush1.msra.mxu0 0.0
    %530 = vmatprep.subr.mxu0 0.0
    %531 = vmatpush1.msra.mxu0 0.0
    %532 = vmatprep.subr.mxu0 0.0
    %533 = vmatpush1.msra.mxu0 0.0
    %534 = vmatprep.subr.mxu0 0.0
    %535 = vmatpush1.msra.mxu0 0.0
    %536 = vmatprep.subr.mxu0 0.0
    %537 = vmatpush1.msra.mxu0 0.0
    %538 = vmatprep.subr.mxu0 0.0
    %539 = vmatpush1.msra.mxu0 0.0
    %540 = vmatprep.subr.mxu0 0.0
    %541 = vmatpush1.msra.mxu0 0.0
    %542 = vmatprep.subr.mxu0 0.0
    %543 = vmatpush1.msra.mxu0 0.0
    %544 = vmatprep.mubr.f32.mxu0 0.0
    %545 = vmatmul.mubr.f32.gmra.mrb[0].mxu0 %v294
    %v546 = vpop.f32.mrb[0].mxu0
    %v547 = vadd.f32 %v363, %v546
    %v548 = vpop.f32.mrb[0].mxu0
    %549 = vmatprep.mubr.f32.mxu0 0.0
    %550 = vmatmul.mubr.f32.gmra.mrb[0].mxu0 %v295
    %v551 = vpop.f32.mrb[0].mxu0
    %v552 = vadd.f32 %v363, %v551
    %v553 = vpop.f32.mrb[0].mxu0
    %554 = vmatprep.mubr.f32.mxu0 0.0
    %555 = vmatmul.mubr.f32.gmra.mrb[0].mxu0 %v296
    %v556 = vpop.f32.mrb[0].mxu0
    %v557 = vadd.f32 %v363, %v556
    %v558 = vpop.f32.mrb[0].mxu0
    %559 = vmatprep.mubr.f32.mxu0 0.0
    %560 = vmatmul.mubr.f32.gmra.mrb[0].mxu0 %v297
    %v561 = vpop.f32.mrb[0].mxu0
    %v562 = vadd.f32 %v363, %v561
    %v563 = vpop.f32.mrb[0].mxu0
    %564 = vmatprep.mubr.f32.mxu0 0.0
    %565 = vmatmul.mubr.f32.gmra.mrb[0].mxu0 %v298
    %v566 = vpop.f32.mrb[0].mxu0
    %v567 = vadd.f32 %v363, %v566
    %v568 = vpop.f32.mrb[0].mxu0
    %569 = vmatprep.mubr.f32.mxu0 0.0
    %570 = vmatmul.mubr.f32.gmra.mrb[0].mxu0 %v299
    %v571 = vpop.f32.mrb[0].mxu0
    %v572 = vadd.f32 %v363, %v571
    %v573 = vpop.f32.mrb[0].mxu0
    %574 = vmatprep.mubr.f32.mxu0 0.0
    %575 = vmatmul.mubr.f32.gmra.mrb[0].mxu0 %v300
    %v576 = vpop.f32.mrb[0].mxu0
    %v577 = vadd.f32 %v363, %v576
    %v578 = vpop.f32.mrb[0].mxu0
    %579 = vmatprep.mubr.f32.mxu0 0.0
    %580 = vmatmul.mubr.f32.gmra.mrb[0].mxu0 %v301
    %v581 = vpop.f32.mrb[0].mxu0
    %v582 = vadd.f32 %v363, %v581
    %v583 = vpop.f32.mrb[0].mxu0
    %584 = vdwg.mxu0
    %585 = vst [vmem:[#allocation3] sm:$0xff] %v434
    %586 = vst [vmem:[#allocation3 + $0x8] sm:$0xff] %v436
    %587 = vst [vmem:[#allocation3 + $0x10] sm:$0xff] %v547
    %588 = vst [vmem:[#allocation3 + $0x18] sm:$0xff] %v440
    %589 = vst [vmem:[#allocation3 + $0x20] sm:$0xff] %v442
    %590 = vst [vmem:[#allocation3 + $0x28] sm:$0xff] %v552
    %591 = vst [vmem:[#allocation3 + $0x30] sm:$0xff] %v446
    %592 = vst [vmem:[#allocation3 + $0x38] sm:$0xff] %v448
    %593 = vst [vmem:[#allocation3 + $0x40] sm:$0xff] %v557
    %594 = vst [vmem:[#allocation3 + $0x48] sm:$0xff] %v452
    %595 = vst [vmem:[#allocation3 + $0x50] sm:$0xff] %v454
    %596 = vst [vmem:[#allocation3 + $0x58] sm:$0xff] %v562
    %597 = vst [vmem:[#allocation3 + $0x60] sm:$0xff] %v458
    %598 = vst [vmem:[#allocation3 + $0x68] sm:$0xff] %v460
    %599 = vst [vmem:[#allocation3 + $0x70] sm:$0xff] %v567
    %600 = vst [vmem:[#allocation3 + $0x78] sm:$0xff] %v464
    %601 = vst [vmem:[#allocation3 + $0x80] sm:$0xff] %v466
    %602 = vst [vmem:[#allocation3 + $0x88] sm:$0xff] %v572
    %603 = vst [vmem:[#allocation3 + $0x90] sm:$0xff] %v470
    %604 = vst [vmem:[#allocation3 + $0x98] sm:$0xff] %v472
    %605 = vst [vmem:[#allocation3 + $0xa0] sm:$0xff] %v577
    %606 = vst [vmem:[#allocation3 + $0xa8] sm:$0xff] %v476
    %607 = vst [vmem:[#allocation3 + $0xb0] sm:$0xff] %v478
    %608 = vst [vmem:[#allocation3 + $0xb8] sm:$0xff] %v582
    %v609 = vld [vmem:[%s7] sm:$0x1]
    %v611 = vlaneseq
    %v612 = vshrl.u32 %v611, 7
    %v613 = vsub.s32 0, %v612
    %v614 = vrot.slane %v609, %v613
    %v616 = vld [vmem:[%s1] sm:$0xff]
    %s617 = smul.u32 0, 3
    %s618 = smul.addr %s617, 8
    %s619 = scalar_lea.vmem [#allocation3], %s618
    %v620 = vld [vmem:[%s619] sm:$0xff]
    %v621 = vld [vmem:[%s619 + $0x8] sm:$0xff]
    %v622 = vld [vmem:[%s619 + $0x10] sm:$0xff]
    %v623 = vld [vmem:[#allocation7] sm:$0xff]
    %v624 = vld [vmem:[#allocation7 + $0x8] sm:$0xff]
    %v625 = vld [vmem:[#allocation7 + $0x10] sm:$0xff]
    %v626 = vld [vmem:[#allocation7 + $0x18] sm:$0xff]
    %v627 = vld [vmem:[#allocation7 + $0x20] sm:$0xff]
    %v628 = vld [vmem:[#allocation7 + $0x28] sm:$0xff]
    %v629 = vld [vmem:[#allocation7 + $0x30] sm:$0xff]
    %v630 = vld [vmem:[#allocation7 + $0x38] sm:$0xff]
    %v631 = vld [vmem:[#allocation7 + $0x40] sm:$0xff]
    %v632 = vld [vmem:[#allocation7 + $0x48] sm:$0xff]
    %v633 = vld [vmem:[#allocation7 + $0x50] sm:$0xff]
    %v634 = vld [vmem:[#allocation7 + $0x58] sm:$0xff]
    %v635 = vld [vmem:[#allocation7 + $0x60] sm:$0xff]
    %v636 = vld [vmem:[#allocation7 + $0x68] sm:$0xff]
    %v637 = vld [vmem:[#allocation7 + $0x70] sm:$0xff]
    %v638 = vld [vmem:[#allocation7 + $0x78] sm:$0xff]
    %v639 = vld [vmem:[#allocation7 + $0x80] sm:$0xff]
    %v640 = vld [vmem:[#allocation7 + $0x88] sm:$0xff]
    %v641 = vld [vmem:[#allocation7 + $0x90] sm:$0xff]
    %v642 = vld [vmem:[#allocation7 + $0x98] sm:$0xff]
    %v643 = vld [vmem:[#allocation7 + $0xa0] sm:$0xff]
    %v644 = vld [vmem:[#allocation7 + $0xa8] sm:$0xff]
    %v645 = vld [vmem:[#allocation7 + $0xb0] sm:$0xff]
    %v646 = vld [vmem:[#allocation7 + $0xb8] sm:$0xff]
    %v647 = vld [vmem:[#allocation7 + $0xc0] sm:$0xff]
    %v648 = vld [vmem:[#allocation7 + $0xc8] sm:$0xff]
    %v649 = vld [vmem:[#allocation7 + $0xd0] sm:$0xff]
    %v650 = vld [vmem:[#allocation7 + $0xd8] sm:$0xff]
    %v651 = vld [vmem:[#allocation7 + $0xe0] sm:$0xff]
    %v652 = vld [vmem:[#allocation7 + $0xe8] sm:$0xff]
    %v653 = vld [vmem:[#allocation7 + $0xf0] sm:$0xff]
    %v654 = vld [vmem:[#allocation7 + $0xf8] sm:$0xff]
    %v655 = vld [vmem:[#allocation7 + $0x100] sm:$0xff]
    %v656 = vld [vmem:[#allocation7 + $0x108] sm:$0xff]
    %v657 = vld [vmem:[#allocation7 + $0x110] sm:$0xff]
    %v658 = vld [vmem:[#allocation7 + $0x118] sm:$0xff]
    %v659 = vld [vmem:[#allocation7 + $0x120] sm:$0xff]
    %v660 = vld [vmem:[#allocation7 + $0x128] sm:$0xff]
    %v661 = vld [vmem:[#allocation7 + $0x130] sm:$0xff]
    %v662 = vld [vmem:[#allocation7 + $0x138] sm:$0xff]
    %v663 = vld [vmem:[#allocation7 + $0x140] sm:$0xff]
    %v664 = vld [vmem:[#allocation7 + $0x148] sm:$0xff]
    %v665 = vld [vmem:[#allocation7 + $0x150] sm:$0xff]
    %v666 = vld [vmem:[#allocation7 + $0x158] sm:$0xff]
    %v667 = vld [vmem:[#allocation7 + $0x160] sm:$0xff]
    %v668 = vld [vmem:[#allocation7 + $0x168] sm:$0xff]
    %v669 = vld [vmem:[#allocation7 + $0x170] sm:$0xff]
    %v670 = vld [vmem:[#allocation7 + $0x178] sm:$0xff]
    %671 = vmatprep.subr.mxu0 %v624
    %672 = vmatpush1.msra.mxu0 %v623
    %673 = vmatprep.subr.mxu0 %v627
    %674 = vmatpush1.msra.mxu0 %v626
    %675 = vmatprep.subr.mxu0 %v630
    %676 = vmatpush1.msra.mxu0 %v629
    %677 = vmatprep.subr.mxu0 %v633
    %678 = vmatpush1.msra.mxu0 %v632
    %679 = vmatprep.subr.mxu0 %v636
    %680 = vmatpush1.msra.mxu0 %v635
    %681 = vmatprep.subr.mxu0 %v639
    %682 = vmatpush1.msra.mxu0 %v638
    %683 = vmatprep.subr.mxu0 %v642
    %684 = vmatpush1.msra.mxu0 %v641
    %685 = vmatprep.subr.mxu0 %v645
    %686 = vmatpush1.msra.mxu0 %v644
    %687 = vmatprep.subr.mxu0 %v648
    %688 = vmatpush1.msra.mxu0 %v647
    %689 = vmatprep.subr.mxu0 %v651
    %690 = vmatpush1.msra.mxu0 %v650
    %691 = vmatprep.subr.mxu0 %v654
    %692 = vmatpush1.msra.mxu0 %v653
    %693 = vmatprep.subr.mxu0 %v657
    %694 = vmatpush1.msra.mxu0 %v656
    %695 = vmatprep.subr.mxu0 %v660
    %696 = vmatpush1.msra.mxu0 %v659
    %697 = vmatprep.subr.mxu0 %v663
    %698 = vmatpush1.msra.mxu0 %v662
    %699 = vmatprep.subr.mxu0 %v666
    %700 = vmatpush1.msra.mxu0 %v665
    %701 = vmatprep.subr.mxu0 %v669
    %702 = vmatpush1.msra.mxu0 %v668
    %703 = vmatprep.subr.mxu0 0.0
    %704 = vmatpush1.msra.mxu0 0.0
    %705 = vmatprep.subr.mxu0 0.0
    %706 = vmatpush1.msra.mxu0 0.0
    %707 = vmatprep.subr.mxu0 0.0
    %708 = vmatpush1.msra.mxu0 0.0
    %709 = vmatprep.subr.mxu0 0.0
    %710 = vmatpush1.msra.mxu0 0.0
    %711 = vmatprep.subr.mxu0 0.0
    %712 = vmatpush1.msra.mxu0 0.0
    %713 = vmatprep.subr.mxu0 0.0
    %714 = vmatpush1.msra.mxu0 0.0
    %715 = vmatprep.subr.mxu0 0.0
    %716 = vmatpush1.msra.mxu0 0.0
    %717 = vmatprep.subr.mxu0 0.0
    %718 = vmatpush1.msra.mxu0 0.0
    %719 = vmatprep.subr.mxu0 0.0
    %720 = vmatpush1.msra.mxu0 0.0
    %721 = vmatprep.subr.mxu0 0.0
    %722 = vmatpush1.msra.mxu0 0.0
    %723 = vmatprep.subr.mxu0 0.0
    %724 = vmatpush1.msra.mxu0 0.0
    %725 = vmatprep.subr.mxu0 0.0
    %726 = vmatpush1.msra.mxu0 0.0
    %727 = vmatprep.subr.mxu0 0.0
    %728 = vmatpush1.msra.mxu0 0.0
    %729 = vmatprep.subr.mxu0 0.0
    %730 = vmatpush1.msra.mxu0 0.0
    %731 = vmatprep.subr.mxu0 0.0
    %732 = vmatpush1.msra.mxu0 0.0
    %733 = vmatprep.subr.mxu0 0.0
    %734 = vmatpush1.msra.mxu0 0.0
    %735 = vmatprep.mubr.f32.mxu0 0.0
    %736 = vmatmul.mubr.f32.gmra.mrb[0].mxu0 %v616
    %v737 = vpop.f32.mrb[0].mxu0
    %v738 = vadd.f32 0.0, %v737
    %v739 = vpop.f32.mrb[0].mxu0
    %v740 = vadd.f32 0.0, %v739
    %741 = vdwg.mxu0
    %742 = vmatprep.subr.mxu0 0.0
    %743 = vmatpush1.msra.mxu0 %v625
    %744 = vmatprep.subr.mxu0 0.0
    %745 = vmatpush1.msra.mxu0 %v628
    %746 = vmatprep.subr.mxu0 0.0
    %747 = vmatpush1.msra.mxu0 %v631
    %748 = vmatprep.subr.mxu0 0.0
    %749 = vmatpush1.msra.mxu0 %v634
    %750 = vmatprep.subr.mxu0 0.0
    %751 = vmatpush1.msra.mxu0 %v637
    %752 = vmatprep.subr.mxu0 0.0
    %753 = vmatpush1.msra.mxu0 %v640
    %754 = vmatprep.subr.mxu0 0.0
    %755 = vmatpush1.msra.mxu0 %v643
    %756 = vmatprep.subr.mxu0 0.0
    %757 = vmatpush1.msra.mxu0 %v646
    %758 = vmatprep.subr.mxu0 0.0
    %759 = vmatpush1.msra.mxu0 %v649
    %760 = vmatprep.subr.mxu0 0.0
    %761 = vmatpush1.msra.mxu0 %v652
    %762 = vmatprep.subr.mxu0 0.0
    %763 = vmatpush1.msra.mxu0 %v655
    %764 = vmatprep.subr.mxu0 0.0
    %765 = vmatpush1.msra.mxu0 %v658
    %766 = vmatprep.subr.mxu0 0.0
    %767 = vmatpush1.msra.mxu0 %v661
    %768 = vmatprep.subr.mxu0 0.0
    %769 = vmatpush1.msra.mxu0 %v664
    %770 = vmatprep.subr.mxu0 0.0
    %771 = vmatpush1.msra.mxu0 %v667
    %772 = vmatprep.subr.mxu0 0.0
    %773 = vmatpush1.msra.mxu0 %v670
    %774 = vmatprep.subr.mxu0 0.0
    %775 = vmatpush1.msra.mxu0 0.0
    %776 = vmatprep.subr.mxu0 0.0
    %777 = vmatpush1.msra.mxu0 0.0
    %778 = vmatprep.subr.mxu0 0.0
    %779 = vmatpush1.msra.mxu0 0.0
    %780 = vmatprep.subr.mxu0 0.0
    %781 = vmatpush1.msra.mxu0 0.0
    %782 = vmatprep.subr.mxu0 0.0
    %783 = vmatpush1.msra.mxu0 0.0
    %784 = vmatprep.subr.mxu0 0.0
    %785 = vmatpush1.msra.mxu0 0.0
    %786 = vmatprep.subr.mxu0 0.0
    %787 = vmatpush1.msra.mxu0 0.0
    %788 = vmatprep.subr.mxu0 0.0
    %789 = vmatpush1.msra.mxu0 0.0
    %790 = vmatprep.subr.mxu0 0.0
    %791 = vmatpush1.msra.mxu0 0.0
    %792 = vmatprep.subr.mxu0 0.0
    %793 = vmatpush1.msra.mxu0 0.0
    %794 = vmatprep.subr.mxu0 0.0
    %795 = vmatpush1.msra.mxu0 0.0
    %796 = vmatprep.subr.mxu0 0.0
    %797 = vmatpush1.msra.mxu0 0.0
    %798 = vmatprep.subr.mxu0 0.0
    %799 = vmatpush1.msra.mxu0 0.0
    %800 = vmatprep.subr.mxu0 0.0
    %801 = vmatpush1.msra.mxu0 0.0
    %802 = vmatprep.subr.mxu0 0.0
    %803 = vmatpush1.msra.mxu0 0.0
    %804 = vmatprep.subr.mxu0 0.0
    %805 = vmatpush1.msra.mxu0 0.0
    %806 = vmatprep.mubr.f32.mxu0 0.0
    %807 = vmatmul.mubr.f32.gmra.mrb[0].mxu0 %v616
    %v808 = vpop.f32.mrb[0].mxu0
    %v809 = vadd.f32 0.0, %v808
    %v810 = vpop.f32.mrb[0].mxu0
    %811 = vdwg.mxu0
    %v812 = vadd.f32 %v620, %v738
    %v813 = vxor.u32 %v812, 2147483648
    %v814 = vmul.f32 %v813, 1.442695
    %v815 = vpow.pop %v814
    %v816 = vadd.f32 %v815, 1.0
    %v817 = vrcp.pop %v816
    %v818 = vmul.f32 1.0, %v817
    %v819 = vadd.f32 %v621, %v740
    %v820 = vxor.u32 %v819, 2147483648
    %v821 = vmul.f32 %v820, 1.442695
    %v822 = vpow.pop %v821
    %v823 = vadd.f32 %v822, 1.0
    %v824 = vrcp.pop %v823
    %v825 = vmul.f32 1.0, %v824
    %v826 = vadd.f32 %v809, %v614
    %v827 = vmul.f32 %v818, %v826
    %v828 = vadd.f32 %v622, %v827
    %v829 = vtanh.pop %v828
    %v830 = vsub.f32 1.0, %v825
    %v831 = vmul.f32 %v830, %v829
    %v832 = vmul.f32 %v825, %v616
    %v833 = vadd.f32 %v831, %v832
    %834 = vst [vmem:[#allocation2] sm:$0xff] %v833
    %s835 = smul.u32 1, 3
    %s836 = smul.addr %s835, 8
    %s837 = scalar_lea.vmem [#allocation3], %s836
    %v838 = vld [vmem:[%s837] sm:$0xff]
    %v839 = vld [vmem:[%s837 + $0x8] sm:$0xff]
    %v840 = vld [vmem:[%s837 + $0x10] sm:$0xff]
    %v841 = vld [vmem:[#allocation7] sm:$0xff]
    %v842 = vld [vmem:[#allocation7 + $0x8] sm:$0xff]
    %v843 = vld [vmem:[#allocation7 + $0x10] sm:$0xff]
    %v844 = vld [vmem:[#allocation7 + $0x18] sm:$0xff]
    %v845 = vld [vmem:[#allocation7 + $0x20] sm:$0xff]
    %v846 = vld [vmem:[#allocation7 + $0x28] sm:$0xff]
    %v847 = vld [vmem:[#allocation7 + $0x30] sm:$0xff]
    %v848 = vld [vmem:[#allocation7 + $0x38] sm:$0xff]
    %v849 = vld [vmem:[#allocation7 + $0x40] sm:$0xff]
    %v850 = vld [vmem:[#allocation7 + $0x48] sm:$0xff]
    %v851 = vld [vmem:[#allocation7 + $0x50] sm:$0xff]
    %v852 = vld [vmem:[#allocation7 + $0x58] sm:$0xff]
    %v853 = vld [vmem:[#allocation7 + $0x60] sm:$0xff]
    %v854 = vld [vmem:[#allocation7 + $0x68] sm:$0xff]
    %v855 = vld [vmem:[#allocation7 + $0x70] sm:$0xff]
    %v856 = vld [vmem:[#allocation7 + $0x78] sm:$0xff]
    %v857 = vld [vmem:[#allocation7 + $0x80] sm:$0xff]
    %v858 = vld [vmem:[#allocation7 + $0x88] sm:$0xff]
    %v859 = vld [vmem:[#allocation7 + $0x90] sm:$0xff]
    %v860 = vld [vmem:[#allocation7 + $0x98] sm:$0xff]
    %v861 = vld [vmem:[#allocation7 + $0xa0] sm:$0xff]
    %v862 = vld [vmem:[#allocation7 + $0xa8] sm:$0xff]
    %v863 = vld [vmem:[#allocation7 + $0xb0] sm:$0xff]
    %v864 = vld [vmem:[#allocation7 + $0xb8] sm:$0xff]
    %v865 = vld [vmem:[#allocation7 + $0xc0] sm:$0xff]
    %v866 = vld [vmem:[#allocation7 + $0xc8] sm:$0xff]
    %v867 = vld [vmem:[#allocation7 + $0xd0] sm:$0xff]
    %v868 = vld [vmem:[#allocation7 + $0xd8] sm:$0xff]
    %v869 = vld [vmem:[#allocation7 + $0xe0] sm:$0xff]
    %v870 = vld [vmem:[#allocation7 + $0xe8] sm:$0xff]
    %v871 = vld [vmem:[#allocation7 + $0xf0] sm:$0xff]
    %v872 = vld [vmem:[#allocation7 + $0xf8] sm:$0xff]
    %v873 = vld [vmem:[#allocation7 + $0x100] sm:$0xff]
    %v874 = vld [vmem:[#allocation7 + $0x108] sm:$0xff]
    %v875 = vld [vmem:[#allocation7 + $0x110] sm:$0xff]
    %v876 = vld [vmem:[#allocation7 + $0x118] sm:$0xff]
    %v877 = vld [vmem:[#allocation7 + $0x120] sm:$0xff]
    %v878 = vld [vmem:[#allocation7 + $0x128] sm:$0xff]
    %v879 = vld [vmem:[#allocation7 + $0x130] sm:$0xff]
    %v880 = vld [vmem:[#allocation7 + $0x138] sm:$0xff]
    %v881 = vld [vmem:[#allocation7 + $0x140] sm:$0xff]
    %v882 = vld [vmem:[#allocation7 + $0x148] sm:$0xff]
    %v883 = vld [vmem:[#allocation7 + $0x150] sm:$0xff]
    %v884 = vld [vmem:[#allocation7 + $0x158] sm:$0xff]
    %v885 = vld [vmem:[#allocation7 + $0x160] sm:$0xff]
    %v886 = vld [vmem:[#allocation7 + $0x168] sm:$0xff]
    %v887 = vld [vmem:[#allocation7 + $0x170] sm:$0xff]
    %v888 = vld [vmem:[#allocation7 + $0x178] sm:$0xff]
    %889 = vmatprep.subr.mxu0 %v842
    %890 = vmatpush1.msra.mxu0 %v841
    %891 = vmatprep.subr.mxu0 %v845
    %892 = vmatpush1.msra.mxu0 %v844
    %893 = vmatprep.subr.mxu0 %v848
    %894 = vmatpush1.msra.mxu0 %v847
    %895 = vmatprep.subr.mxu0 %v851
    %896 = vmatpush1.msra.mxu0 %v850
    %897 = vmatprep.subr.mxu0 %v854
    %898 = vmatpush1.msra.mxu0 %v853
    %899 = vmatprep.subr.mxu0 %v857
    %900 = vmatpush1.msra.mxu0 %v856
    %901 = vmatprep.subr.mxu0 %v860
    %902 = vmatpush1.msra.mxu0 %v859
    %903 = vmatprep.subr.mxu0 %v863
    %904 = vmatpush1.msra.mxu0 %v862
    %905 = vmatprep.subr.mxu0 %v866
    %906 = vmatpush1.msra.mxu0 %v865
    %907 = vmatprep.subr.mxu0 %v869
    %908 = vmatpush1.msra.mxu0 %v868
    %909 = vmatprep.subr.mxu0 %v872
    %910 = vmatpush1.msra.mxu0 %v871
    %911 = vmatprep.subr.mxu0 %v875
    %912 = vmatpush1.msra.mxu0 %v874
    %913 = vmatprep.subr.mxu0 %v878
    %914 = vmatpush1.msra.mxu0 %v877
    %915 = vmatprep.subr.mxu0 %v881
    %916 = vmatpush1.msra.mxu0 %v880
    %917 = vmatprep.subr.mxu0 %v884
    %918 = vmatpush1.msra.mxu0 %v883
    %919 = vmatprep.subr.mxu0 %v887
    %920 = vmatpush1.msra.mxu0 %v886
    %921 = vmatprep.subr.mxu0 0.0
    %922 = vmatpush1.msra.mxu0 0.0
    %923 = vmatprep.subr.mxu0 0.0
    %924 = vmatpush1.msra.mxu0 0.0
    %925 = vmatprep.subr.mxu0 0.0
    %926 = vmatpush1.msra.mxu0 0.0
    %927 = vmatprep.subr.mxu0 0.0
    %928 = vmatpush1.msra.mxu0 0.0
    %929 = vmatprep.subr.mxu0 0.0
    %930 = vmatpush1.msra.mxu0 0.0
    %931 = vmatprep.subr.mxu0 0.0
    %932 = vmatpush1.msra.mxu0 0.0
    %933 = vmatprep.subr.mxu0 0.0
    %934 = vmatpush1.msra.mxu0 0.0
    %935 = vmatprep.subr.mxu0 0.0
    %936 = vmatpush1.msra.mxu0 0.0
    %937 = vmatprep.subr.mxu0 0.0
    %938 = vmatpush1.msra.mxu0 0.0
    %939 = vmatprep.subr.mxu0 0.0
    %940 = vmatpush1.msra.mxu0 0.0
    %941 = vmatprep.subr.mxu0 0.0
    %942 = vmatpush1.msra.mxu0 0.0
    %943 = vmatprep.subr.mxu0 0.0
    %944 = vmatpush1.msra.mxu0 0.0
    %945 = vmatprep.subr.mxu0 0.0
    %946 = vmatpush1.msra.mxu0 0.0
    %947 = vmatprep.subr.mxu0 0.0
    %948 = vmatpush1.msra.mxu0 0.0
    %949 = vmatprep.subr.mxu0 0.0
    %950 = vmatpush1.msra.mxu0 0.0
    %951 = vmatprep.subr.mxu0 0.0
    %952 = vmatpush1.msra.mxu0 0.0
    %953 = vmatprep.mubr.f32.mxu0 0.0
    %954 = vmatmul.mubr.f32.gmra.mrb[0].mxu0 %v833
    %v955 = vpop.f32.mrb[0].mxu0
    %v956 = vadd.f32 0.0, %v955
    %v957 = vpop.f32.mrb[0].mxu0
    %v958 = vadd.f32 0.0, %v957
    %959 = vdwg.mxu0
    %960 = vmatprep.subr.mxu0 0.0
    %961 = vmatpush1.msra.mxu0 %v843
    %962 = vmatprep.subr.mxu0 0.0
    %963 = vmatpush1.msra.mxu0 %v846
    %964 = vmatprep.subr.mxu0 0.0
    %965 = vmatpush1.msra.mxu0 %v849
    %966 = vmatprep.subr.mxu0 0.0
    %967 = vmatpush1.msra.mxu0 %v852
    %968 = vmatprep.subr.mxu0 0.0
    %969 = vmatpush1.msra.mxu0 %v855
    %970 = vmatprep.subr.mxu0 0.0
    %971 = vmatpush1.msra.mxu0 %v858
    %972 = vmatprep.subr.mxu0 0.0
    %973 = vmatpush1.msra.mxu0 %v861
    %974 = vmatprep.subr.mxu0 0.0
    %975 = vmatpush1.msra.mxu0 %v864
    %976 = vmatprep.subr.mxu0 0.0
    %977 = vmatpush1.msra.mxu0 %v867
    %978 = vmatprep.subr.mxu0 0.0
    %979 = vmatpush1.msra.mxu0 %v870
    %980 = vmatprep.subr.mxu0 0.0
    %981 = vmatpush1.msra.mxu0 %v873
    %982 = vmatprep.subr.mxu0 0.0
    %983 = vmatpush1.msra.mxu0 %v876
    %984 = vmatprep.subr.mxu0 0.0
    %985 = vmatpush1.msra.mxu0 %v879
    %986 = vmatprep.subr.mxu0 0.0
    %987 = vmatpush1.msra.mxu0 %v882
    %988 = vmatprep.subr.mxu0 0.0
    %989 = vmatpush1.msra.mxu0 %v885
    %990 = vmatprep.subr.mxu0 0.0
    %991 = vmatpush1.msra.mxu0 %v888
    %992 = vmatprep.subr.mxu0 0.0
    %993 = vmatpush1.msra.mxu0 0.0
    %994 = vmatprep.subr.mxu0 0.0
    %995 = vmatpush1.msra.mxu0 0.0
    %996 = vmatprep.subr.mxu0 0.0
    %997 = vmatpush1.msra.mxu0 0.0
    %998 = vmatprep.subr.mxu0 0.0
    %999 = vmatpush1.msra.mxu0 0.0
    %1000 = vmatprep.subr.mxu0 0.0
    %1001 = vmatpush1.msra.mxu0 0.0
    %1002 = vmatprep.subr.mxu0 0.0
    %1003 = vmatpush1.msra.mxu0 0.0
    %1004 = vmatprep.subr.mxu0 0.0
    %1005 = vmatpush1.msra.mxu0 0.0
    %1006 = vmatprep.subr.mxu0 0.0
    %1007 = vmatpush1.msra.mxu0 0.0
    %1008 = vmatprep.subr.mxu0 0.0
    %1009 = vmatpush1.msra.mxu0 0.0
    %1010 = vmatprep.subr.mxu0 0.0
    %1011 = vmatpush1.msra.mxu0 0.0
    %1012 = vmatprep.subr.mxu0 0.0
    %1013 = vmatpush1.msra.mxu0 0.0
    %1014 = vmatprep.subr.mxu0 0.0
    %1015 = vmatpush1.msra.mxu0 0.0
    %1016 = vmatprep.subr.mxu0 0.0
    %1017 = vmatpush1.msra.mxu0 0.0
    %1018 = vmatprep.subr.mxu0 0.0
    %1019 = vmatpush1.msra.mxu0 0.0
    %1020 = vmatprep.subr.mxu0 0.0
    %1021 = vmatpush1.msra.mxu0 0.0
    %1022 = vmatprep.subr.mxu0 0.0
    %1023 = vmatpush1.msra.mxu0 0.0
    %1024 = vmatprep.mubr.f32.mxu0 0.0
    %1025 = vmatmul.mubr.f32.gmra.mrb[0].mxu0 %v833
    %v1026 = vpop.f32.mrb[0].mxu0
    %v1027 = vadd.f32 0.0, %v1026
    %v1028 = vpop.f32.mrb[0].mxu0
    %1029 = vdwg.mxu0
    %v1030 = vadd.f32 %v838, %v956
    %v1031 = vxor.u32 %v1030, 2147483648
    %v1032 = vmul.f32 %v1031, 1.442695
    %v1033 = vpow.pop %v1032
    %v1034 = vadd.f32 %v1033, 1.0
    %v1035 = vrcp.pop %v1034
    %v1036 = vmul.f32 1.0, %v1035
    %v1037 = vadd.f32 %v839, %v958
    %v1038 = vxor.u32 %v1037, 2147483648
    %v1039 = vmul.f32 %v1038, 1.442695
    %v1040 = vpow.pop %v1039
    %v1041 = vadd.f32 %v1040, 1.0
    %v1042 = vrcp.pop %v1041
    %v1043 = vmul.f32 1.0, %v1042
    %v1044 = vadd.f32 %v1027, %v614
    %v1045 = vmul.f32 %v1036, %v1044
    %v1046 = vadd.f32 %v840, %v1045
    %v1047 = vtanh.pop %v1046
    %v1048 = vsub.f32 1.0, %v1043
    %v1049 = vmul.f32 %v1048, %v1047
    %v1050 = vmul.f32 %v1043, %v833
    %v1051 = vadd.f32 %v1049, %v1050
    %s1052 = scalar_lea.vmem [#allocation2], 8
    %1053 = vst [vmem:[%s1052] sm:$0xff] %v1051
    %s1054 = smul.u32 2, 3
    %s1055 = smul.addr %s1054, 8
    %s1056 = scalar_lea.vmem [#allocation3], %s1055
    %v1057 = vld [vmem:[%s1056] sm:$0xff]
    %v1058 = vld [vmem:[%s1056 + $0x8] sm:$0xff]
    %v1059 = vld [vmem:[%s1056 + $0x10] sm:$0xff]
    %v1060 = vld [vmem:[#allocation7] sm:$0xff]
    %v1061 = vld [vmem:[#allocation7 + $0x8] sm:$0xff]
    %v1062 = vld [vmem:[#allocation7 + $0x10] sm:$0xff]
    %v1063 = vld [vmem:[#allocation7 + $0x18] sm:$0xff]
    %v1064 = vld [vmem:[#allocation7 + $0x20] sm:$0xff]
    %v1065 = vld [vmem:[#allocation7 + $0x28] sm:$0xff]
    %v1066 = vld [vmem:[#allocation7 + $0x30] sm:$0xff]
    %v1067 = vld [vmem:[#allocation7 + $0x38] sm:$0xff]
    %v1068 = vld [vmem:[#allocation7 + $0x40] sm:$0xff]
    %v1069 = vld [vmem:[#allocation7 + $0x48] sm:$0xff]
    %v1070 = vld [vmem:[#allocation7 + $0x50] sm:$0xff]
    %v1071 = vld [vmem:[#allocation7 + $0x58] sm:$0xff]
    %v1072 = vld [vmem:[#allocation7 + $0x60] sm:$0xff]
    %v1073 = vld [vmem:[#allocation7 + $0x68] sm:$0xff]
    %v1074 = vld [vmem:[#allocation7 + $0x70] sm:$0xff]
    %v1075 = vld [vmem:[#allocation7 + $0x78] sm:$0xff]
    %v1076 = vld [vmem:[#allocation7 + $0x80] sm:$0xff]
    %v1077 = vld [vmem:[#allocation7 + $0x88] sm:$0xff]
    %v1078 = vld [vmem:[#allocation7 + $0x90] sm:$0xff]
    %v1079 = vld [vmem:[#allocation7 + $0x98] sm:$0xff]
    %v1080 = vld [vmem:[#allocation7 + $0xa0] sm:$0xff]
    %v1081 = vld [vmem:[#allocation7 + $0xa8] sm:$0xff]
    %v1082 = vld [vmem:[#allocation7 + $0xb0] sm:$0xff]
    %v1083 = vld [vmem:[#allocation7 + $0xb8] sm:$0xff]
    %v1084 = vld [vmem:[#allocation7 + $0xc0] sm:$0xff]
    %v1085 = vld [vmem:[#allocation7 + $0xc8] sm:$0xff]
    %v1086 = vld [vmem:[#allocation7 + $0xd0] sm:$0xff]
    %v1087 = vld [vmem:[#allocation7 + $0xd8] sm:$0xff]
    %v1088 = vld [vmem:[#allocation7 + $0xe0] sm:$0xff]
    %v1089 = vld [vmem:[#allocation7 + $0xe8] sm:$0xff]
    %v1090 = vld [vmem:[#allocation7 + $0xf0] sm:$0xff]
    %v1091 = vld [vmem:[#allocation7 + $0xf8] sm:$0xff]
    %v1092 = vld [vmem:[#allocation7 + $0x100] sm:$0xff]
    %v1093 = vld [vmem:[#allocation7 + $0x108] sm:$0xff]
    %v1094 = vld [vmem:[#allocation7 + $0x110] sm:$0xff]
    %v1095 = vld [vmem:[#allocation7 + $0x118] sm:$0xff]
    %v1096 = vld [vmem:[#allocation7 + $0x120] sm:$0xff]
    %v1097 = vld [vmem:[#allocation7 + $0x128] sm:$0xff]
    %v1098 = vld [vmem:[#allocation7 + $0x130] sm:$0xff]
    %v1099 = vld [vmem:[#allocation7 + $0x138] sm:$0xff]
    %v1100 = vld [vmem:[#allocation7 + $0x140] sm:$0xff]
    %v1101 = vld [vmem:[#allocation7 + $0x148] sm:$0xff]
    %v1102 = vld [vmem:[#allocation7 + $0x150] sm:$0xff]
    %v1103 = vld [vmem:[#allocation7 + $0x158] sm:$0xff]
    %v1104 = vld [vmem:[#allocation7 + $0x160] sm:$0xff]
    %v1105 = vld [vmem:[#allocation7 + $0x168] sm:$0xff]
    %v1106 = vld [vmem:[#allocation7 + $0x170] sm:$0xff]
    %v1107 = vld [vmem:[#allocation7 + $0x178] sm:$0xff]
    %1108 = vmatprep.subr.mxu0 %v1061
    %1109 = vmatpush1.msra.mxu0 %v1060
    %1110 = vmatprep.subr.mxu0 %v1064
    %1111 = vmatpush1.msra.mxu0 %v1063
    %1112 = vmatprep.subr.mxu0 %v1067
    %1113 = vmatpush1.msra.mxu0 %v1066
    %1114 = vmatprep.subr.mxu0 %v1070
    %1115 = vmatpush1.msra.mxu0 %v1069
    %1116 = vmatprep.subr.mxu0 %v1073
    %1117 = vmatpush1.msra.mxu0 %v1072
    %1118 = vmatprep.subr.mxu0 %v1076
    %1119 = vmatpush1.msra.mxu0 %v1075
    %1120 = vmatprep.subr.mxu0 %v1079
    %1121 = vmatpush1.msra.mxu0 %v1078
    %1122 = vmatprep.subr.mxu0 %v1082
    %1123 = vmatpush1.msra.mxu0 %v1081
    %1124 = vmatprep.subr.mxu0 %v1085
    %1125 = vmatpush1.msra.mxu0 %v1084
    %1126 = vmatprep.subr.mxu0 %v1088
    %1127 = vmatpush1.msra.mxu0 %v1087
    %1128 = vmatprep.subr.mxu0 %v1091
    %1129 = vmatpush1.msra.mxu0 %v1090
    %1130 = vmatprep.subr.mxu0 %v1094
    %1131 = vmatpush1.msra.mxu0 %v1093
    %1132 = vmatprep.subr.mxu0 %v1097
    %1133 = vmatpush1.msra.mxu0 %v1096
    %1134 = vmatprep.subr.mxu0 %v1100
    %1135 = vmatpush1.msra.mxu0 %v1099
    %1136 = vmatprep.subr.mxu0 %v1103
    %1137 = vmatpush1.msra.mxu0 %v1102
    %1138 = vmatprep.subr.mxu0 %v1106
    %1139 = vmatpush1.msra.mxu0 %v1105
    %1140 = vmatprep.subr.mxu0 0.0
    %1141 = vmatpush1.msra.mxu0 0.0
    %1142 = vmatprep.subr.mxu0 0.0
    %1143 = vmatpush1.msra.mxu0 0.0
    %1144 = vmatprep.subr.mxu0 0.0
    %1145 = vmatpush1.msra.mxu0 0.0
    %1146 = vmatprep.subr.mxu0 0.0
    %1147 = vmatpush1.msra.mxu0 0.0
    %1148 = vmatprep.subr.mxu0 0.0
    %1149 = vmatpush1.msra.mxu0 0.0
    %1150 = vmatprep.subr.mxu0 0.0
    %1151 = vmatpush1.msra.mxu0 0.0
    %1152 = vmatprep.subr.mxu0 0.0
    %1153 = vmatpush1.msra.mxu0 0.0
    %1154 = vmatprep.subr.mxu0 0.0
    %1155 = vmatpush1.msra.mxu0 0.0
    %1156 = vmatprep.subr.mxu0 0.0
    %1157 = vmatpush1.msra.mxu0 0.0
    %1158 = vmatprep.subr.mxu0 0.0
    %1159 = vmatpush1.msra.mxu0 0.0
    %1160 = vmatprep.subr.mxu0 0.0
    %1161 = vmatpush1.msra.mxu0 0.0
    %1162 = vmatprep.subr.mxu0 0.0
    %1163 = vmatpush1.msra.mxu0 0.0
    %1164 = vmatprep.subr.mxu0 0.0
    %1165 = vmatpush1.msra.mxu0 0.0
    %1166 = vmatprep.subr.mxu0 0.0
    %1167 = vmatpush1.msra.mxu0 0.0
    %1168 = vmatprep.subr.mxu0 0.0
    %1169 = vmatpush1.msra.mxu0 0.0
    %1170 = vmatprep.subr.mxu0 0.0
    %1171 = vmatpush1.msra.mxu0 0.0
    %1172 = vmatprep.mubr.f32.mxu0 0.0
    %1173 = vmatmul.mubr.f32.gmra.mrb[0].mxu0 %v1051
    %v1174 = vpop.f32.mrb[0].mxu0
    %v1175 = vadd.f32 0.0, %v1174
    %v1176 = vpop.f32.mrb[0].mxu0
    %v1177 = vadd.f32 0.0, %v1176
    %1178 = vdwg.mxu0
    %1179 = vmatprep.subr.mxu0 0.0
    %1180 = vmatpush1.msra.mxu0 %v1062
    %1181 = vmatprep.subr.mxu0 0.0
    %1182 = vmatpush1.msra.mxu0 %v1065
    %1183 = vmatprep.subr.mxu0 0.0
    %1184 = vmatpush1.msra.mxu0 %v1068
    %1185 = vmatprep.subr.mxu0 0.0
    %1186 = vmatpush1.msra.mxu0 %v1071
    %1187 = vmatprep.subr.mxu0 0.0
    %1188 = vmatpush1.msra.mxu0 %v1074
    %1189 = vmatprep.subr.mxu0 0.0
    %1190 = vmatpush1.msra.mxu0 %v1077
    %1191 = vmatprep.subr.mxu0 0.0
    %1192 = vmatpush1.msra.mxu0 %v1080
    %1193 = vmatprep.subr.mxu0 0.0
    %1194 = vmatpush1.msra.mxu0 %v1083
    %1195 = vmatprep.subr.mxu0 0.0
    %1196 = vmatpush1.msra.mxu0 %v1086
    %1197 = vmatprep.subr.mxu0 0.0
    %1198 = vmatpush1.msra.mxu0 %v1089
    %1199 = vmatprep.subr.mxu0 0.0
    %1200 = vmatpush1.msra.mxu0 %v1092
    %1201 = vmatprep.subr.mxu0 0.0
    %1202 = vmatpush1.msra.mxu0 %v1095
    %1203 = vmatprep.subr.mxu0 0.0
    %1204 = vmatpush1.msra.mxu0 %v1098
    %1205 = vmatprep.subr.mxu0 0.0
    %1206 = vmatpush1.msra.mxu0 %v1101
    %1207 = vmatprep.subr.mxu0 0.0
    %1208 = vmatpush1.msra.mxu0 %v1104
    %1209 = vmatprep.subr.mxu0 0.0
    %1210 = vmatpush1.msra.mxu0 %v1107
    %1211 = vmatprep.subr.mxu0 0.0
    %1212 = vmatpush1.msra.mxu0 0.0
    %1213 = vmatprep.subr.mxu0 0.0
    %1214 = vmatpush1.msra.mxu0 0.0
    %1215 = vmatprep.subr.mxu0 0.0
    %1216 = vmatpush1.msra.mxu0 0.0
    %1217 = vmatprep.subr.mxu0 0.0
    %1218 = vmatpush1.msra.mxu0 0.0
    %1219 = vmatprep.subr.mxu0 0.0
    %1220 = vmatpush1.msra.mxu0 0.0
    %1221 = vmatprep.subr.mxu0 0.0
    %1222 = vmatpush1.msra.mxu0 0.0
    %1223 = vmatprep.subr.mxu0 0.0
    %1224 = vmatpush1.msra.mxu0 0.0
    %1225 = vmatprep.subr.mxu0 0.0
    %1226 = vmatpush1.msra.mxu0 0.0
    %1227 = vmatprep.subr.mxu0 0.0
    %1228 = vmatpush1.msra.mxu0 0.0
    %1229 = vmatprep.subr.mxu0 0.0
    %1230 = vmatpush1.msra.mxu0 0.0
    %1231 = vmatprep.subr.mxu0 0.0
    %1232 = vmatpush1.msra.mxu0 0.0
    %1233 = vmatprep.subr.mxu0 0.0
    %1234 = vmatpush1.msra.mxu0 0.0
    %1235 = vmatprep.subr.mxu0 0.0
    %1236 = vmatpush1.msra.mxu0 0.0
    %1237 = vmatprep.subr.mxu0 0.0
    %1238 = vmatpush1.msra.mxu0 0.0
    %1239 = vmatprep.subr.mxu0 0.0
    %1240 = vmatpush1.msra.mxu0 0.0
    %1241 = vmatprep.subr.mxu0 0.0
    %1242 = vmatpush1.msra.mxu0 0.0
    %1243 = vmatprep.mubr.f32.mxu0 0.0
    %1244 = vmatmul.mubr.f32.gmra.mrb[0].mxu0 %v1051
    %v1245 = vpop.f32.mrb[0].mxu0
    %v1246 = vadd.f32 0.0, %v1245
    %v1247 = vpop.f32.mrb[0].mxu0
    %1248 = vdwg.mxu0
    %v1249 = vadd.f32 %v1057, %v1175
    %v1250 = vxor.u32 %v1249, 2147483648
    %v1251 = vmul.f32 %v1250, 1.442695
    %v1252 = vpow.pop %v1251
    %v1253 = vadd.f32 %v1252, 1.0
    %v1254 = vrcp.pop %v1253
    %v1255 = vmul.f32 1.0, %v1254
    %v1256 = vadd.f32 %v1058, %v1177
    %v1257 = vxor.u32 %v1256, 2147483648
    %v1258 = vmul.f32 %v1257, 1.442695
    %v1259 = vpow.pop %v1258
    %v1260 = vadd.f32 %v1259, 1.0
    %v1261 = vrcp.pop %v1260
    %v1262 = vmul.f32 1.0, %v1261
    %v1263 = vadd.f32 %v1246, %v614
    %v1264 = vmul.f32 %v1255, %v1263
    %v1265 = vadd.f32 %v1059, %v1264
    %v1266 = vtanh.pop %v1265
    %v1267 = vsub.f32 1.0, %v1262
    %v1268 = vmul.f32 %v1267, %v1266
    %v1269 = vmul.f32 %v1262, %v1051
    %v1270 = vadd.f32 %v1268, %v1269
    %s1271 = scalar_lea.vmem [#allocation2], 16
    %1272 = vst [vmem:[%s1271] sm:$0xff] %v1270
    %s1273 = smul.u32 3, 3
    %s1274 = smul.addr %s1273, 8
    %s1275 = scalar_lea.vmem [#allocation3], %s1274
    %v1276 = vld [vmem:[%s1275] sm:$0xff]
    %v1277 = vld [vmem:[%s1275 + $0x8] sm:$0xff]
    %v1278 = vld [vmem:[%s1275 + $0x10] sm:$0xff]
    %v1279 = vld [vmem:[#allocation7] sm:$0xff]
    %v1280 = vld [vmem:[#allocation7 + $0x8] sm:$0xff]
    %v1281 = vld [vmem:[#allocation7 + $0x10] sm:$0xff]
    %v1282 = vld [vmem:[#allocation7 + $0x18] sm:$0xff]
    %v1283 = vld [vmem:[#allocation7 + $0x20] sm:$0xff]
    %v1284 = vld [vmem:[#allocation7 + $0x28] sm:$0xff]
    %v1285 = vld [vmem:[#allocation7 + $0x30] sm:$0xff]
    %v1286 = vld [vmem:[#allocation7 + $0x38] sm:$0xff]
    %v1287 = vld [vmem:[#allocation7 + $0x40] sm:$0xff]
    %v1288 = vld [vmem:[#allocation7 + $0x48] sm:$0xff]
    %v1289 = vld [vmem:[#allocation7 + $0x50] sm:$0xff]
    %v1290 = vld [vmem:[#allocation7 + $0x58] sm:$0xff]
    %v1291 = vld [vmem:[#allocation7 + $0x60] sm:$0xff]
    %v1292 = vld [vmem:[#allocation7 + $0x68] sm:$0xff]
    %v1293 = vld [vmem:[#allocation7 + $0x70] sm:$0xff]
    %v1294 = vld [vmem:[#allocation7 + $0x78] sm:$0xff]
    %v1295 = vld [vmem:[#allocation7 + $0x80] sm:$0xff]
    %v1296 = vld [vmem:[#allocation7 + $0x88] sm:$0xff]
    %v1297 = vld [vmem:[#allocation7 + $0x90] sm:$0xff]
    %v1298 = vld [vmem:[#allocation7 + $0x98] sm:$0xff]
    %v1299 = vld [vmem:[#allocation7 + $0xa0] sm:$0xff]
    %v1300 = vld [vmem:[#allocation7 + $0xa8] sm:$0xff]
    %v1301 = vld [vmem:[#allocation7 + $0xb0] sm:$0xff]
    %v1302 = vld [vmem:[#allocation7 + $0xb8] sm:$0xff]
    %v1303 = vld [vmem:[#allocation7 + $0xc0] sm:$0xff]
    %v1304 = vld [vmem:[#allocation7 + $0xc8] sm:$0xff]
    %v1305 = vld [vmem:[#allocation7 + $0xd0] sm:$0xff]
    %v1306 = vld [vmem:[#allocation7 + $0xd8] sm:$0xff]
    %v1307 = vld [vmem:[#allocation7 + $0xe0] sm:$0xff]
    %v1308 = vld [vmem:[#allocation7 + $0xe8] sm:$0xff]
    %v1309 = vld [vmem:[#allocation7 + $0xf0] sm:$0xff]
    %v1310 = vld [vmem:[#allocation7 + $0xf8] sm:$0xff]
    %v1311 = vld [vmem:[#allocation7 + $0x100] sm:$0xff]
    %v1312 = vld [vmem:[#allocation7 + $0x108] sm:$0xff]
    %v1313 = vld [vmem:[#allocation7 + $0x110] sm:$0xff]
    %v1314 = vld [vmem:[#allocation7 + $0x118] sm:$0xff]
    %v1315 = vld [vmem:[#allocation7 + $0x120] sm:$0xff]
    %v1316 = vld [vmem:[#allocation7 + $0x128] sm:$0xff]
    %v1317 = vld [vmem:[#allocation7 + $0x130] sm:$0xff]
    %v1318 = vld [vmem:[#allocation7 + $0x138] sm:$0xff]
    %v1319 = vld [vmem:[#allocation7 + $0x140] sm:$0xff]
    %v1320 = vld [vmem:[#allocation7 + $0x148] sm:$0xff]
    %v1321 = vld [vmem:[#allocation7 + $0x150] sm:$0xff]
    %v1322 = vld [vmem:[#allocation7 + $0x158] sm:$0xff]
    %v1323 = vld [vmem:[#allocation7 + $0x160] sm:$0xff]
    %v1324 = vld [vmem:[#allocation7 + $0x168] sm:$0xff]
    %v1325 = vld [vmem:[#allocation7 + $0x170] sm:$0xff]
    %v1326 = vld [vmem:[#allocation7 + $0x178] sm:$0xff]
    %1327 = vmatprep.subr.mxu0 %v1280
    %1328 = vmatpush1.msra.mxu0 %v1279
    %1329 = vmatprep.subr.mxu0 %v1283
    %1330 = vmatpush1.msra.mxu0 %v1282
    %1331 = vmatprep.subr.mxu0 %v1286
    %1332 = vmatpush1.msra.mxu0 %v1285
    %1333 = vmatprep.subr.mxu0 %v1289
    %1334 = vmatpush1.msra.mxu0 %v1288
    %1335 = vmatprep.subr.mxu0 %v1292
    %1336 = vmatpush1.msra.mxu0 %v1291
    %1337 = vmatprep.subr.mxu0 %v1295
    %1338 = vmatpush1.msra.mxu0 %v1294
    %1339 = vmatprep.subr.mxu0 %v1298
    %1340 = vmatpush1.msra.mxu0 %v1297
    %1341 = vmatprep.subr.mxu0 %v1301
    %1342 = vmatpush1.msra.mxu0 %v1300
    %1343 = vmatprep.subr.mxu0 %v1304
    %1344 = vmatpush1.msra.mxu0 %v1303
    %1345 = vmatprep.subr.mxu0 %v1307
    %1346 = vmatpush1.msra.mxu0 %v1306
    %1347 = vmatprep.subr.mxu0 %v1310
    %1348 = vmatpush1.msra.mxu0 %v1309
    %1349 = vmatprep.subr.mxu0 %v1313
    %1350 = vmatpush1.msra.mxu0 %v1312
    %1351 = vmatprep.subr.mxu0 %v1316
    %1352 = vmatpush1.msra.mxu0 %v1315
    %1353 = vmatprep.subr.mxu0 %v1319
    %1354 = vmatpush1.msra.mxu0 %v1318
    %1355 = vmatprep.subr.mxu0 %v1322
    %1356 = vmatpush1.msra.mxu0 %v1321
    %1357 = vmatprep.subr.mxu0 %v1325
    %1358 = vmatpush1.msra.mxu0 %v1324
    %1359 = vmatprep.subr.mxu0 0.0
    %1360 = vmatpush1.msra.mxu0 0.0
    %1361 = vmatprep.subr.mxu0 0.0
    %1362 = vmatpush1.msra.mxu0 0.0
    %1363 = vmatprep.subr.mxu0 0.0
    %1364 = vmatpush1.msra.mxu0 0.0
    %1365 = vmatprep.subr.mxu0 0.0
    %1366 = vmatpush1.msra.mxu0 0.0
    %1367 = vmatprep.subr.mxu0 0.0
    %1368 = vmatpush1.msra.mxu0 0.0
    %1369 = vmatprep.subr.mxu0 0.0
    %1370 = vmatpush1.msra.mxu0 0.0
    %1371 = vmatprep.subr.mxu0 0.0
    %1372 = vmatpush1.msra.mxu0 0.0
    %1373 = vmatprep.subr.mxu0 0.0
    %1374 = vmatpush1.msra.mxu0 0.0
    %1375 = vmatprep.subr.mxu0 0.0
    %1376 = vmatpush1.msra.mxu0 0.0
    %1377 = vmatprep.subr.mxu0 0.0
    %1378 = vmatpush1.msra.mxu0 0.0
    %1379 = vmatprep.subr.mxu0 0.0
    %1380 = vmatpush1.msra.mxu0 0.0
    %1381 = vmatprep.subr.mxu0 0.0
    %1382 = vmatpush1.msra.mxu0 0.0
    %1383 = vmatprep.subr.mxu0 0.0
    %1384 = vmatpush1.msra.mxu0 0.0
    %1385 = vmatprep.subr.mxu0 0.0
    %1386 = vmatpush1.msra.mxu0 0.0
    %1387 = vmatprep.subr.mxu0 0.0
    %1388 = vmatpush1.msra.mxu0 0.0
    %1389 = vmatprep.subr.mxu0 0.0
    %1390 = vmatpush1.msra.mxu0 0.0
    %1391 = vmatprep.mubr.f32.mxu0 0.0
    %1392 = vmatmul.mubr.f32.gmra.mrb[0].mxu0 %v1270
    %v1393 = vpop.f32.mrb[0].mxu0
    %v1394 = vadd.f32 0.0, %v1393
    %v1395 = vpop.f32.mrb[0].mxu0
    %v1396 = vadd.f32 0.0, %v1395
    %1397 = vdwg.mxu0
    %1398 = vmatprep.subr.mxu0 0.0
    %1399 = vmatpush1.msra.mxu0 %v1281
    %1400 = vmatprep.subr.mxu0 0.0
    %1401 = vmatpush1.msra.mxu0 %v1284
    %1402 = vmatprep.subr.mxu0 0.0
    %1403 = vmatpush1.msra.mxu0 %v1287
    %1404 = vmatprep.subr.mxu0 0.0
    %1405 = vmatpush1.msra.mxu0 %v1290
    %1406 = vmatprep.subr.mxu0 0.0
    %1407 = vmatpush1.msra.mxu0 %v1293
    %1408 = vmatprep.subr.mxu0 0.0
    %1409 = vmatpush1.msra.mxu0 %v1296
    %1410 = vmatprep.subr.mxu0 0.0
    %1411 = vmatpush1.msra.mxu0 %v1299
    %1412 = vmatprep.subr.mxu0 0.0
    %1413 = vmatpush1.msra.mxu0 %v1302
    %1414 = vmatprep.subr.mxu0 0.0
    %1415 = vmatpush1.msra.mxu0 %v1305
    %1416 = vmatprep.subr.mxu0 0.0
    %1417 = vmatpush1.msra.mxu0 %v1308
    %1418 = vmatprep.subr.mxu0 0.0
    %1419 = vmatpush1.msra.mxu0 %v1311
    %1420 = vmatprep.subr.mxu0 0.0
    %1421 = vmatpush1.msra.mxu0 %v1314
    %1422 = vmatprep.subr.mxu0 0.0
    %1423 = vmatpush1.msra.mxu0 %v1317
    %1424 = vmatprep.subr.mxu0 0.0
    %1425 = vmatpush1.msra.mxu0 %v1320
    %1426 = vmatprep.subr.mxu0 0.0
    %1427 = vmatpush1.msra.mxu0 %v1323
    %1428 = vmatprep.subr.mxu0 0.0
    %1429 = vmatpush1.msra.mxu0 %v1326
    %1430 = vmatprep.subr.mxu0 0.0
    %1431 = vmatpush1.msra.mxu0 0.0
    %1432 = vmatprep.subr.mxu0 0.0
    %1433 = vmatpush1.msra.mxu0 0.0
    %1434 = vmatprep.subr.mxu0 0.0
    %1435 = vmatpush1.msra.mxu0 0.0
    %1436 = vmatprep.subr.mxu0 0.0
    %1437 = vmatpush1.msra.mxu0 0.0
    %1438 = vmatprep.subr.mxu0 0.0
    %1439 = vmatpush1.msra.mxu0 0.0
    %1440 = vmatprep.subr.mxu0 0.0
    %1441 = vmatpush1.msra.mxu0 0.0
    %1442 = vmatprep.subr.mxu0 0.0
    %1443 = vmatpush1.msra.mxu0 0.0
    %1444 = vmatprep.subr.mxu0 0.0
    %1445 = vmatpush1.msra.mxu0 0.0
    %1446 = vmatprep.subr.mxu0 0.0
    %1447 = vmatpush1.msra.mxu0 0.0
    %1448 = vmatprep.subr.mxu0 0.0
    %1449 = vmatpush1.msra.mxu0 0.0
    %1450 = vmatprep.subr.mxu0 0.0
    %1451 = vmatpush1.msra.mxu0 0.0
    %1452 = vmatprep.subr.mxu0 0.0
    %1453 = vmatpush1.msra.mxu0 0.0
    %1454 = vmatprep.subr.mxu0 0.0
    %1455 = vmatpush1.msra.mxu0 0.0
    %1456 = vmatprep.subr.mxu0 0.0
    %1457 = vmatpush1.msra.mxu0 0.0
    %1458 = vmatprep.subr.mxu0 0.0
    %1459 = vmatpush1.msra.mxu0 0.0
    %1460 = vmatprep.subr.mxu0 0.0
    %1461 = vmatpush1.msra.mxu0 0.0
    %1462 = vmatprep.mubr.f32.mxu0 0.0
    %1463 = vmatmul.mubr.f32.gmra.mrb[0].mxu0 %v1270
    %v1464 = vpop.f32.mrb[0].mxu0
    %v1465 = vadd.f32 0.0, %v1464
    %v1466 = vpop.f32.mrb[0].mxu0
    %1467 = vdwg.mxu0
    %v1468 = vadd.f32 %v1276, %v1394
    %v1469 = vxor.u32 %v1468, 2147483648
    %v1470 = vmul.f32 %v1469, 1.442695
    %v1471 = vpow.pop %v1470
    %v1472 = vadd.f32 %v1471, 1.0
    %v1473 = vrcp.pop %v1472
    %v1474 = vmul.f32 1.0, %v1473
    %v1475 = vadd.f32 %v1277, %v1396
    %v1476 = vxor.u32 %v1475, 2147483648
    %v1477 = vmul.f32 %v1476, 1.442695
    %v1478 = vpow.pop %v1477
    %v1479 = vadd.f32 %v1478, 1.0
    %v1480 = vrcp.pop %v1479
    %v1481 = vmul.f32 1.0, %v1480
    %v1482 = vadd.f32 %v1465, %v614
    %v1483 = vmul.f32 %v1474, %v1482
    %v1484 = vadd.f32 %v1278, %v1483
    %v1485 = vtanh.pop %v1484
    %v1486 = vsub.f32 1.0, %v1481
    %v1487 = vmul.f32 %v1486, %v1485
    %v1488 = vmul.f32 %v1481, %v1270
    %v1489 = vadd.f32 %v1487, %v1488
    %s1490 = scalar_lea.vmem [#allocation2], 24
    %1491 = vst [vmem:[%s1490] sm:$0xff] %v1489
    %s1492 = smul.u32 4, 3
    %s1493 = smul.addr %s1492, 8
    %s1494 = scalar_lea.vmem [#allocation3], %s1493
    %v1495 = vld [vmem:[%s1494] sm:$0xff]
    %v1496 = vld [vmem:[%s1494 + $0x8] sm:$0xff]
    %v1497 = vld [vmem:[%s1494 + $0x10] sm:$0xff]
    %v1498 = vld [vmem:[#allocation7] sm:$0xff]
    %v1499 = vld [vmem:[#allocation7 + $0x8] sm:$0xff]
    %v1500 = vld [vmem:[#allocation7 + $0x10] sm:$0xff]
    %v1501 = vld [vmem:[#allocation7 + $0x18] sm:$0xff]
    %v1502 = vld [vmem:[#allocation7 + $0x20] sm:$0xff]
    %v1503 = vld [vmem:[#allocation7 + $0x28] sm:$0xff]
    %v1504 = vld [vmem:[#allocation7 + $0x30] sm:$0xff]
    %v1505 = vld [vmem:[#allocation7 + $0x38] sm:$0xff]
    %v1506 = vld [vmem:[#allocation7 + $0x40] sm:$0xff]
    %v1507 = vld [vmem:[#allocation7 + $0x48] sm:$0xff]
    %v1508 = vld [vmem:[#allocation7 + $0x50] sm:$0xff]
    %v1509 = vld [vmem:[#allocation7 + $0x58] sm:$0xff]
    %v1510 = vld [vmem:[#allocation7 + $0x60] sm:$0xff]
    %v1511 = vld [vmem:[#allocation7 + $0x68] sm:$0xff]
    %v1512 = vld [vmem:[#allocation7 + $0x70] sm:$0xff]
    %v1513 = vld [vmem:[#allocation7 + $0x78] sm:$0xff]
    %v1514 = vld [vmem:[#allocation7 + $0x80] sm:$0xff]
    %v1515 = vld [vmem:[#allocation7 + $0x88] sm:$0xff]
    %v1516 = vld [vmem:[#allocation7 + $0x90] sm:$0xff]
    %v1517 = vld [vmem:[#allocation7 + $0x98] sm:$0xff]
    %v1518 = vld [vmem:[#allocation7 + $0xa0] sm:$0xff]
    %v1519 = vld [vmem:[#allocation7 + $0xa8] sm:$0xff]
    %v1520 = vld [vmem:[#allocation7 + $0xb0] sm:$0xff]
    %v1521 = vld [vmem:[#allocation7 + $0xb8] sm:$0xff]
    %v1522 = vld [vmem:[#allocation7 + $0xc0] sm:$0xff]
    %v1523 = vld [vmem:[#allocation7 + $0xc8] sm:$0xff]
    %v1524 = vld [vmem:[#allocation7 + $0xd0] sm:$0xff]
    %v1525 = vld [vmem:[#allocation7 + $0xd8] sm:$0xff]
    %v1526 = vld [vmem:[#allocation7 + $0xe0] sm:$0xff]
    %v1527 = vld [vmem:[#allocation7 + $0xe8] sm:$0xff]
    %v1528 = vld [vmem:[#allocation7 + $0xf0] sm:$0xff]
    %v1529 = vld [vmem:[#allocation7 + $0xf8] sm:$0xff]
    %v1530 = vld [vmem:[#allocation7 + $0x100] sm:$0xff]
    %v1531 = vld [vmem:[#allocation7 + $0x108] sm:$0xff]
    %v1532 = vld [vmem:[#allocation7 + $0x110] sm:$0xff]
    %v1533 = vld [vmem:[#allocation7 + $0x118] sm:$0xff]
    %v1534 = vld [vmem:[#allocation7 + $0x120] sm:$0xff]
    %v1535 = vld [vmem:[#allocation7 + $0x128] sm:$0xff]
    %v1536 = vld [vmem:[#allocation7 + $0x130] sm:$0xff]
    %v1537 = vld [vmem:[#allocation7 + $0x138] sm:$0xff]
    %v1538 = vld [vmem:[#allocation7 + $0x140] sm:$0xff]
    %v1539 = vld [vmem:[#allocation7 + $0x148] sm:$0xff]
    %v1540 = vld [vmem:[#allocation7 + $0x150] sm:$0xff]
    %v1541 = vld [vmem:[#allocation7 + $0x158] sm:$0xff]
    %v1542 = vld [vmem:[#allocation7 + $0x160] sm:$0xff]
    %v1543 = vld [vmem:[#allocation7 + $0x168] sm:$0xff]
    %v1544 = vld [vmem:[#allocation7 + $0x170] sm:$0xff]
    %v1545 = vld [vmem:[#allocation7 + $0x178] sm:$0xff]
    %1546 = vmatprep.subr.mxu0 %v1499
    %1547 = vmatpush1.msra.mxu0 %v1498
    %1548 = vmatprep.subr.mxu0 %v1502
    %1549 = vmatpush1.msra.mxu0 %v1501
    %1550 = vmatprep.subr.mxu0 %v1505
    %1551 = vmatpush1.msra.mxu0 %v1504
    %1552 = vmatprep.subr.mxu0 %v1508
    %1553 = vmatpush1.msra.mxu0 %v1507
    %1554 = vmatprep.subr.mxu0 %v1511
    %1555 = vmatpush1.msra.mxu0 %v1510
    %1556 = vmatprep.subr.mxu0 %v1514
    %1557 = vmatpush1.msra.mxu0 %v1513
    %1558 = vmatprep.subr.mxu0 %v1517
    %1559 = vmatpush1.msra.mxu0 %v1516
    %1560 = vmatprep.subr.mxu0 %v1520
    %1561 = vmatpush1.msra.mxu0 %v1519
    %1562 = vmatprep.subr.mxu0 %v1523
    %1563 = vmatpush1.msra.mxu0 %v1522
    %1564 = vmatprep.subr.mxu0 %v1526
    %1565 = vmatpush1.msra.mxu0 %v1525
    %1566 = vmatprep.subr.mxu0 %v1529
    %1567 = vmatpush1.msra.mxu0 %v1528
    %1568 = vmatprep.subr.mxu0 %v1532
    %1569 = vmatpush1.msra.mxu0 %v1531
    %1570 = vmatprep.subr.mxu0 %v1535
    %1571 = vmatpush1.msra.mxu0 %v1534
    %1572 = vmatprep.subr.mxu0 %v1538
    %1573 = vmatpush1.msra.mxu0 %v1537
    %1574 = vmatprep.subr.mxu0 %v1541
    %1575 = vmatpush1.msra.mxu0 %v1540
    %1576 = vmatprep.subr.mxu0 %v1544
    %1577 = vmatpush1.msra.mxu0 %v1543
    %1578 = vmatprep.subr.mxu0 0.0
    %1579 = vmatpush1.msra.mxu0 0.0
    %1580 = vmatprep.subr.mxu0 0.0
    %1581 = vmatpush1.msra.mxu0 0.0
    %1582 = vmatprep.subr.mxu0 0.0
    %1583 = vmatpush1.msra.mxu0 0.0
    %1584 = vmatprep.subr.mxu0 0.0
    %1585 = vmatpush1.msra.mxu0 0.0
    %1586 = vmatprep.subr.mxu0 0.0
    %1587 = vmatpush1.msra.mxu0 0.0
    %1588 = vmatprep.subr.mxu0 0.0
    %1589 = vmatpush1.msra.mxu0 0.0
    %1590 = vmatprep.subr.mxu0 0.0
    %1591 = vmatpush1.msra.mxu0 0.0
    %1592 = vmatprep.subr.mxu0 0.0
    %1593 = vmatpush1.msra.mxu0 0.0
    %1594 = vmatprep.subr.mxu0 0.0
    %1595 = vmatpush1.msra.mxu0 0.0
    %1596 = vmatprep.subr.mxu0 0.0
    %1597 = vmatpush1.msra.mxu0 0.0
    %1598 = vmatprep.subr.mxu0 0.0
    %1599 = vmatpush1.msra.mxu0 0.0
    %1600 = vmatprep.subr.mxu0 0.0
    %1601 = vmatpush1.msra.mxu0 0.0
    %1602 = vmatprep.subr.mxu0 0.0
    %1603 = vmatpush1.msra.mxu0 0.0
    %1604 = vmatprep.subr.mxu0 0.0
    %1605 = vmatpush1.msra.mxu0 0.0
    %1606 = vmatprep.subr.mxu0 0.0
    %1607 = vmatpush1.msra.mxu0 0.0
    %1608 = vmatprep.subr.mxu0 0.0
    %1609 = vmatpush1.msra.mxu0 0.0
    %1610 = vmatprep.mubr.f32.mxu0 0.0
    %1611 = vmatmul.mubr.f32.gmra.mrb[0].mxu0 %v1489
    %v1612 = vpop.f32.mrb[0].mxu0
    %v1613 = vadd.f32 0.0, %v1612
    %v1614 = vpop.f32.mrb[0].mxu0
    %v1615 = vadd.f32 0.0, %v1614
    %1616 = vdwg.mxu0
    %1617 = vmatprep.subr.mxu0 0.0
    %1618 = vmatpush1.msra.mxu0 %v1500
    %1619 = vmatprep.subr.mxu0 0.0
    %1620 = vmatpush1.msra.mxu0 %v1503
    %1621 = vmatprep.subr.mxu0 0.0
    %1622 = vmatpush1.msra.mxu0 %v1506
    %1623 = vmatprep.subr.mxu0 0.0
    %1624 = vmatpush1.msra.mxu0 %v1509
    %1625 = vmatprep.subr.mxu0 0.0
    %1626 = vmatpush1.msra.mxu0 %v1512
    %1627 = vmatprep.subr.mxu0 0.0
    %1628 = vmatpush1.msra.mxu0 %v1515
    %1629 = vmatprep.subr.mxu0 0.0
    %1630 = vmatpush1.msra.mxu0 %v1518
    %1631 = vmatprep.subr.mxu0 0.0
    %1632 = vmatpush1.msra.mxu0 %v1521
    %1633 = vmatprep.subr.mxu0 0.0
    %1634 = vmatpush1.msra.mxu0 %v1524
    %1635 = vmatprep.subr.mxu0 0.0
    %1636 = vmatpush1.msra.mxu0 %v1527
    %1637 = vmatprep.subr.mxu0 0.0
    %1638 = vmatpush1.msra.mxu0 %v1530
    %1639 = vmatprep.subr.mxu0 0.0
    %1640 = vmatpush1.msra.mxu0 %v1533
    %1641 = vmatprep.subr.mxu0 0.0
    %1642 = vmatpush1.msra.mxu0 %v1536
    %1643 = vmatprep.subr.mxu0 0.0
    %1644 = vmatpush1.msra.mxu0 %v1539
    %1645 = vmatprep.subr.mxu0 0.0
    %1646 = vmatpush1.msra.mxu0 %v1542
    %1647 = vmatprep.subr.mxu0 0.0
    %1648 = vmatpush1.msra.mxu0 %v1545
    %1649 = vmatprep.subr.mxu0 0.0
    %1650 = vmatpush1.msra.mxu0 0.0
    %1651 = vmatprep.subr.mxu0 0.0
    %1652 = vmatpush1.msra.mxu0 0.0
    %1653 = vmatprep.subr.mxu0 0.0
    %1654 = vmatpush1.msra.mxu0 0.0
    %1655 = vmatprep.subr.mxu0 0.0
    %1656 = vmatpush1.msra.mxu0 0.0
    %1657 = vmatprep.subr.mxu0 0.0
    %1658 = vmatpush1.msra.mxu0 0.0
    %1659 = vmatprep.subr.mxu0 0.0
    %1660 = vmatpush1.msra.mxu0 0.0
    %1661 = vmatprep.subr.mxu0 0.0
    %1662 = vmatpush1.msra.mxu0 0.0
    %1663 = vmatprep.subr.mxu0 0.0
    %1664 = vmatpush1.msra.mxu0 0.0
    %1665 = vmatprep.subr.mxu0 0.0
    %1666 = vmatpush1.msra.mxu0 0.0
    %1667 = vmatprep.subr.mxu0 0.0
    %1668 = vmatpush1.msra.mxu0 0.0
    %1669 = vmatprep.subr.mxu0 0.0
    %1670 = vmatpush1.msra.mxu0 0.0
    %1671 = vmatprep.subr.mxu0 0.0
    %1672 = vmatpush1.msra.mxu0 0.0
    %1673 = vmatprep.subr.mxu0 0.0
    %1674 = vmatpush1.msra.mxu0 0.0
    %1675 = vmatprep.subr.mxu0 0.0
    %1676 = vmatpush1.msra.mxu0 0.0
    %1677 = vmatprep.subr.mxu0 0.0
    %1678 = vmatpush1.msra.mxu0 0.0
    %1679 = vmatprep.subr.mxu0 0.0
    %1680 = vmatpush1.msra.mxu0 0.0
    %1681 = vmatprep.mubr.f32.mxu0 0.0
    %1682 = vmatmul.mubr.f32.gmra.mrb[0].mxu0 %v1489
    %v1683 = vpop.f32.mrb[0].mxu0
    %v1684 = vadd.f32 0.0, %v1683
    %v1685 = vpop.f32.mrb[0].mxu0
    %1686 = vdwg.mxu0
    %v1687 = vadd.f32 %v1495, %v1613
    %v1688 = vxor.u32 %v1687, 2147483648
    %v1689 = vmul.f32 %v1688, 1.442695
    %v1690 = vpow.pop %v1689
    %v1691 = vadd.f32 %v1690, 1.0
    %v1692 = vrcp.pop %v1691
    %v1693 = vmul.f32 1.0, %v1692
    %v1694 = vadd.f32 %v1496, %v1615
    %v1695 = vxor.u32 %v1694, 2147483648
    %v1696 = vmul.f32 %v1695, 1.442695
    %v1697 = vpow.pop %v1696
    %v1698 = vadd.f32 %v1697, 1.0
    %v1699 = vrcp.pop %v1698
    %v1700 = vmul.f32 1.0, %v1699
    %v1701 = vadd.f32 %v1684, %v614
    %v1702 = vmul.f32 %v1693, %v1701
    %v1703 = vadd.f32 %v1497, %v1702
    %v1704 = vtanh.pop %v1703
    %v1705 = vsub.f32 1.0, %v1700
    %v1706 = vmul.f32 %v1705, %v1704
    %v1707 = vmul.f32 %v1700, %v1489
    %v1708 = vadd.f32 %v1706, %v1707
    %s1709 = scalar_lea.vmem [#allocation2], 32
    %1710 = vst [vmem:[%s1709] sm:$0xff] %v1708
    %s1711 = smul.u32 5, 3
    %s1712 = smul.addr %s1711, 8
    %s1713 = scalar_lea.vmem [#allocation3], %s1712
    %v1714 = vld [vmem:[%s1713] sm:$0xff]
    %v1715 = vld [vmem:[%s1713 + $0x8] sm:$0xff]
    %v1716 = vld [vmem:[%s1713 + $0x10] sm:$0xff]
    %v1717 = vld [vmem:[#allocation7] sm:$0xff]
    %v1718 = vld [vmem:[#allocation7 + $0x8] sm:$0xff]
    %v1719 = vld [vmem:[#allocation7 + $0x10] sm:$0xff]
    %v1720 = vld [vmem:[#allocation7 + $0x18] sm:$0xff]
    %v1721 = vld [vmem:[#allocation7 + $0x20] sm:$0xff]
    %v1722 = vld [vmem:[#allocation7 + $0x28] sm:$0xff]
    %v1723 = vld [vmem:[#allocation7 + $0x30] sm:$0xff]
    %v1724 = vld [vmem:[#allocation7 + $0x38] sm:$0xff]
    %v1725 = vld [vmem:[#allocation7 + $0x40] sm:$0xff]
    %v1726 = vld [vmem:[#allocation7 + $0x48] sm:$0xff]
    %v1727 = vld [vmem:[#allocation7 + $0x50] sm:$0xff]
    %v1728 = vld [vmem:[#allocation7 + $0x58] sm:$0xff]
    %v1729 = vld [vmem:[#allocation7 + $0x60] sm:$0xff]
    %v1730 = vld [vmem:[#allocation7 + $0x68] sm:$0xff]
    %v1731 = vld [vmem:[#allocation7 + $0x70] sm:$0xff]
    %v1732 = vld [vmem:[#allocation7 + $0x78] sm:$0xff]
    %v1733 = vld [vmem:[#allocation7 + $0x80] sm:$0xff]
    %v1734 = vld [vmem:[#allocation7 + $0x88] sm:$0xff]
    %v1735 = vld [vmem:[#allocation7 + $0x90] sm:$0xff]
    %v1736 = vld [vmem:[#allocation7 + $0x98] sm:$0xff]
    %v1737 = vld [vmem:[#allocation7 + $0xa0] sm:$0xff]
    %v1738 = vld [vmem:[#allocation7 + $0xa8] sm:$0xff]
    %v1739 = vld [vmem:[#allocation7 + $0xb0] sm:$0xff]
    %v1740 = vld [vmem:[#allocation7 + $0xb8] sm:$0xff]
    %v1741 = vld [vmem:[#allocation7 + $0xc0] sm:$0xff]
    %v1742 = vld [vmem:[#allocation7 + $0xc8] sm:$0xff]
    %v1743 = vld [vmem:[#allocation7 + $0xd0] sm:$0xff]
    %v1744 = vld [vmem:[#allocation7 + $0xd8] sm:$0xff]
    %v1745 = vld [vmem:[#allocation7 + $0xe0] sm:$0xff]
    %v1746 = vld [vmem:[#allocation7 + $0xe8] sm:$0xff]
    %v1747 = vld [vmem:[#allocation7 + $0xf0] sm:$0xff]
    %v1748 = vld [vmem:[#allocation7 + $0xf8] sm:$0xff]
    %v1749 = vld [vmem:[#allocation7 + $0x100] sm:$0xff]
    %v1750 = vld [vmem:[#allocation7 + $0x108] sm:$0xff]
    %v1751 = vld [vmem:[#allocation7 + $0x110] sm:$0xff]
    %v1752 = vld [vmem:[#allocation7 + $0x118] sm:$0xff]
    %v1753 = vld [vmem:[#allocation7 + $0x120] sm:$0xff]
    %v1754 = vld [vmem:[#allocation7 + $0x128] sm:$0xff]
    %v1755 = vld [vmem:[#allocation7 + $0x130] sm:$0xff]
    %v1756 = vld [vmem:[#allocation7 + $0x138] sm:$0xff]
    %v1757 = vld [vmem:[#allocation7 + $0x140] sm:$0xff]
    %v1758 = vld [vmem:[#allocation7 + $0x148] sm:$0xff]
    %v1759 = vld [vmem:[#allocation7 + $0x150] sm:$0xff]
    %v1760 = vld [vmem:[#allocation7 + $0x158] sm:$0xff]
    %v1761 = vld [vmem:[#allocation7 + $0x160] sm:$0xff]
    %v1762 = vld [vmem:[#allocation7 + $0x168] sm:$0xff]
    %v1763 = vld [vmem:[#allocation7 + $0x170] sm:$0xff]
    %v1764 = vld [vmem:[#allocation7 + $0x178] sm:$0xff]
    %1765 = vmatprep.subr.mxu0 %v1718
    %1766 = vmatpush1.msra.mxu0 %v1717
    %1767 = vmatprep.subr.mxu0 %v1721
    %1768 = vmatpush1.msra.mxu0 %v1720
    %1769 = vmatprep.subr.mxu0 %v1724
    %1770 = vmatpush1.msra.mxu0 %v1723
    %1771 = vmatprep.subr.mxu0 %v1727
    %1772 = vmatpush1.msra.mxu0 %v1726
    %1773 = vmatprep.subr.mxu0 %v1730
    %1774 = vmatpush1.msra.mxu0 %v1729
    %1775 = vmatprep.subr.mxu0 %v1733
    %1776 = vmatpush1.msra.mxu0 %v1732
    %1777 = vmatprep.subr.mxu0 %v1736
    %1778 = vmatpush1.msra.mxu0 %v1735
    %1779 = vmatprep.subr.mxu0 %v1739
    %1780 = vmatpush1.msra.mxu0 %v1738
    %1781 = vmatprep.subr.mxu0 %v1742
    %1782 = vmatpush1.msra.mxu0 %v1741
    %1783 = vmatprep.subr.mxu0 %v1745
    %1784 = vmatpush1.msra.mxu0 %v1744
    %1785 = vmatprep.subr.mxu0 %v1748
    %1786 = vmatpush1.msra.mxu0 %v1747
    %1787 = vmatprep.subr.mxu0 %v1751
    %1788 = vmatpush1.msra.mxu0 %v1750
    %1789 = vmatprep.subr.mxu0 %v1754
    %1790 = vmatpush1.msra.mxu0 %v1753
    %1791 = vmatprep.subr.mxu0 %v1757
    %1792 = vmatpush1.msra.mxu0 %v1756
    %1793 = vmatprep.subr.mxu0 %v1760
    %1794 = vmatpush1.msra.mxu0 %v1759
    %1795 = vmatprep.subr.mxu0 %v1763
    %1796 = vmatpush1.msra.mxu0 %v1762
    %1797 = vmatprep.subr.mxu0 0.0
    %1798 = vmatpush1.msra.mxu0 0.0
    %1799 = vmatprep.subr.mxu0 0.0
    %1800 = vmatpush1.msra.mxu0 0.0
    %1801 = vmatprep.subr.mxu0 0.0
    %1802 = vmatpush1.msra.mxu0 0.0
    %1803 = vmatprep.subr.mxu0 0.0
    %1804 = vmatpush1.msra.mxu0 0.0
    %1805 = vmatprep.subr.mxu0 0.0
    %1806 = vmatpush1.msra.mxu0 0.0
    %1807 = vmatprep.subr.mxu0 0.0
    %1808 = vmatpush1.msra.mxu0 0.0
    %1809 = vmatprep.subr.mxu0 0.0
    %1810 = vmatpush1.msra.mxu0 0.0
    %1811 = vmatprep.subr.mxu0 0.0
    %1812 = vmatpush1.msra.mxu0 0.0
    %1813 = vmatprep.subr.mxu0 0.0
    %1814 = vmatpush1.msra.mxu0 0.0
    %1815 = vmatprep.subr.mxu0 0.0
    %1816 = vmatpush1.msra.mxu0 0.0
    %1817 = vmatprep.subr.mxu0 0.0
    %1818 = vmatpush1.msra.mxu0 0.0
    %1819 = vmatprep.subr.mxu0 0.0
    %1820 = vmatpush1.msra.mxu0 0.0
    %1821 = vmatprep.subr.mxu0 0.0
    %1822 = vmatpush1.msra.mxu0 0.0
    %1823 = vmatprep.subr.mxu0 0.0
    %1824 = vmatpush1.msra.mxu0 0.0
    %1825 = vmatprep.subr.mxu0 0.0
    %1826 = vmatpush1.msra.mxu0 0.0
    %1827 = vmatprep.subr.mxu0 0.0
    %1828 = vmatpush1.msra.mxu0 0.0
    %1829 = vmatprep.mubr.f32.mxu0 0.0
    %1830 = vmatmul.mubr.f32.gmra.mrb[0].mxu0 %v1708
    %v1831 = vpop.f32.mrb[0].mxu0
    %v1832 = vadd.f32 0.0, %v1831
    %v1833 = vpop.f32.mrb[0].mxu0
    %v1834 = vadd.f32 0.0, %v1833
    %1835 = vdwg.mxu0
    %1836 = vmatprep.subr.mxu0 0.0
    %1837 = vmatpush1.msra.mxu0 %v1719
    %1838 = vmatprep.subr.mxu0 0.0
    %1839 = vmatpush1.msra.mxu0 %v1722
    %1840 = vmatprep.subr.mxu0 0.0
    %1841 = vmatpush1.msra.mxu0 %v1725
    %1842 = vmatprep.subr.mxu0 0.0
    %1843 = vmatpush1.msra.mxu0 %v1728
    %1844 = vmatprep.subr.mxu0 0.0
    %1845 = vmatpush1.msra.mxu0 %v1731
    %1846 = vmatprep.subr.mxu0 0.0
    %1847 = vmatpush1.msra.mxu0 %v1734
    %1848 = vmatprep.subr.mxu0 0.0
    %1849 = vmatpush1.msra.mxu0 %v1737
    %1850 = vmatprep.subr.mxu0 0.0
    %1851 = vmatpush1.msra.mxu0 %v1740
    %1852 = vmatprep.subr.mxu0 0.0
    %1853 = vmatpush1.msra.mxu0 %v1743
    %1854 = vmatprep.subr.mxu0 0.0
    %1855 = vmatpush1.msra.mxu0 %v1746
    %1856 = vmatprep.subr.mxu0 0.0
    %1857 = vmatpush1.msra.mxu0 %v1749
    %1858 = vmatprep.subr.mxu0 0.0
    %1859 = vmatpush1.msra.mxu0 %v1752
    %1860 = vmatprep.subr.mxu0 0.0
    %1861 = vmatpush1.msra.mxu0 %v1755
    %1862 = vmatprep.subr.mxu0 0.0
    %1863 = vmatpush1.msra.mxu0 %v1758
    %1864 = vmatprep.subr.mxu0 0.0
    %1865 = vmatpush1.msra.mxu0 %v1761
    %1866 = vmatprep.subr.mxu0 0.0
    %1867 = vmatpush1.msra.mxu0 %v1764
    %1868 = vmatprep.subr.mxu0 0.0
    %1869 = vmatpush1.msra.mxu0 0.0
    %1870 = vmatprep.subr.mxu0 0.0
    %1871 = vmatpush1.msra.mxu0 0.0
    %1872 = vmatprep.subr.mxu0 0.0
    %1873 = vmatpush1.msra.mxu0 0.0
    %1874 = vmatprep.subr.mxu0 0.0
    %1875 = vmatpush1.msra.mxu0 0.0
    %1876 = vmatprep.subr.mxu0 0.0
    %1877 = vmatpush1.msra.mxu0 0.0
    %1878 = vmatprep.subr.mxu0 0.0
    %1879 = vmatpush1.msra.mxu0 0.0
    %1880 = vmatprep.subr.mxu0 0.0
    %1881 = vmatpush1.msra.mxu0 0.0
    %1882 = vmatprep.subr.mxu0 0.0
    %1883 = vmatpush1.msra.mxu0 0.0
    %1884 = vmatprep.subr.mxu0 0.0
    %1885 = vmatpush1.msra.mxu0 0.0
    %1886 = vmatprep.subr.mxu0 0.0
    %1887 = vmatpush1.msra.mxu0 0.0
    %1888 = vmatprep.subr.mxu0 0.0
    %1889 = vmatpush1.msra.mxu0 0.0
    %1890 = vmatprep.subr.mxu0 0.0
    %1891 = vmatpush1.msra.mxu0 0.0
    %1892 = vmatprep.subr.mxu0 0.0
    %1893 = vmatpush1.msra.mxu0 0.0
    %1894 = vmatprep.subr.mxu0 0.0
    %1895 = vmatpush1.msra.mxu0 0.0
    %1896 = vmatprep.subr.mxu0 0.0
    %1897 = vmatpush1.msra.mxu0 0.0
    %1898 = vmatprep.subr.mxu0 0.0
    %1899 = vmatpush1.msra.mxu0 0.0
    %1900 = vmatprep.mubr.f32.mxu0 0.0
    %1901 = vmatmul.mubr.f32.gmra.mrb[0].mxu0 %v1708
    %v1902 = vpop.f32.mrb[0].mxu0
    %v1903 = vadd.f32 0.0, %v1902
    %v1904 = vpop.f32.mrb[0].mxu0
    %1905 = vdwg.mxu0
    %v1906 = vadd.f32 %v1714, %v1832
    %v1907 = vxor.u32 %v1906, 2147483648
    %v1908 = vmul.f32 %v1907, 1.442695
    %v1909 = vpow.pop %v1908
    %v1910 = vadd.f32 %v1909, 1.0
    %v1911 = vrcp.pop %v1910
    %v1912 = vmul.f32 1.0, %v1911
    %v1913 = vadd.f32 %v1715, %v1834
    %v1914 = vxor.u32 %v1913, 2147483648
    %v1915 = vmul.f32 %v1914, 1.442695
    %v1916 = vpow.pop %v1915
    %v1917 = vadd.f32 %v1916, 1.0
    %v1918 = vrcp.pop %v1917
    %v1919 = vmul.f32 1.0, %v1918
    %v1920 = vadd.f32 %v1903, %v614
    %v1921 = vmul.f32 %v1912, %v1920
    %v1922 = vadd.f32 %v1716, %v1921
    %v1923 = vtanh.pop %v1922
    %v1924 = vsub.f32 1.0, %v1919
    %v1925 = vmul.f32 %v1924, %v1923
    %v1926 = vmul.f32 %v1919, %v1708
    %v1927 = vadd.f32 %v1925, %v1926
    %s1928 = scalar_lea.vmem [#allocation2], 40
    %1929 = vst [vmem:[%s1928] sm:$0xff] %v1927
    %s1930 = smul.u32 6, 3
    %s1931 = smul.addr %s1930, 8
    %s1932 = scalar_lea.vmem [#allocation3], %s1931
    %v1933 = vld [vmem:[%s1932] sm:$0xff]
    %v1934 = vld [vmem:[%s1932 + $0x8] sm:$0xff]
    %v1935 = vld [vmem:[%s1932 + $0x10] sm:$0xff]
    %v1936 = vld [vmem:[#allocation7] sm:$0xff]
    %v1937 = vld [vmem:[#allocation7 + $0x8] sm:$0xff]
    %v1938 = vld [vmem:[#allocation7 + $0x10] sm:$0xff]
    %v1939 = vld [vmem:[#allocation7 + $0x18] sm:$0xff]
    %v1940 = vld [vmem:[#allocation7 + $0x20] sm:$0xff]
    %v1941 = vld [vmem:[#allocation7 + $0x28] sm:$0xff]
    %v1942 = vld [vmem:[#allocation7 + $0x30] sm:$0xff]
    %v1943 = vld [vmem:[#allocation7 + $0x38] sm:$0xff]
    %v1944 = vld [vmem:[#allocation7 + $0x40] sm:$0xff]
    %v1945 = vld [vmem:[#allocation7 + $0x48] sm:$0xff]
    %v1946 = vld [vmem:[#allocation7 + $0x50] sm:$0xff]
    %v1947 = vld [vmem:[#allocation7 + $0x58] sm:$0xff]
    %v1948 = vld [vmem:[#allocation7 + $0x60] sm:$0xff]
    %v1949 = vld [vmem:[#allocation7 + $0x68] sm:$0xff]
    %v1950 = vld [vmem:[#allocation7 + $0x70] sm:$0xff]
    %v1951 = vld [vmem:[#allocation7 + $0x78] sm:$0xff]
    %v1952 = vld [vmem:[#allocation7 + $0x80] sm:$0xff]
    %v1953 = vld [vmem:[#allocation7 + $0x88] sm:$0xff]
    %v1954 = vld [vmem:[#allocation7 + $0x90] sm:$0xff]
    %v1955 = vld [vmem:[#allocation7 + $0x98] sm:$0xff]
    %v1956 = vld [vmem:[#allocation7 + $0xa0] sm:$0xff]
    %v1957 = vld [vmem:[#allocation7 + $0xa8] sm:$0xff]
    %v1958 = vld [vmem:[#allocation7 + $0xb0] sm:$0xff]
    %v1959 = vld [vmem:[#allocation7 + $0xb8] sm:$0xff]
    %v1960 = vld [vmem:[#allocation7 + $0xc0] sm:$0xff]
    %v1961 = vld [vmem:[#allocation7 + $0xc8] sm:$0xff]
    %v1962 = vld [vmem:[#allocation7 + $0xd0] sm:$0xff]
    %v1963 = vld [vmem:[#allocation7 + $0xd8] sm:$0xff]
    %v1964 = vld [vmem:[#allocation7 + $0xe0] sm:$0xff]
    %v1965 = vld [vmem:[#allocation7 + $0xe8] sm:$0xff]
    %v1966 = vld [vmem:[#allocation7 + $0xf0] sm:$0xff]
    %v1967 = vld [vmem:[#allocation7 + $0xf8] sm:$0xff]
    %v1968 = vld [vmem:[#allocation7 + $0x100] sm:$0xff]
    %v1969 = vld [vmem:[#allocation7 + $0x108] sm:$0xff]
    %v1970 = vld [vmem:[#allocation7 + $0x110] sm:$0xff]
    %v1971 = vld [vmem:[#allocation7 + $0x118] sm:$0xff]
    %v1972 = vld [vmem:[#allocation7 + $0x120] sm:$0xff]
    %v1973 = vld [vmem:[#allocation7 + $0x128] sm:$0xff]
    %v1974 = vld [vmem:[#allocation7 + $0x130] sm:$0xff]
    %v1975 = vld [vmem:[#allocation7 + $0x138] sm:$0xff]
    %v1976 = vld [vmem:[#allocation7 + $0x140] sm:$0xff]
    %v1977 = vld [vmem:[#allocation7 + $0x148] sm:$0xff]
    %v1978 = vld [vmem:[#allocation7 + $0x150] sm:$0xff]
    %v1979 = vld [vmem:[#allocation7 + $0x158] sm:$0xff]
    %v1980 = vld [vmem:[#allocation7 + $0x160] sm:$0xff]
    %v1981 = vld [vmem:[#allocation7 + $0x168] sm:$0xff]
    %v1982 = vld [vmem:[#allocation7 + $0x170] sm:$0xff]
    %v1983 = vld [vmem:[#allocation7 + $0x178] sm:$0xff]
    %1984 = vmatprep.subr.mxu0 %v1937
    %1985 = vmatpush1.msra.mxu0 %v1936
    %1986 = vmatprep.subr.mxu0 %v1940
    %1987 = vmatpush1.msra.mxu0 %v1939
    %1988 = vmatprep.subr.mxu0 %v1943
    %1989 = vmatpush1.msra.mxu0 %v1942
    %1990 = vmatprep.subr.mxu0 %v1946
    %1991 = vmatpush1.msra.mxu0 %v1945
    %1992 = vmatprep.subr.mxu0 %v1949
    %1993 = vmatpush1.msra.mxu0 %v1948
    %1994 = vmatprep.subr.mxu0 %v1952
    %1995 = vmatpush1.msra.mxu0 %v1951
    %1996 = vmatprep.subr.mxu0 %v1955
    %1997 = vmatpush1.msra.mxu0 %v1954
    %1998 = vmatprep.subr.mxu0 %v1958
    %1999 = vmatpush1.msra.mxu0 %v1957
    %2000 = vmatprep.subr.mxu0 %v1961
    %2001 = vmatpush1.msra.mxu0 %v1960
    %2002 = vmatprep.subr.mxu0 %v1964
    %2003 = vmatpush1.msra.mxu0 %v1963
    %2004 = vmatprep.subr.mxu0 %v1967
    %2005 = vmatpush1.msra.mxu0 %v1966
    %2006 = vmatprep.subr.mxu0 %v1970
    %2007 = vmatpush1.msra.mxu0 %v1969
    %2008 = vmatprep.subr.mxu0 %v1973
    %2009 = vmatpush1.msra.mxu0 %v1972
    %2010 = vmatprep.subr.mxu0 %v1976
    %2011 = vmatpush1.msra.mxu0 %v1975
    %2012 = vmatprep.subr.mxu0 %v1979
    %2013 = vmatpush1.msra.mxu0 %v1978
    %2014 = vmatprep.subr.mxu0 %v1982
    %2015 = vmatpush1.msra.mxu0 %v1981
    %2016 = vmatprep.subr.mxu0 0.0
    %2017 = vmatpush1.msra.mxu0 0.0
    %2018 = vmatprep.subr.mxu0 0.0
    %2019 = vmatpush1.msra.mxu0 0.0
    %2020 = vmatprep.subr.mxu0 0.0
    %2021 = vmatpush1.msra.mxu0 0.0
    %2022 = vmatprep.subr.mxu0 0.0
    %2023 = vmatpush1.msra.mxu0 0.0
    %2024 = vmatprep.subr.mxu0 0.0
    %2025 = vmatpush1.msra.mxu0 0.0
    %2026 = vmatprep.subr.mxu0 0.0
    %2027 = vmatpush1.msra.mxu0 0.0
    %2028 = vmatprep.subr.mxu0 0.0
    %2029 = vmatpush1.msra.mxu0 0.0
    %2030 = vmatprep.subr.mxu0 0.0
    %2031 = vmatpush1.msra.mxu0 0.0
    %2032 = vmatprep.subr.mxu0 0.0
    %2033 = vmatpush1.msra.mxu0 0.0
    %2034 = vmatprep.subr.mxu0 0.0
    %2035 = vmatpush1.msra.mxu0 0.0
    %2036 = vmatprep.subr.mxu0 0.0
    %2037 = vmatpush1.msra.mxu0 0.0
    %2038 = vmatprep.subr.mxu0 0.0
    %2039 = vmatpush1.msra.mxu0 0.0
    %2040 = vmatprep.subr.mxu0 0.0
    %2041 = vmatpush1.msra.mxu0 0.0
    %2042 = vmatprep.subr.mxu0 0.0
    %2043 = vmatpush1.msra.mxu0 0.0
    %2044 = vmatprep.subr.mxu0 0.0
    %2045 = vmatpush1.msra.mxu0 0.0
    %2046 = vmatprep.subr.mxu0 0.0
    %2047 = vmatpush1.msra.mxu0 0.0
    %2048 = vmatprep.mubr.f32.mxu0 0.0
    %2049 = vmatmul.mubr.f32.gmra.mrb[0].mxu0 %v1927
    %v2050 = vpop.f32.mrb[0].mxu0
    %v2051 = vadd.f32 0.0, %v2050
    %v2052 = vpop.f32.mrb[0].mxu0
    %v2053 = vadd.f32 0.0, %v2052
    %2054 = vdwg.mxu0
    %2055 = vmatprep.subr.mxu0 0.0
    %2056 = vmatpush1.msra.mxu0 %v1938
    %2057 = vmatprep.subr.mxu0 0.0
    %2058 = vmatpush1.msra.mxu0 %v1941
    %2059 = vmatprep.subr.mxu0 0.0
    %2060 = vmatpush1.msra.mxu0 %v1944
    %2061 = vmatprep.subr.mxu0 0.0
    %2062 = vmatpush1.msra.mxu0 %v1947
    %2063 = vmatprep.subr.mxu0 0.0
    %2064 = vmatpush1.msra.mxu0 %v1950
    %2065 = vmatprep.subr.mxu0 0.0
    %2066 = vmatpush1.msra.mxu0 %v1953
    %2067 = vmatprep.subr.mxu0 0.0
    %2068 = vmatpush1.msra.mxu0 %v1956
    %2069 = vmatprep.subr.mxu0 0.0
    %2070 = vmatpush1.msra.mxu0 %v1959
    %2071 = vmatprep.subr.mxu0 0.0
    %2072 = vmatpush1.msra.mxu0 %v1962
    %2073 = vmatprep.subr.mxu0 0.0
    %2074 = vmatpush1.msra.mxu0 %v1965
    %2075 = vmatprep.subr.mxu0 0.0
    %2076 = vmatpush1.msra.mxu0 %v1968
    %2077 = vmatprep.subr.mxu0 0.0
    %2078 = vmatpush1.msra.mxu0 %v1971
    %2079 = vmatprep.subr.mxu0 0.0
    %2080 = vmatpush1.msra.mxu0 %v1974
    %2081 = vmatprep.subr.mxu0 0.0
    %2082 = vmatpush1.msra.mxu0 %v1977
    %2083 = vmatprep.subr.mxu0 0.0
    %2084 = vmatpush1.msra.mxu0 %v1980
    %2085 = vmatprep.subr.mxu0 0.0
    %2086 = vmatpush1.msra.mxu0 %v1983
    %2087 = vmatprep.subr.mxu0 0.0
    %2088 = vmatpush1.msra.mxu0 0.0
    %2089 = vmatprep.subr.mxu0 0.0
    %2090 = vmatpush1.msra.mxu0 0.0
    %2091 = vmatprep.subr.mxu0 0.0
    %2092 = vmatpush1.msra.mxu0 0.0
    %2093 = vmatprep.subr.mxu0 0.0
    %2094 = vmatpush1.msra.mxu0 0.0
    %2095 = vmatprep.subr.mxu0 0.0
    %2096 = vmatpush1.msra.mxu0 0.0
    %2097 = vmatprep.subr.mxu0 0.0
    %2098 = vmatpush1.msra.mxu0 0.0
    %2099 = vmatprep.subr.mxu0 0.0
    %2100 = vmatpush1.msra.mxu0 0.0
    %2101 = vmatprep.subr.mxu0 0.0
    %2102 = vmatpush1.msra.mxu0 0.0
    %2103 = vmatprep.subr.mxu0 0.0
    %2104 = vmatpush1.msra.mxu0 0.0
    %2105 = vmatprep.subr.mxu0 0.0
    %2106 = vmatpush1.msra.mxu0 0.0
    %2107 = vmatprep.subr.mxu0 0.0
    %2108 = vmatpush1.msra.mxu0 0.0
    %2109 = vmatprep.subr.mxu0 0.0
    %2110 = vmatpush1.msra.mxu0 0.0
    %2111 = vmatprep.subr.mxu0 0.0
    %2112 = vmatpush1.msra.mxu0 0.0
    %2113 = vmatprep.subr.mxu0 0.0
    %2114 = vmatpush1.msra.mxu0 0.0
    %2115 = vmatprep.subr.mxu0 0.0
    %2116 = vmatpush1.msra.mxu0 0.0
    %2117 = vmatprep.subr.mxu0 0.0
    %2118 = vmatpush1.msra.mxu0 0.0
    %2119 = vmatprep.mubr.f32.mxu0 0.0
    %2120 = vmatmul.mubr.f32.gmra.mrb[0].mxu0 %v1927
    %v2121 = vpop.f32.mrb[0].mxu0
    %v2122 = vadd.f32 0.0, %v2121
    %v2123 = vpop.f32.mrb[0].mxu0
    %2124 = vdwg.mxu0
    %v2125 = vadd.f32 %v1933, %v2051
    %v2126 = vxor.u32 %v2125, 2147483648
    %v2127 = vmul.f32 %v2126, 1.442695
    %v2128 = vpow.pop %v2127
    %v2129 = vadd.f32 %v2128, 1.0
    %v2130 = vrcp.pop %v2129
    %v2131 = vmul.f32 1.0, %v2130
    %v2132 = vadd.f32 %v1934, %v2053
    %v2133 = vxor.u32 %v2132, 2147483648
    %v2134 = vmul.f32 %v2133, 1.442695
    %v2135 = vpow.pop %v2134
    %v2136 = vadd.f32 %v2135, 1.0
    %v2137 = vrcp.pop %v2136
    %v2138 = vmul.f32 1.0, %v2137
    %v2139 = vadd.f32 %v2122, %v614
    %v2140 = vmul.f32 %v2131, %v2139
    %v2141 = vadd.f32 %v1935, %v2140
    %v2142 = vtanh.pop %v2141
    %v2143 = vsub.f32 1.0, %v2138
    %v2144 = vmul.f32 %v2143, %v2142
    %v2145 = vmul.f32 %v2138, %v1927
    %v2146 = vadd.f32 %v2144, %v2145
    %s2147 = scalar_lea.vmem [#allocation2], 48
    %2148 = vst [vmem:[%s2147] sm:$0xff] %v2146
    %s2149 = smul.u32 7, 3
    %s2150 = smul.addr %s2149, 8
    %s2151 = scalar_lea.vmem [#allocation3], %s2150
    %v2152 = vld [vmem:[%s2151] sm:$0xff]
    %v2153 = vld [vmem:[%s2151 + $0x8] sm:$0xff]
    %v2154 = vld [vmem:[%s2151 + $0x10] sm:$0xff]
    %v2155 = vld [vmem:[#allocation7] sm:$0xff]
    %v2156 = vld [vmem:[#allocation7 + $0x8] sm:$0xff]
    %v2157 = vld [vmem:[#allocation7 + $0x10] sm:$0xff]
    %v2158 = vld [vmem:[#allocation7 + $0x18] sm:$0xff]
    %v2159 = vld [vmem:[#allocation7 + $0x20] sm:$0xff]
    %v2160 = vld [vmem:[#allocation7 + $0x28] sm:$0xff]
    %v2161 = vld [vmem:[#allocation7 + $0x30] sm:$0xff]
    %v2162 = vld [vmem:[#allocation7 + $0x38] sm:$0xff]
    %v2163 = vld [vmem:[#allocation7 + $0x40] sm:$0xff]
    %v2164 = vld [vmem:[#allocation7 + $0x48] sm:$0xff]
    %v2165 = vld [vmem:[#allocation7 + $0x50] sm:$0xff]
    %v2166 = vld [vmem:[#allocation7 + $0x58] sm:$0xff]
    %v2167 = vld [vmem:[#allocation7 + $0x60] sm:$0xff]
    %v2168 = vld [vmem:[#allocation7 + $0x68] sm:$0xff]
    %v2169 = vld [vmem:[#allocation7 + $0x70] sm:$0xff]
    %v2170 = vld [vmem:[#allocation7 + $0x78] sm:$0xff]
    %v2171 = vld [vmem:[#allocation7 + $0x80] sm:$0xff]
    %v2172 = vld [vmem:[#allocation7 + $0x88] sm:$0xff]
    %v2173 = vld [vmem:[#allocation7 + $0x90] sm:$0xff]
    %v2174 = vld [vmem:[#allocation7 + $0x98] sm:$0xff]
    %v2175 = vld [vmem:[#allocation7 + $0xa0] sm:$0xff]
    %v2176 = vld [vmem:[#allocation7 + $0xa8] sm:$0xff]
    %v2177 = vld [vmem:[#allocation7 + $0xb0] sm:$0xff]
    %v2178 = vld [vmem:[#allocation7 + $0xb8] sm:$0xff]
    %v2179 = vld [vmem:[#allocation7 + $0xc0] sm:$0xff]
    %v2180 = vld [vmem:[#allocation7 + $0xc8] sm:$0xff]
    %v2181 = vld [vmem:[#allocation7 + $0xd0] sm:$0xff]
    %v2182 = vld [vmem:[#allocation7 + $0xd8] sm:$0xff]
    %v2183 = vld [vmem:[#allocation7 + $0xe0] sm:$0xff]
    %v2184 = vld [vmem:[#allocation7 + $0xe8] sm:$0xff]
    %v2185 = vld [vmem:[#allocation7 + $0xf0] sm:$0xff]
    %v2186 = vld [vmem:[#allocation7 + $0xf8] sm:$0xff]
    %v2187 = vld [vmem:[#allocation7 + $0x100] sm:$0xff]
    %v2188 = vld [vmem:[#allocation7 + $0x108] sm:$0xff]
    %v2189 = vld [vmem:[#allocation7 + $0x110] sm:$0xff]
    %v2190 = vld [vmem:[#allocation7 + $0x118] sm:$0xff]
    %v2191 = vld [vmem:[#allocation7 + $0x120] sm:$0xff]
    %v2192 = vld [vmem:[#allocation7 + $0x128] sm:$0xff]
    %v2193 = vld [vmem:[#allocation7 + $0x130] sm:$0xff]
    %v2194 = vld [vmem:[#allocation7 + $0x138] sm:$0xff]
    %v2195 = vld [vmem:[#allocation7 + $0x140] sm:$0xff]
    %v2196 = vld [vmem:[#allocation7 + $0x148] sm:$0xff]
    %v2197 = vld [vmem:[#allocation7 + $0x150] sm:$0xff]
    %v2198 = vld [vmem:[#allocation7 + $0x158] sm:$0xff]
    %v2199 = vld [vmem:[#allocation7 + $0x160] sm:$0xff]
    %v2200 = vld [vmem:[#allocation7 + $0x168] sm:$0xff]
    %v2201 = vld [vmem:[#allocation7 + $0x170] sm:$0xff]
    %v2202 = vld [vmem:[#allocation7 + $0x178] sm:$0xff]
    %2203 = vmatprep.subr.mxu0 %v2156
    %2204 = vmatpush1.msra.mxu0 %v2155
    %2205 = vmatprep.subr.mxu0 %v2159
    %2206 = vmatpush1.msra.mxu0 %v2158
    %2207 = vmatprep.subr.mxu0 %v2162
    %2208 = vmatpush1.msra.mxu0 %v2161
    %2209 = vmatprep.subr.mxu0 %v2165
    %2210 = vmatpush1.msra.mxu0 %v2164
    %2211 = vmatprep.subr.mxu0 %v2168
    %2212 = vmatpush1.msra.mxu0 %v2167
    %2213 = vmatprep.subr.mxu0 %v2171
    %2214 = vmatpush1.msra.mxu0 %v2170
    %2215 = vmatprep.subr.mxu0 %v2174
    %2216 = vmatpush1.msra.mxu0 %v2173
    %2217 = vmatprep.subr.mxu0 %v2177
    %2218 = vmatpush1.msra.mxu0 %v2176
    %2219 = vmatprep.subr.mxu0 %v2180
    %2220 = vmatpush1.msra.mxu0 %v2179
    %2221 = vmatprep.subr.mxu0 %v2183
    %2222 = vmatpush1.msra.mxu0 %v2182
    %2223 = vmatprep.subr.mxu0 %v2186
    %2224 = vmatpush1.msra.mxu0 %v2185
    %2225 = vmatprep.subr.mxu0 %v2189
    %2226 = vmatpush1.msra.mxu0 %v2188
    %2227 = vmatprep.subr.mxu0 %v2192
    %2228 = vmatpush1.msra.mxu0 %v2191
    %2229 = vmatprep.subr.mxu0 %v2195
    %2230 = vmatpush1.msra.mxu0 %v2194
    %2231 = vmatprep.subr.mxu0 %v2198
    %2232 = vmatpush1.msra.mxu0 %v2197
    %2233 = vmatprep.subr.mxu0 %v2201
    %2234 = vmatpush1.msra.mxu0 %v2200
    %2235 = vmatprep.subr.mxu0 0.0
    %2236 = vmatpush1.msra.mxu0 0.0
    %2237 = vmatprep.subr.mxu0 0.0
    %2238 = vmatpush1.msra.mxu0 0.0
    %2239 = vmatprep.subr.mxu0 0.0
    %2240 = vmatpush1.msra.mxu0 0.0
    %2241 = vmatprep.subr.mxu0 0.0
    %2242 = vmatpush1.msra.mxu0 0.0
    %2243 = vmatprep.subr.mxu0 0.0
    %2244 = vmatpush1.msra.mxu0 0.0
    %2245 = vmatprep.subr.mxu0 0.0
    %2246 = vmatpush1.msra.mxu0 0.0
    %2247 = vmatprep.subr.mxu0 0.0
    %2248 = vmatpush1.msra.mxu0 0.0
    %2249 = vmatprep.subr.mxu0 0.0
    %2250 = vmatpush1.msra.mxu0 0.0
    %2251 = vmatprep.subr.mxu0 0.0
    %2252 = vmatpush1.msra.mxu0 0.0
    %2253 = vmatprep.subr.mxu0 0.0
    %2254 = vmatpush1.msra.mxu0 0.0
    %2255 = vmatprep.subr.mxu0 0.0
    %2256 = vmatpush1.msra.mxu0 0.0
    %2257 = vmatprep.subr.mxu0 0.0
    %2258 = vmatpush1.msra.mxu0 0.0
    %2259 = vmatprep.subr.mxu0 0.0
    %2260 = vmatpush1.msra.mxu0 0.0
    %2261 = vmatprep.subr.mxu0 0.0
    %2262 = vmatpush1.msra.mxu0 0.0
    %2263 = vmatprep.subr.mxu0 0.0
    %2264 = vmatpush1.msra.mxu0 0.0
    %2265 = vmatprep.subr.mxu0 0.0
    %2266 = vmatpush1.msra.mxu0 0.0
    %2267 = vmatprep.mubr.f32.mxu0 0.0
    %2268 = vmatmul.mubr.f32.gmra.mrb[0].mxu0 %v2146
    %v2269 = vpop.f32.mrb[0].mxu0
    %v2270 = vadd.f32 0.0, %v2269
    %v2271 = vpop.f32.mrb[0].mxu0
    %v2272 = vadd.f32 0.0, %v2271
    %2273 = vdwg.mxu0
    %2274 = vmatprep.subr.mxu0 0.0
    %2275 = vmatpush1.msra.mxu0 %v2157
    %2276 = vmatprep.subr.mxu0 0.0
    %2277 = vmatpush1.msra.mxu0 %v2160
    %2278 = vmatprep.subr.mxu0 0.0
    %2279 = vmatpush1.msra.mxu0 %v2163
    %2280 = vmatprep.subr.mxu0 0.0
    %2281 = vmatpush1.msra.mxu0 %v2166
    %2282 = vmatprep.subr.mxu0 0.0
    %2283 = vmatpush1.msra.mxu0 %v2169
    %2284 = vmatprep.subr.mxu0 0.0
    %2285 = vmatpush1.msra.mxu0 %v2172
    %2286 = vmatprep.subr.mxu0 0.0
    %2287 = vmatpush1.msra.mxu0 %v2175
    %2288 = vmatprep.subr.mxu0 0.0
    %2289 = vmatpush1.msra.mxu0 %v2178
    %2290 = vmatprep.subr.mxu0 0.0
    %2291 = vmatpush1.msra.mxu0 %v2181
    %2292 = vmatprep.subr.mxu0 0.0
    %2293 = vmatpush1.msra.mxu0 %v2184
    %2294 = vmatprep.subr.mxu0 0.0
    %2295 = vmatpush1.msra.mxu0 %v2187
    %2296 = vmatprep.subr.mxu0 0.0
    %2297 = vmatpush1.msra.mxu0 %v2190
    %2298 = vmatprep.subr.mxu0 0.0
    %2299 = vmatpush1.msra.mxu0 %v2193
    %2300 = vmatprep.subr.mxu0 0.0
    %2301 = vmatpush1.msra.mxu0 %v2196
    %2302 = vmatprep.subr.mxu0 0.0
    %2303 = vmatpush1.msra.mxu0 %v2199
    %2304 = vmatprep.subr.mxu0 0.0
    %2305 = vmatpush1.msra.mxu0 %v2202
    %2306 = vmatprep.subr.mxu0 0.0
    %2307 = vmatpush1.msra.mxu0 0.0
    %2308 = vmatprep.subr.mxu0 0.0
    %2309 = vmatpush1.msra.mxu0 0.0
    %2310 = vmatprep.subr.mxu0 0.0
    %2311 = vmatpush1.msra.mxu0 0.0
    %2312 = vmatprep.subr.mxu0 0.0
    %2313 = vmatpush1.msra.mxu0 0.0
    %2314 = vmatprep.subr.mxu0 0.0
    %2315 = vmatpush1.msra.mxu0 0.0
    %2316 = vmatprep.subr.mxu0 0.0
    %2317 = vmatpush1.msra.mxu0 0.0
    %2318 = vmatprep.subr.mxu0 0.0
    %2319 = vmatpush1.msra.mxu0 0.0
    %2320 = vmatprep.subr.mxu0 0.0
    %2321 = vmatpush1.msra.mxu0 0.0
    %2322 = vmatprep.subr.mxu0 0.0
    %2323 = vmatpush1.msra.mxu0 0.0
    %2324 = vmatprep.subr.mxu0 0.0
    %2325 = vmatpush1.msra.mxu0 0.0
    %2326 = vmatprep.subr.mxu0 0.0
    %2327 = vmatpush1.msra.mxu0 0.0
    %2328 = vmatprep.subr.mxu0 0.0
    %2329 = vmatpush1.msra.mxu0 0.0
    %2330 = vmatprep.subr.mxu0 0.0
    %2331 = vmatpush1.msra.mxu0 0.0
    %2332 = vmatprep.subr.mxu0 0.0
    %2333 = vmatpush1.msra.mxu0 0.0
    %2334 = vmatprep.subr.mxu0 0.0
    %2335 = vmatpush1.msra.mxu0 0.0
    %2336 = vmatprep.subr.mxu0 0.0
    %2337 = vmatpush1.msra.mxu0 0.0
    %2338 = vmatprep.mubr.f32.mxu0 0.0
    %2339 = vmatmul.mubr.f32.gmra.mrb[0].mxu0 %v2146
    %v2340 = vpop.f32.mrb[0].mxu0
    %v2341 = vadd.f32 0.0, %v2340
    %v2342 = vpop.f32.mrb[0].mxu0
    %2343 = vdwg.mxu0
    %v2344 = vadd.f32 %v2152, %v2270
    %v2345 = vxor.u32 %v2344, 2147483648
    %v2346 = vmul.f32 %v2345, 1.442695
    %v2347 = vpow.pop %v2346
    %v2348 = vadd.f32 %v2347, 1.0
    %v2349 = vrcp.pop %v2348
    %v2350 = vmul.f32 1.0, %v2349
    %v2351 = vadd.f32 %v2153, %v2272
    %v2352 = vxor.u32 %v2351, 2147483648
    %v2353 = vmul.f32 %v2352, 1.442695
    %v2354 = vpow.pop %v2353
    %v2355 = vadd.f32 %v2354, 1.0
    %v2356 = vrcp.pop %v2355
    %v2357 = vmul.f32 1.0, %v2356
    %v2358 = vadd.f32 %v2341, %v614
    %v2359 = vmul.f32 %v2350, %v2358
    %v2360 = vadd.f32 %v2154, %v2359
    %v2361 = vtanh.pop %v2360
    %v2362 = vsub.f32 1.0, %v2357
    %v2363 = vmul.f32 %v2362, %v2361
    %v2364 = vmul.f32 %v2357, %v2146
    %v2365 = vadd.f32 %v2363, %v2364
    %s2366 = scalar_lea.vmem [#allocation2], 56
    %2367 = vst [vmem:[%s2366] sm:$0xff] %v2365
    %2368 = vst [vmem:[#allocation11] sm:$0xff] %v2365
    %v2369 = vld [vmem:[#allocation2] sm:$0xff]
    %v2370 = vld [vmem:[#allocation2 + $0x8] sm:$0xff]
    %v2371 = vld [vmem:[#allocation2 + $0x10] sm:$0xff]
    %v2372 = vld [vmem:[#allocation2 + $0x18] sm:$0xff]
    %v2373 = vld [vmem:[#allocation2 + $0x20] sm:$0xff]
    %v2374 = vld [vmem:[#allocation2 + $0x28] sm:$0xff]
    %v2375 = vld [vmem:[#allocation2 + $0x30] sm:$0xff]
    %v2376 = vld [vmem:[#allocation2 + $0x38] sm:$0xff]
    %s2377 = scalar_lea.vmem [#allocation4], 384
    %v2378 = vld [vmem:[%s2377] sm:$0xff]
    %v2379 = vld [vmem:[%s2377 + $0x8] sm:$0xff]
    %v2380 = vld [vmem:[%s2377 + $0x10] sm:$0xff]
    %v2381 = vld [vmem:[%s2377 + $0x18] sm:$0xff]
    %v2382 = vld [vmem:[%s2377 + $0x20] sm:$0xff]
    %v2383 = vld [vmem:[%s2377 + $0x28] sm:$0xff]
    %v2384 = vld [vmem:[%s2377 + $0x30] sm:$0xff]
    %v2385 = vld [vmem:[%s2377 + $0x38] sm:$0xff]
    %v2386 = vld [vmem:[%s2377 + $0x40] sm:$0xff]
    %v2387 = vld [vmem:[%s2377 + $0x48] sm:$0xff]
    %v2388 = vld [vmem:[%s2377 + $0x50] sm:$0xff]
    %v2389 = vld [vmem:[%s2377 + $0x58] sm:$0xff]
    %v2390 = vld [vmem:[%s2377 + $0x60] sm:$0xff]
    %v2391 = vld [vmem:[%s2377 + $0x68] sm:$0xff]
    %v2392 = vld [vmem:[%s2377 + $0x70] sm:$0xff]
    %v2393 = vld [vmem:[%s2377 + $0x78] sm:$0xff]
    %v2394 = vld [vmem:[%s2377 + $0x80] sm:$0xff]
    %v2395 = vld [vmem:[%s2377 + $0x88] sm:$0xff]
    %v2396 = vld [vmem:[%s2377 + $0x90] sm:$0xff]
    %v2397 = vld [vmem:[%s2377 + $0x98] sm:$0xff]
    %v2398 = vld [vmem:[%s2377 + $0xa0] sm:$0xff]
    %v2399 = vld [vmem:[%s2377 + $0xa8] sm:$0xff]
    %v2400 = vld [vmem:[%s2377 + $0xb0] sm:$0xff]
    %v2401 = vld [vmem:[%s2377 + $0xb8] sm:$0xff]
    %v2402 = vld [vmem:[%s2377 + $0xc0] sm:$0xff]
    %v2403 = vld [vmem:[%s2377 + $0xc8] sm:$0xff]
    %v2404 = vld [vmem:[%s2377 + $0xd0] sm:$0xff]
    %v2405 = vld [vmem:[%s2377 + $0xd8] sm:$0xff]
    %v2406 = vld [vmem:[%s2377 + $0xe0] sm:$0xff]
    %v2407 = vld [vmem:[%s2377 + $0xe8] sm:$0xff]
    %v2408 = vld [vmem:[%s2377 + $0xf0] sm:$0xff]
    %v2409 = vld [vmem:[%s2377 + $0xf8] sm:$0xff]
    %v2410 = vld [vmem:[%s2377 + $0x100] sm:$0xff]
    %v2411 = vld [vmem:[%s2377 + $0x108] sm:$0xff]
    %v2412 = vld [vmem:[%s2377 + $0x110] sm:$0xff]
    %v2413 = vld [vmem:[%s2377 + $0x118] sm:$0xff]
    %v2414 = vld [vmem:[%s2377 + $0x120] sm:$0xff]
    %v2415 = vld [vmem:[%s2377 + $0x128] sm:$0xff]
    %v2416 = vld [vmem:[%s2377 + $0x130] sm:$0xff]
    %v2417 = vld [vmem:[%s2377 + $0x138] sm:$0xff]
    %v2418 = vld [vmem:[%s2377 + $0x140] sm:$0xff]
    %v2419 = vld [vmem:[%s2377 + $0x148] sm:$0xff]
    %v2420 = vld [vmem:[%s2377 + $0x150] sm:$0xff]
    %v2421 = vld [vmem:[%s2377 + $0x158] sm:$0xff]
    %v2422 = vld [vmem:[%s2377 + $0x160] sm:$0xff]
    %v2423 = vld [vmem:[%s2377 + $0x168] sm:$0xff]
    %v2424 = vld [vmem:[%s2377 + $0x170] sm:$0xff]
    %v2425 = vld [vmem:[%s2377 + $0x178] sm:$0xff]
    %s2426 = scalar_lea.vmem %s6, 3
    %v2427 = vld [vmem:[%s2426] sm:$0x7]
    %v2429 = vlaneseq
    %v2430 = vshrl.u32 %v2429, 7
    %v2431 = vsub.s32 0, %v2430
    %v2432 = vrot.slane %v2427, %v2431
    %v2433 = vlaneseq
    %v2434 = vshrl.u32 %v2433, 7
    %v2435 = vsub.s32 1, %v2434
    %v2436 = vrot.slane %v2427, %v2435
    %v2437 = vlaneseq
    %v2438 = vshrl.u32 %v2437, 7
    %v2439 = vsub.s32 2, %v2438
    %v2440 = vrot.slane %v2427, %v2439
    %2444 = vmatprep.subr.mxu0 %v2379
    %2445 = vmatpush1.msra.mxu0 %v2378
    %2446 = vmatprep.subr.mxu0 %v2382
    %2447 = vmatpush1.msra.mxu0 %v2381
    %2448 = vmatprep.subr.mxu0 %v2385
    %2449 = vmatpush1.msra.mxu0 %v2384
    %2450 = vmatprep.subr.mxu0 %v2388
    %2451 = vmatpush1.msra.mxu0 %v2387
    %2452 = vmatprep.subr.mxu0 %v2391
    %2453 = vmatpush1.msra.mxu0 %v2390
    %2454 = vmatprep.subr.mxu0 %v2394
    %2455 = vmatpush1.msra.mxu0 %v2393
    %2456 = vmatprep.subr.mxu0 %v2397
    %2457 = vmatpush1.msra.mxu0 %v2396
    %2458 = vmatprep.subr.mxu0 %v2400
    %2459 = vmatpush1.msra.mxu0 %v2399
    %2460 = vmatprep.subr.mxu0 %v2403
    %2461 = vmatpush1.msra.mxu0 %v2402
    %2462 = vmatprep.subr.mxu0 %v2406
    %2463 = vmatpush1.msra.mxu0 %v2405
    %2464 = vmatprep.subr.mxu0 %v2409
    %2465 = vmatpush1.msra.mxu0 %v2408
    %2466 = vmatprep.subr.mxu0 %v2412
    %2467 = vmatpush1.msra.mxu0 %v2411
    %2468 = vmatprep.subr.mxu0 %v2415
    %2469 = vmatpush1.msra.mxu0 %v2414
    %2470 = vmatprep.subr.mxu0 %v2418
    %2471 = vmatpush1.msra.mxu0 %v2417
    %2472 = vmatprep.subr.mxu0 %v2421
    %2473 = vmatpush1.msra.mxu0 %v2420
    %2474 = vmatprep.subr.mxu0 %v2424
    %2475 = vmatpush1.msra.mxu0 %v2423
    %2476 = vmatprep.subr.mxu0 0.0
    %2477 = vmatpush1.msra.mxu0 0.0
    %2478 = vmatprep.subr.mxu0 0.0
    %2479 = vmatpush1.msra.mxu0 0.0
    %2480 = vmatprep.subr.mxu0 0.0
    %2481 = vmatpush1.msra.mxu0 0.0
    %2482 = vmatprep.subr.mxu0 0.0
    %2483 = vmatpush1.msra.mxu0 0.0
    %2484 = vmatprep.subr.mxu0 0.0
    %2485 = vmatpush1.msra.mxu0 0.0
    %2486 = vmatprep.subr.mxu0 0.0
    %2487 = vmatpush1.msra.mxu0 0.0
    %2488 = vmatprep.subr.mxu0 0.0
    %2489 = vmatpush1.msra.mxu0 0.0
    %2490 = vmatprep.subr.mxu0 0.0
    %2491 = vmatpush1.msra.mxu0 0.0
    %2492 = vmatprep.subr.mxu0 0.0
    %2493 = vmatpush1.msra.mxu0 0.0
    %2494 = vmatprep.subr.mxu0 0.0
    %2495 = vmatpush1.msra.mxu0 0.0
    %2496 = vmatprep.subr.mxu0 0.0
    %2497 = vmatpush1.msra.mxu0 0.0
    %2498 = vmatprep.subr.mxu0 0.0
    %2499 = vmatpush1.msra.mxu0 0.0
    %2500 = vmatprep.subr.mxu0 0.0
    %2501 = vmatpush1.msra.mxu0 0.0
    %2502 = vmatprep.subr.mxu0 0.0
    %2503 = vmatpush1.msra.mxu0 0.0
    %2504 = vmatprep.subr.mxu0 0.0
    %2505 = vmatpush1.msra.mxu0 0.0
    %2506 = vmatprep.subr.mxu0 0.0
    %2507 = vmatpush1.msra.mxu0 0.0
    %2508 = vmatprep.mubr.f32.mxu0 0.0
    %2509 = vmatmul.mubr.f32.gmra.mrb[0].mxu0 %v2369
    %v2510 = vpop.f32.mrb[0].mxu0
    %v2511 = vadd.f32 %v2432, %v2510
    %v2512 = vpop.f32.mrb[0].mxu0
    %v2513 = vadd.f32 %v2436, %v2512
    %2514 = vmatprep.mubr.f32.mxu0 0.0
    %2515 = vmatmul.mubr.f32.gmra.mrb[0].mxu0 %v2370
    %v2516 = vpop.f32.mrb[0].mxu0
    %v2517 = vadd.f32 %v2432, %v2516
    %v2518 = vpop.f32.mrb[0].mxu0
    %v2519 = vadd.f32 %v2436, %v2518
    %2520 = vmatprep.mubr.f32.mxu0 0.0
    %2521 = vmatmul.mubr.f32.gmra.mrb[0].mxu0 %v2371
    %v2522 = vpop.f32.mrb[0].mxu0
    %v2523 = vadd.f32 %v2432, %v2522
    %v2524 = vpop.f32.mrb[0].mxu0
    %v2525 = vadd.f32 %v2436, %v2524
    %2526 = vmatprep.mubr.f32.mxu0 0.0
    %2527 = vmatmul.mubr.f32.gmra.mrb[0].mxu0 %v2372
    %v2528 = vpop.f32.mrb[0].mxu0
    %v2529 = vadd.f32 %v2432, %v2528
    %v2530 = vpop.f32.mrb[0].mxu0
    %v2531 = vadd.f32 %v2436, %v2530
    %2532 = vmatprep.mubr.f32.mxu0 0.0
    %2533 = vmatmul.mubr.f32.gmra.mrb[0].mxu0 %v2373
    %v2534 = vpop.f32.mrb[0].mxu0
    %v2535 = vadd.f32 %v2432, %v2534
    %v2536 = vpop.f32.mrb[0].mxu0
    %v2537 = vadd.f32 %v2436, %v2536
    %2538 = vmatprep.mubr.f32.mxu0 0.0
    %2539 = vmatmul.mubr.f32.gmra.mrb[0].mxu0 %v2374
    %v2540 = vpop.f32.mrb[0].mxu0
    %v2541 = vadd.f32 %v2432, %v2540
    %v2542 = vpop.f32.mrb[0].mxu0
    %v2543 = vadd.f32 %v2436, %v2542
    %2544 = vmatprep.mubr.f32.mxu0 0.0
    %2545 = vmatmul.mubr.f32.gmra.mrb[0].mxu0 %v2375
    %v2546 = vpop.f32.mrb[0].mxu0
    %v2547 = vadd.f32 %v2432, %v2546
    %v2548 = vpop.f32.mrb[0].mxu0
    %v2549 = vadd.f32 %v2436, %v2548
    %2550 = vmatprep.mubr.f32.mxu0 0.0
    %2551 = vmatmul.mubr.f32.gmra.mrb[0].mxu0 %v2376
    %v2552 = vpop.f32.mrb[0].mxu0
    %v2553 = vadd.f32 %v2432, %v2552
    %v2554 = vpop.f32.mrb[0].mxu0
    %v2555 = vadd.f32 %v2436, %v2554
    %2556 = vdwg.mxu0
    %2557 = vmatprep.subr.mxu0 0.0
    %2558 = vmatpush1.msra.mxu0 %v2380
    %2559 = vmatprep.subr.mxu0 0.0
    %2560 = vmatpush1.msra.mxu0 %v2383
    %2561 = vmatprep.subr.mxu0 0.0
    %2562 = vmatpush1.msra.mxu0 %v2386
    %2563 = vmatprep.subr.mxu0 0.0
    %2564 = vmatpush1.msra.mxu0 %v2389
    %2565 = vmatprep.subr.mxu0 0.0
    %2566 = vmatpush1.msra.mxu0 %v2392
    %2567 = vmatprep.subr.mxu0 0.0
    %2568 = vmatpush1.msra.mxu0 %v2395
    %2569 = vmatprep.subr.mxu0 0.0
    %2570 = vmatpush1.msra.mxu0 %v2398
    %2571 = vmatprep.subr.mxu0 0.0
    %2572 = vmatpush1.msra.mxu0 %v2401
    %2573 = vmatprep.subr.mxu0 0.0
    %2574 = vmatpush1.msra.mxu0 %v2404
    %2575 = vmatprep.subr.mxu0 0.0
    %2576 = vmatpush1.msra.mxu0 %v2407
    %2577 = vmatprep.subr.mxu0 0.0
    %2578 = vmatpush1.msra.mxu0 %v2410
    %2579 = vmatprep.subr.mxu0 0.0
    %2580 = vmatpush1.msra.mxu0 %v2413
    %2581 = vmatprep.subr.mxu0 0.0
    %2582 = vmatpush1.msra.mxu0 %v2416
    %2583 = vmatprep.subr.mxu0 0.0
    %2584 = vmatpush1.msra.mxu0 %v2419
    %2585 = vmatprep.subr.mxu0 0.0
    %2586 = vmatpush1.msra.mxu0 %v2422
    %2587 = vmatprep.subr.mxu0 0.0
    %2588 = vmatpush1.msra.mxu0 %v2425
    %2589 = vmatprep.subr.mxu0 0.0
    %2590 = vmatpush1.msra.mxu0 0.0
    %2591 = vmatprep.subr.mxu0 0.0
    %2592 = vmatpush1.msra.mxu0 0.0
    %2593 = vmatprep.subr.mxu0 0.0
    %2594 = vmatpush1.msra.mxu0 0.0
    %2595 = vmatprep.subr.mxu0 0.0
    %2596 = vmatpush1.msra.mxu0 0.0
    %2597 = vmatprep.subr.mxu0 0.0
    %2598 = vmatpush1.msra.mxu0 0.0
    %2599 = vmatprep.subr.mxu0 0.0
    %2600 = vmatpush1.msra.mxu0 0.0
    %2601 = vmatprep.subr.mxu0 0.0
    %2602 = vmatpush1.msra.mxu0 0.0
    %2603 = vmatprep.subr.mxu0 0.0
    %2604 = vmatpush1.msra.mxu0 0.0
    %2605 = vmatprep.subr.mxu0 0.0
    %2606 = vmatpush1.msra.mxu0 0.0
    %2607 = vmatprep.subr.mxu0 0.0
    %2608 = vmatpush1.msra.mxu0 0.0
    %2609 = vmatprep.subr.mxu0 0.0
    %2610 = vmatpush1.msra.mxu0 0.0
    %2611 = vmatprep.subr.mxu0 0.0
    %2612 = vmatpush1.msra.mxu0 0.0
    %2613 = vmatprep.subr.mxu0 0.0
    %2614 = vmatpush1.msra.mxu0 0.0
    %2615 = vmatprep.subr.mxu0 0.0
    %2616 = vmatpush1.msra.mxu0 0.0
    %2617 = vmatprep.subr.mxu0 0.0
    %2618 = vmatpush1.msra.mxu0 0.0
    %2619 = vmatprep.subr.mxu0 0.0
    %2620 = vmatpush1.msra.mxu0 0.0
    %2621 = vmatprep.mubr.f32.mxu0 0.0
    %2622 = vmatmul.mubr.f32.gmra.mrb[0].mxu0 %v2369
    %v2623 = vpop.f32.mrb[0].mxu0
    %v2624 = vadd.f32 %v2440, %v2623
    %v2625 = vpop.f32.mrb[0].mxu0
    %2626 = vmatprep.mubr.f32.mxu0 0.0
    %2627 = vmatmul.mubr.f32.gmra.mrb[0].mxu0 %v2370
    %v2628 = vpop.f32.mrb[0].mxu0
    %v2629 = vadd.f32 %v2440, %v2628
    %v2630 = vpop.f32.mrb[0].mxu0
    %2631 = vmatprep.mubr.f32.mxu0 0.0
    %2632 = vmatmul.mubr.f32.gmra.mrb[0].mxu0 %v2371
    %v2633 = vpop.f32.mrb[0].mxu0
    %v2634 = vadd.f32 %v2440, %v2633
    %v2635 = vpop.f32.mrb[0].mxu0
    %2636 = vmatprep.mubr.f32.mxu0 0.0
    %2637 = vmatmul.mubr.f32.gmra.mrb[0].mxu0 %v2372
    %v2638 = vpop.f32.mrb[0].mxu0
    %v2639 = vadd.f32 %v2440, %v2638
    %v2640 = vpop.f32.mrb[0].mxu0
    %2641 = vmatprep.mubr.f32.mxu0 0.0
    %2642 = vmatmul.mubr.f32.gmra.mrb[0].mxu0 %v2373
    %v2643 = vpop.f32.mrb[0].mxu0
    %v2644 = vadd.f32 %v2440, %v2643
    %v2645 = vpop.f32.mrb[0].mxu0
    %2646 = vmatprep.mubr.f32.mxu0 0.0
    %2647 = vmatmul.mubr.f32.gmra.mrb[0].mxu0 %v2374
    %v2648 = vpop.f32.mrb[0].mxu0
    %v2649 = vadd.f32 %v2440, %v2648
    %v2650 = vpop.f32.mrb[0].mxu0
    %2651 = vmatprep.mubr.f32.mxu0 0.0
    %2652 = vmatmul.mubr.f32.gmra.mrb[0].mxu0 %v2375
    %v2653 = vpop.f32.mrb[0].mxu0
    %v2654 = vadd.f32 %v2440, %v2653
    %v2655 = vpop.f32.mrb[0].mxu0
    %2656 = vmatprep.mubr.f32.mxu0 0.0
    %2657 = vmatmul.mubr.f32.gmra.mrb[0].mxu0 %v2376
    %v2658 = vpop.f32.mrb[0].mxu0
    %v2659 = vadd.f32 %v2440, %v2658
    %v2660 = vpop.f32.mrb[0].mxu0
    %2661 = vdwg.mxu0
    %2662 = vst [vmem:[#allocation3] sm:$0xff] %v2511
    %2663 = vst [vmem:[#allocation3 + $0x8] sm:$0xff] %v2513
    %2664 = vst [vmem:[#allocation3 + $0x10] sm:$0xff] %v2624
    %2665 = vst [vmem:[#allocation3 + $0x18] sm:$0xff] %v2517
    %2666 = vst [vmem:[#allocation3 + $0x20] sm:$0xff] %v2519
    %2667 = vst [vmem:[#allocation3 + $0x28] sm:$0xff] %v2629
    %2668 = vst [vmem:[#allocation3 + $0x30] sm:$0xff] %v2523
    %2669 = vst [vmem:[#allocation3 + $0x38] sm:$0xff] %v2525
    %2670 = vst [vmem:[#allocation3 + $0x40] sm:$0xff] %v2634
    %2671 = vst [vmem:[#allocation3 + $0x48] sm:$0xff] %v2529
    %2672 = vst [vmem:[#allocation3 + $0x50] sm:$0xff] %v2531
    %2673 = vst [vmem:[#allocation3 + $0x58] sm:$0xff] %v2639
    %2674 = vst [vmem:[#allocation3 + $0x60] sm:$0xff] %v2535
    %2675 = vst [vmem:[#allocation3 + $0x68] sm:$0xff] %v2537
    %2676 = vst [vmem:[#allocation3 + $0x70] sm:$0xff] %v2644
    %2677 = vst [vmem:[#allocation3 + $0x78] sm:$0xff] %v2541
    %2678 = vst [vmem:[#allocation3 + $0x80] sm:$0xff] %v2543
    %2679 = vst [vmem:[#allocation3 + $0x88] sm:$0xff] %v2649
    %2680 = vst [vmem:[#allocation3 + $0x90] sm:$0xff] %v2547
    %2681 = vst [vmem:[#allocation3 + $0x98] sm:$0xff] %v2549
    %2682 = vst [vmem:[#allocation3 + $0xa0] sm:$0xff] %v2654
    %2683 = vst [vmem:[#allocation3 + $0xa8] sm:$0xff] %v2553
    %2684 = vst [vmem:[#allocation3 + $0xb0] sm:$0xff] %v2555
    %2685 = vst [vmem:[#allocation3 + $0xb8] sm:$0xff] %v2659
    %s2686 = scalar_lea.vmem %s7, 1
    %v2687 = vld [vmem:[%s2686] sm:$0x1]
    %v2689 = vlaneseq
    %v2690 = vshrl.u32 %v2689, 7
    %v2691 = vsub.s32 0, %v2690
    %v2692 = vrot.slane %v2687, %v2691
    %s2694 = scalar_lea.vmem %s1, 8
    %v2695 = vld [vmem:[%s2694] sm:$0xff]
    %v2696 = vld [vmem:[%s619] sm:$0xff]
    %v2697 = vld [vmem:[%s619 + $0x8] sm:$0xff]
    %v2698 = vld [vmem:[%s619 + $0x10] sm:$0xff]
    %s2699 = scalar_lea.vmem [#allocation7], 384
    %v2700 = vld [vmem:[%s2699] sm:$0xff]
    %v2701 = vld [vmem:[%s2699 + $0x8] sm:$0xff]
    %v2702 = vld [vmem:[%s2699 + $0x10] sm:$0xff]
    %v2703 = vld [vmem:[%s2699 + $0x18] sm:$0xff]
    %v2704 = vld [vmem:[%s2699 + $0x20] sm:$0xff]
    %v2705 = vld [vmem:[%s2699 + $0x28] sm:$0xff]
    %v2706 = vld [vmem:[%s2699 + $0x30] sm:$0xff]
    %v2707 = vld [vmem:[%s2699 + $0x38] sm:$0xff]
    %v2708 = vld [vmem:[%s2699 + $0x40] sm:$0xff]
    %v2709 = vld [vmem:[%s2699 + $0x48] sm:$0xff]
    %v2710 = vld [vmem:[%s2699 + $0x50] sm:$0xff]
    %v2711 = vld [vmem:[%s2699 + $0x58] sm:$0xff]
    %v2712 = vld [vmem:[%s2699 + $0x60] sm:$0xff]
    %v2713 = vld [vmem:[%s2699 + $0x68] sm:$0xff]
    %v2714 = vld [vmem:[%s2699 + $0x70] sm:$0xff]
    %v2715 = vld [vmem:[%s2699 + $0x78] sm:$0xff]
    %v2716 = vld [vmem:[%s2699 + $0x80] sm:$0xff]
    %v2717 = vld [vmem:[%s2699 + $0x88] sm:$0xff]
    %v2718 = vld [vmem:[%s2699 + $0x90] sm:$0xff]
    %v2719 = vld [vmem:[%s2699 + $0x98] sm:$0xff]
    %v2720 = vld [vmem:[%s2699 + $0xa0] sm:$0xff]
    %v2721 = vld [vmem:[%s2699 + $0xa8] sm:$0xff]
    %v2722 = vld [vmem:[%s2699 + $0xb0] sm:$0xff]
    %v2723 = vld [vmem:[%s2699 + $0xb8] sm:$0xff]
    %v2724 = vld [vmem:[%s2699 + $0xc0] sm:$0xff]
    %v2725 = vld [vmem:[%s2699 + $0xc8] sm:$0xff]
    %v2726 = vld [vmem:[%s2699 + $0xd0] sm:$0xff]
    %v2727 = vld [vmem:[%s2699 + $0xd8] sm:$0xff]
    %v2728 = vld [vmem:[%s2699 + $0xe0] sm:$0xff]
    %v2729 = vld [vmem:[%s2699 + $0xe8] sm:$0xff]
    %v2730 = vld [vmem:[%s2699 + $0xf0] sm:$0xff]
    %v2731 = vld [vmem:[%s2699 + $0xf8] sm:$0xff]
    %v2732 = vld [vmem:[%s2699 + $0x100] sm:$0xff]
    %v2733 = vld [vmem:[%s2699 + $0x108] sm:$0xff]
    %v2734 = vld [vmem:[%s2699 + $0x110] sm:$0xff]
    %v2735 = vld [vmem:[%s2699 + $0x118] sm:$0xff]
    %v2736 = vld [vmem:[%s2699 + $0x120] sm:$0xff]
    %v2737 = vld [vmem:[%s2699 + $0x128] sm:$0xff]
    %v2738 = vld [vmem:[%s2699 + $0x130] sm:$0xff]
    %v2739 = vld [vmem:[%s2699 + $0x138] sm:$0xff]
    %v2740 = vld [vmem:[%s2699 + $0x140] sm:$0xff]
    %v2741 = vld [vmem:[%s2699 + $0x148] sm:$0xff]
    %v2742 = vld [vmem:[%s2699 + $0x150] sm:$0xff]
    %v2743 = vld [vmem:[%s2699 + $0x158] sm:$0xff]
    %v2744 = vld [vmem:[%s2699 + $0x160] sm:$0xff]
    %v2745 = vld [vmem:[%s2699 + $0x168] sm:$0xff]
    %v2746 = vld [vmem:[%s2699 + $0x170] sm:$0xff]
    %v2747 = vld [vmem:[%s2699 + $0x178] sm:$0xff]
    %2748 = vmatprep.subr.mxu0 %v2701
    %2749 = vmatpush1.msra.mxu0 %v2700
    %2750 = vmatprep.subr.mxu0 %v2704
    %2751 = vmatpush1.msra.mxu0 %v2703
    %2752 = vmatprep.subr.mxu0 %v2707
    %2753 = vmatpush1.msra.mxu0 %v2706
    %2754 = vmatprep.subr.mxu0 %v2710
    %2755 = vmatpush1.msra.mxu0 %v2709
    %2756 = vmatprep.subr.mxu0 %v2713
    %2757 = vmatpush1.msra.mxu0 %v2712
    %2758 = vmatprep.subr.mxu0 %v2716
    %2759 = vmatpush1.msra.mxu0 %v2715
    %2760 = vmatprep.subr.mxu0 %v2719
    %2761 = vmatpush1.msra.mxu0 %v2718
    %2762 = vmatprep.subr.mxu0 %v2722
    %2763 = vmatpush1.msra.mxu0 %v2721
    %2764 = vmatprep.subr.mxu0 %v2725
    %2765 = vmatpush1.msra.mxu0 %v2724
    %2766 = vmatprep.subr.mxu0 %v2728
    %2767 = vmatpush1.msra.mxu0 %v2727
    %2768 = vmatprep.subr.mxu0 %v2731
    %2769 = vmatpush1.msra.mxu0 %v2730
    %2770 = vmatprep.subr.mxu0 %v2734
    %2771 = vmatpush1.msra.mxu0 %v2733
    %2772 = vmatprep.subr.mxu0 %v2737
    %2773 = vmatpush1.msra.mxu0 %v2736
    %2774 = vmatprep.subr.mxu0 %v2740
    %2775 = vmatpush1.msra.mxu0 %v2739
    %2776 = vmatprep.subr.mxu0 %v2743
    %2777 = vmatpush1.msra.mxu0 %v2742
    %2778 = vmatprep.subr.mxu0 %v2746
    %2779 = vmatpush1.msra.mxu0 %v2745
    %2780 = vmatprep.subr.mxu0 0.0
    %2781 = vmatpush1.msra.mxu0 0.0
    %2782 = vmatprep.subr.mxu0 0.0
    %2783 = vmatpush1.msra.mxu0 0.0
    %2784 = vmatprep.subr.mxu0 0.0
    %2785 = vmatpush1.msra.mxu0 0.0
    %2786 = vmatprep.subr.mxu0 0.0
    %2787 = vmatpush1.msra.mxu0 0.0
    %2788 = vmatprep.subr.mxu0 0.0
    %2789 = vmatpush1.msra.mxu0 0.0
    %2790 = vmatprep.subr.mxu0 0.0
    %2791 = vmatpush1.msra.mxu0 0.0
    %2792 = vmatprep.subr.mxu0 0.0
    %2793 = vmatpush1.msra.mxu0 0.0
    %2794 = vmatprep.subr.mxu0 0.0
    %2795 = vmatpush1.msra.mxu0 0.0
    %2796 = vmatprep.subr.mxu0 0.0
    %2797 = vmatpush1.msra.mxu0 0.0
    %2798 = vmatprep.subr.mxu0 0.0
    %2799 = vmatpush1.msra.mxu0 0.0
    %2800 = vmatprep.subr.mxu0 0.0
    %2801 = vmatpush1.msra.mxu0 0.0
    %2802 = vmatprep.subr.mxu0 0.0
    %2803 = vmatpush1.msra.mxu0 0.0
    %2804 = vmatprep.subr.mxu0 0.0
    %2805 = vmatpush1.msra.mxu0 0.0
    %2806 = vmatprep.subr.mxu0 0.0
    %2807 = vmatpush1.msra.mxu0 0.0
    %2808 = vmatprep.subr.mxu0 0.0
    %2809 = vmatpush1.msra.mxu0 0.0
    %2810 = vmatprep.subr.mxu0 0.0
    %2811 = vmatpush1.msra.mxu0 0.0
    %2812 = vmatprep.mubr.f32.mxu0 0.0
    %2813 = vmatmul.mubr.f32.gmra.mrb[0].mxu0 %v2695
    %v2814 = vpop.f32.mrb[0].mxu0
    %v2815 = vadd.f32 0.0, %v2814
    %v2816 = vpop.f32.mrb[0].mxu0
    %v2817 = vadd.f32 0.0, %v2816
    %2818 = vdwg.mxu0
    %2819 = vmatprep.subr.mxu0 0.0
    %2820 = vmatpush1.msra.mxu0 %v2702
    %2821 = vmatprep.subr.mxu0 0.0
    %2822 = vmatpush1.msra.mxu0 %v2705
    %2823 = vmatprep.subr.mxu0 0.0
    %2824 = vmatpush1.msra.mxu0 %v2708
    %2825 = vmatprep.subr.mxu0 0.0
    %2826 = vmatpush1.msra.mxu0 %v2711
    %2827 = vmatprep.subr.mxu0 0.0
    %2828 = vmatpush1.msra.mxu0 %v2714
    %2829 = vmatprep.subr.mxu0 0.0
    %2830 = vmatpush1.msra.mxu0 %v2717
    %2831 = vmatprep.subr.mxu0 0.0
    %2832 = vmatpush1.msra.mxu0 %v2720
    %2833 = vmatprep.subr.mxu0 0.0
    %2834 = vmatpush1.msra.mxu0 %v2723
    %2835 = vmatprep.subr.mxu0 0.0
    %2836 = vmatpush1.msra.mxu0 %v2726
    %2837 = vmatprep.subr.mxu0 0.0
    %2838 = vmatpush1.msra.mxu0 %v2729
    %2839 = vmatprep.subr.mxu0 0.0
    %2840 = vmatpush1.msra.mxu0 %v2732
    %2841 = vmatprep.subr.mxu0 0.0
    %2842 = vmatpush1.msra.mxu0 %v2735
    %2843 = vmatprep.subr.mxu0 0.0
    %2844 = vmatpush1.msra.mxu0 %v2738
    %2845 = vmatprep.subr.mxu0 0.0
    %2846 = vmatpush1.msra.mxu0 %v2741
    %2847 = vmatprep.subr.mxu0 0.0
    %2848 = vmatpush1.msra.mxu0 %v2744
    %2849 = vmatprep.subr.mxu0 0.0
    %2850 = vmatpush1.msra.mxu0 %v2747
    %2851 = vmatprep.subr.mxu0 0.0
    %2852 = vmatpush1.msra.mxu0 0.0
    %2853 = vmatprep.subr.mxu0 0.0
    %2854 = vmatpush1.msra.mxu0 0.0
    %2855 = vmatprep.subr.mxu0 0.0
    %2856 = vmatpush1.msra.mxu0 0.0
    %2857 = vmatprep.subr.mxu0 0.0
    %2858 = vmatpush1.msra.mxu0 0.0
    %2859 = vmatprep.subr.mxu0 0.0
    %2860 = vmatpush1.msra.mxu0 0.0
    %2861 = vmatprep.subr.mxu0 0.0
    %2862 = vmatpush1.msra.mxu0 0.0
    %2863 = vmatprep.subr.mxu0 0.0
    %2864 = vmatpush1.msra.mxu0 0.0
    %2865 = vmatprep.subr.mxu0 0.0
    %2866 = vmatpush1.msra.mxu0 0.0
    %2867 = vmatprep.subr.mxu0 0.0
    %2868 = vmatpush1.msra.mxu0 0.0
    %2869 = vmatprep.subr.mxu0 0.0
    %2870 = vmatpush1.msra.mxu0 0.0
    %2871 = vmatprep.subr.mxu0 0.0
    %2872 = vmatpush1.msra.mxu0 0.0
    %2873 = vmatprep.subr.mxu0 0.0
    %2874 = vmatpush1.msra.mxu0 0.0
    %2875 = vmatprep.subr.mxu0 0.0
    %2876 = vmatpush1.msra.mxu0 0.0
    %2877 = vmatprep.subr.mxu0 0.0
    %2878 = vmatpush1.msra.mxu0 0.0
    %2879 = vmatprep.subr.mxu0 0.0
    %2880 = vmatpush1.msra.mxu0 0.0
    %2881 = vmatprep.subr.mxu0 0.0
    %2882 = vmatpush1.msra.mxu0 0.0
    %2883 = vmatprep.mubr.f32.mxu0 0.0
    %2884 = vmatmul.mubr.f32.gmra.mrb[0].mxu0 %v2695
    %v2885 = vpop.f32.mrb[0].mxu0
    %v2886 = vadd.f32 0.0, %v2885
    %v2887 = vpop.f32.mrb[0].mxu0
    %2888 = vdwg.mxu0
    %v2889 = vadd.f32 %v2696, %v2815
    %v2890 = vxor.u32 %v2889, 2147483648
    %v2891 = vmul.f32 %v2890, 1.442695
    %v2892 = vpow.pop %v2891
    %v2893 = vadd.f32 %v2892, 1.0
    %v2894 = vrcp.pop %v2893
    %v2895 = vmul.f32 1.0, %v2894
    %v2896 = vadd.f32 %v2697, %v2817
    %v2897 = vxor.u32 %v2896, 2147483648
    %v2898 = vmul.f32 %v2897, 1.442695
    %v2899 = vpow.pop %v2898
    %v2900 = vadd.f32 %v2899, 1.0
    %v2901 = vrcp.pop %v2900
    %v2902 = vmul.f32 1.0, %v2901
    %v2903 = vadd.f32 %v2886, %v2692
    %v2904 = vmul.f32 %v2895, %v2903
    %v2905 = vadd.f32 %v2698, %v2904
    %v2906 = vtanh.pop %v2905
    %v2907 = vsub.f32 1.0, %v2902
    %v2908 = vmul.f32 %v2907, %v2906
    %v2909 = vmul.f32 %v2902, %v2695
    %v2910 = vadd.f32 %v2908, %v2909
    %2911 = vst [vmem:[#allocation2] sm:$0xff] %v2910
    %v2912 = vld [vmem:[%s837] sm:$0xff]
    %v2913 = vld [vmem:[%s837 + $0x8] sm:$0xff]
    %v2914 = vld [vmem:[%s837 + $0x10] sm:$0xff]
    %v2915 = vld [vmem:[%s2699] sm:$0xff]
    %v2916 = vld [vmem:[%s2699 + $0x8] sm:$0xff]
    %v2917 = vld [vmem:[%s2699 + $0x10] sm:$0xff]
    %v2918 = vld [vmem:[%s2699 + $0x18] sm:$0xff]
    %v2919 = vld [vmem:[%s2699 + $0x20] sm:$0xff]
    %v2920 = vld [vmem:[%s2699 + $0x28] sm:$0xff]
    %v2921 = vld [vmem:[%s2699 + $0x30] sm:$0xff]
    %v2922 = vld [vmem:[%s2699 + $0x38] sm:$0xff]
    %v2923 = vld [vmem:[%s2699 + $0x40] sm:$0xff]
    %v2924 = vld [vmem:[%s2699 + $0x48] sm:$0xff]
    %v2925 = vld [vmem:[%s2699 + $0x50] sm:$0xff]
    %v2926 = vld [vmem:[%s2699 + $0x58] sm:$0xff]
    %v2927 = vld [vmem:[%s2699 + $0x60] sm:$0xff]
    %v2928 = vld [vmem:[%s2699 + $0x68] sm:$0xff]
    %v2929 = vld [vmem:[%s2699 + $0x70] sm:$0xff]
    %v2930 = vld [vmem:[%s2699 + $0x78] sm:$0xff]
    %v2931 = vld [vmem:[%s2699 + $0x80] sm:$0xff]
    %v2932 = vld [vmem:[%s2699 + $0x88] sm:$0xff]
    %v2933 = vld [vmem:[%s2699 + $0x90] sm:$0xff]
    %v2934 = vld [vmem:[%s2699 + $0x98] sm:$0xff]
    %v2935 = vld [vmem:[%s2699 + $0xa0] sm:$0xff]
    %v2936 = vld [vmem:[%s2699 + $0xa8] sm:$0xff]
    %v2937 = vld [vmem:[%s2699 + $0xb0] sm:$0xff]
    %v2938 = vld [vmem:[%s2699 + $0xb8] sm:$0xff]
    %v2939 = vld [vmem:[%s2699 + $0xc0] sm:$0xff]
    %v2940 = vld [vmem:[%s2699 + $0xc8] sm:$0xff]
    %v2941 = vld [vmem:[%s2699 + $0xd0] sm:$0xff]
    %v2942 = vld [vmem:[%s2699 + $0xd8] sm:$0xff]
    %v2943 = vld [vmem:[%s2699 + $0xe0] sm:$0xff]
    %v2944 = vld [vmem:[%s2699 + $0xe8] sm:$0xff]
    %v2945 = vld [vmem:[%s2699 + $0xf0] sm:$0xff]
    %v2946 = vld [vmem:[%s2699 + $0xf8] sm:$0xff]
    %v2947 = vld [vmem:[%s2699 + $0x100] sm:$0xff]
    %v2948 = vld [vmem:[%s2699 + $0x108] sm:$0xff]
    %v2949 = vld [vmem:[%s2699 + $0x110] sm:$0xff]
    %v2950 = vld [vmem:[%s2699 + $0x118] sm:$0xff]
    %v2951 = vld [vmem:[%s2699 + $0x120] sm:$0xff]
    %v2952 = vld [vmem:[%s2699 + $0x128] sm:$0xff]
    %v2953 = vld [vmem:[%s2699 + $0x130] sm:$0xff]
    %v2954 = vld [vmem:[%s2699 + $0x138] sm:$0xff]
    %v2955 = vld [vmem:[%s2699 + $0x140] sm:$0xff]
    %v2956 = vld [vmem:[%s2699 + $0x148] sm:$0xff]
    %v2957 = vld [vmem:[%s2699 + $0x150] sm:$0xff]
    %v2958 = vld [vmem:[%s2699 + $0x158] sm:$0xff]
    %v2959 = vld [vmem:[%s2699 + $0x160] sm:$0xff]
    %v2960 = vld [vmem:[%s2699 + $0x168] sm:$0xff]
    %v2961 = vld [vmem:[%s2699 + $0x170] sm:$0xff]
    %v2962 = vld [vmem:[%s2699 + $0x178] sm:$0xff]
    %2963 = vmatprep.subr.mxu0 %v2916
    %2964 = vmatpush1.msra.mxu0 %v2915
    %2965 = vmatprep.subr.mxu0 %v2919
    %2966 = vmatpush1.msra.mxu0 %v2918
    %2967 = vmatprep.subr.mxu0 %v2922
    %2968 = vmatpush1.msra.mxu0 %v2921
    %2969 = vmatprep.subr.mxu0 %v2925
    %2970 = vmatpush1.msra.mxu0 %v2924
    %2971 = vmatprep.subr.mxu0 %v2928
    %2972 = vmatpush1.msra.mxu0 %v2927
    %2973 = vmatprep.subr.mxu0 %v2931
    %2974 = vmatpush1.msra.mxu0 %v2930
    %2975 = vmatprep.subr.mxu0 %v2934
    %2976 = vmatpush1.msra.mxu0 %v2933
    %2977 = vmatprep.subr.mxu0 %v2937
    %2978 = vmatpush1.msra.mxu0 %v2936
    %2979 = vmatprep.subr.mxu0 %v2940
    %2980 = vmatpush1.msra.mxu0 %v2939
    %2981 = vmatprep.subr.mxu0 %v2943
    %2982 = vmatpush1.msra.mxu0 %v2942
    %2983 = vmatprep.subr.mxu0 %v2946
    %2984 = vmatpush1.msra.mxu0 %v2945
    %2985 = vmatprep.subr.mxu0 %v2949
    %2986 = vmatpush1.msra.mxu0 %v2948
    %2987 = vmatprep.subr.mxu0 %v2952
    %2988 = vmatpush1.msra.mxu0 %v2951
    %2989 = vmatprep.subr.mxu0 %v2955
    %2990 = vmatpush1.msra.mxu0 %v2954
    %2991 = vmatprep.subr.mxu0 %v2958
    %2992 = vmatpush1.msra.mxu0 %v2957
    %2993 = vmatprep.subr.mxu0 %v2961
    %2994 = vmatpush1.msra.mxu0 %v2960
    %2995 = vmatprep.subr.mxu0 0.0
    %2996 = vmatpush1.msra.mxu0 0.0
    %2997 = vmatprep.subr.mxu0 0.0
    %2998 = vmatpush1.msra.mxu0 0.0
    %2999 = vmatprep.subr.mxu0 0.0
    %3000 = vmatpush1.msra.mxu0 0.0
    %3001 = vmatprep.subr.mxu0 0.0
    %3002 = vmatpush1.msra.mxu0 0.0
    %3003 = vmatprep.subr.mxu0 0.0
    %3004 = vmatpush1.msra.mxu0 0.0
    %3005 = vmatprep.subr.mxu0 0.0
    %3006 = vmatpush1.msra.mxu0 0.0
    %3007 = vmatprep.subr.mxu0 0.0
    %3008 = vmatpush1.msra.mxu0 0.0
    %3009 = vmatprep.subr.mxu0 0.0
    %3010 = vmatpush1.msra.mxu0 0.0
    %3011 = vmatprep.subr.mxu0 0.0
    %3012 = vmatpush1.msra.mxu0 0.0
    %3013 = vmatprep.subr.mxu0 0.0
    %3014 = vmatpush1.msra.mxu0 0.0
    %3015 = vmatprep.subr.mxu0 0.0
    %3016 = vmatpush1.msra.mxu0 0.0
    %3017 = vmatprep.subr.mxu0 0.0
    %3018 = vmatpush1.msra.mxu0 0.0
    %3019 = vmatprep.subr.mxu0 0.0
    %3020 = vmatpush1.msra.mxu0 0.0
    %3021 = vmatprep.subr.mxu0 0.0
    %3022 = vmatpush1.msra.mxu0 0.0
    %3023 = vmatprep.subr.mxu0 0.0
    %3024 = vmatpush1.msra.mxu0 0.0
    %3025 = vmatprep.subr.mxu0 0.0
    %3026 = vmatpush1.msra.mxu0 0.0
    %3027 = vmatprep.mubr.f32.mxu0 0.0
    %3028 = vmatmul.mubr.f32.gmra.mrb[0].mxu0 %v2910
    %v3029 = vpop.f32.mrb[0].mxu0
    %v3030 = vadd.f32 0.0, %v3029
    %v3031 = vpop.f32.mrb[0].mxu0
    %v3032 = vadd.f32 0.0, %v3031
    %3033 = vdwg.mxu0
    %3034 = vmatprep.subr.mxu0 0.0
    %3035 = vmatpush1.msra.mxu0 %v2917
    %3036 = vmatprep.subr.mxu0 0.0
    %3037 = vmatpush1.msra.mxu0 %v2920
    %3038 = vmatprep.subr.mxu0 0.0
    %3039 = vmatpush1.msra.mxu0 %v2923
    %3040 = vmatprep.subr.mxu0 0.0
    %3041 = vmatpush1.msra.mxu0 %v2926
    %3042 = vmatprep.subr.mxu0 0.0
    %3043 = vmatpush1.msra.mxu0 %v2929
    %3044 = vmatprep.subr.mxu0 0.0
    %3045 = vmatpush1.msra.mxu0 %v2932
    %3046 = vmatprep.subr.mxu0 0.0
    %3047 = vmatpush1.msra.mxu0 %v2935
    %3048 = vmatprep.subr.mxu0 0.0
    %3049 = vmatpush1.msra.mxu0 %v2938
    %3050 = vmatprep.subr.mxu0 0.0
    %3051 = vmatpush1.msra.mxu0 %v2941
    %3052 = vmatprep.subr.mxu0 0.0
    %3053 = vmatpush1.msra.mxu0 %v2944
    %3054 = vmatprep.subr.mxu0 0.0
    %3055 = vmatpush1.msra.mxu0 %v2947
    %3056 = vmatprep.subr.mxu0 0.0
    %3057 = vmatpush1.msra.mxu0 %v2950
    %3058 = vmatprep.subr.mxu0 0.0
    %3059 = vmatpush1.msra.mxu0 %v2953
    %3060 = vmatprep.subr.mxu0 0.0
    %3061 = vmatpush1.msra.mxu0 %v2956
    %3062 = vmatprep.subr.mxu0 0.0
    %3063 = vmatpush1.msra.mxu0 %v2959
    %3064 = vmatprep.subr.mxu0 0.0
    %3065 = vmatpush1.msra.mxu0 %v2962
    %3066 = vmatprep.subr.mxu0 0.0
    %3067 = vmatpush1.msra.mxu0 0.0
    %3068 = vmatprep.subr.mxu0 0.0
    %3069 = vmatpush1.msra.mxu0 0.0
    %3070 = vmatprep.subr.mxu0 0.0
    %3071 = vmatpush1.msra.mxu0 0.0
    %3072 = vmatprep.subr.mxu0 0.0
    %3073 = vmatpush1.msra.mxu0 0.0
    %3074 = vmatprep.subr.mxu0 0.0
    %3075 = vmatpush1.msra.mxu0 0.0
    %3076 = vmatprep.subr.mxu0 0.0
    %3077 = vmatpush1.msra.mxu0 0.0
    %3078 = vmatprep.subr.mxu0 0.0
    %3079 = vmatpush1.msra.mxu0 0.0
    %3080 = vmatprep.subr.mxu0 0.0
    %3081 = vmatpush1.msra.mxu0 0.0
    %3082 = vmatprep.subr.mxu0 0.0
    %3083 = vmatpush1.msra.mxu0 0.0
    %3084 = vmatprep.subr.mxu0 0.0
    %3085 = vmatpush1.msra.mxu0 0.0
    %3086 = vmatprep.subr.mxu0 0.0
    %3087 = vmatpush1.msra.mxu0 0.0
    %3088 = vmatprep.subr.mxu0 0.0
    %3089 = vmatpush1.msra.mxu0 0.0
    %3090 = vmatprep.subr.mxu0 0.0
    %3091 = vmatpush1.msra.mxu0 0.0
    %3092 = vmatprep.subr.mxu0 0.0
    %3093 = vmatpush1.msra.mxu0 0.0
    %3094 = vmatprep.subr.mxu0 0.0
    %3095 = vmatpush1.msra.mxu0 0.0
    %3096 = vmatprep.subr.mxu0 0.0
    %3097 = vmatpush1.msra.mxu0 0.0
    %3098 = vmatprep.mubr.f32.mxu0 0.0
    %3099 = vmatmul.mubr.f32.gmra.mrb[0].mxu0 %v2910
    %v3100 = vpop.f32.mrb[0].mxu0
    %v3101 = vadd.f32 0.0, %v3100
    %v3102 = vpop.f32.mrb[0].mxu0
    %3103 = vdwg.mxu0
    %v3104 = vadd.f32 %v2912, %v3030
    %v3105 = vxor.u32 %v3104, 2147483648
    %v3106 = vmul.f32 %v3105, 1.442695
    %v3107 = vpow.pop %v3106
    %v3108 = vadd.f32 %v3107, 1.0
    %v3109 = vrcp.pop %v3108
    %v3110 = vmul.f32 1.0, %v3109
    %v3111 = vadd.f32 %v2913, %v3032
    %v3112 = vxor.u32 %v3111, 2147483648
    %v3113 = vmul.f32 %v3112, 1.442695
    %v3114 = vpow.pop %v3113
    %v3115 = vadd.f32 %v3114, 1.0
    %v3116 = vrcp.pop %v3115
    %v3117 = vmul.f32 1.0, %v3116
    %v3118 = vadd.f32 %v3101, %v2692
    %v3119 = vmul.f32 %v3110, %v3118
    %v3120 = vadd.f32 %v2914, %v3119
    %v3121 = vtanh.pop %v3120
    %v3122 = vsub.f32 1.0, %v3117
    %v3123 = vmul.f32 %v3122, %v3121
    %v3124 = vmul.f32 %v3117, %v2910
    %v3125 = vadd.f32 %v3123, %v3124
    %3126 = vst [vmem:[%s1052] sm:$0xff] %v3125
    %v3127 = vld [vmem:[%s1056] sm:$0xff]
    %v3128 = vld [vmem:[%s1056 + $0x8] sm:$0xff]
    %v3129 = vld [vmem:[%s1056 + $0x10] sm:$0xff]
    %v3130 = vld [vmem:[%s2699] sm:$0xff]
    %v3131 = vld [vmem:[%s2699 + $0x8] sm:$0xff]
    %v3132 = vld [vmem:[%s2699 + $0x10] sm:$0xff]
    %v3133 = vld [vmem:[%s2699 + $0x18] sm:$0xff]
    %v3134 = vld [vmem:[%s2699 + $0x20] sm:$0xff]
    %v3135 = vld [vmem:[%s2699 + $0x28] sm:$0xff]
    %v3136 = vld [vmem:[%s2699 + $0x30] sm:$0xff]
    %v3137 = vld [vmem:[%s2699 + $0x38] sm:$0xff]
    %v3138 = vld [vmem:[%s2699 + $0x40] sm:$0xff]
    %v3139 = vld [vmem:[%s2699 + $0x48] sm:$0xff]
    %v3140 = vld [vmem:[%s2699 + $0x50] sm:$0xff]
    %v3141 = vld [vmem:[%s2699 + $0x58] sm:$0xff]
    %v3142 = vld [vmem:[%s2699 + $0x60] sm:$0xff]
    %v3143 = vld [vmem:[%s2699 + $0x68] sm:$0xff]
    %v3144 = vld [vmem:[%s2699 + $0x70] sm:$0xff]
    %v3145 = vld [vmem:[%s2699 + $0x78] sm:$0xff]
    %v3146 = vld [vmem:[%s2699 + $0x80] sm:$0xff]
    %v3147 = vld [vmem:[%s2699 + $0x88] sm:$0xff]
    %v3148 = vld [vmem:[%s2699 + $0x90] sm:$0xff]
    %v3149 = vld [vmem:[%s2699 + $0x98] sm:$0xff]
    %v3150 = vld [vmem:[%s2699 + $0xa0] sm:$0xff]
    %v3151 = vld [vmem:[%s2699 + $0xa8] sm:$0xff]
    %v3152 = vld [vmem:[%s2699 + $0xb0] sm:$0xff]
    %v3153 = vld [vmem:[%s2699 + $0xb8] sm:$0xff]
    %v3154 = vld [vmem:[%s2699 + $0xc0] sm:$0xff]
    %v3155 = vld [vmem:[%s2699 + $0xc8] sm:$0xff]
    %v3156 = vld [vmem:[%s2699 + $0xd0] sm:$0xff]
    %v3157 = vld [vmem:[%s2699 + $0xd8] sm:$0xff]
    %v3158 = vld [vmem:[%s2699 + $0xe0] sm:$0xff]
    %v3159 = vld [vmem:[%s2699 + $0xe8] sm:$0xff]
    %v3160 = vld [vmem:[%s2699 + $0xf0] sm:$0xff]
    %v3161 = vld [vmem:[%s2699 + $0xf8] sm:$0xff]
    %v3162 = vld [vmem:[%s2699 + $0x100] sm:$0xff]
    %v3163 = vld [vmem:[%s2699 + $0x108] sm:$0xff]
    %v3164 = vld [vmem:[%s2699 + $0x110] sm:$0xff]
    %v3165 = vld [vmem:[%s2699 + $0x118] sm:$0xff]
    %v3166 = vld [vmem:[%s2699 + $0x120] sm:$0xff]
    %v3167 = vld [vmem:[%s2699 + $0x128] sm:$0xff]
    %v3168 = vld [vmem:[%s2699 + $0x130] sm:$0xff]
    %v3169 = vld [vmem:[%s2699 + $0x138] sm:$0xff]
    %v3170 = vld [vmem:[%s2699 + $0x140] sm:$0xff]
    %v3171 = vld [vmem:[%s2699 + $0x148] sm:$0xff]
    %v3172 = vld [vmem:[%s2699 + $0x150] sm:$0xff]
    %v3173 = vld [vmem:[%s2699 + $0x158] sm:$0xff]
    %v3174 = vld [vmem:[%s2699 + $0x160] sm:$0xff]
    %v3175 = vld [vmem:[%s2699 + $0x168] sm:$0xff]
    %v3176 = vld [vmem:[%s2699 + $0x170] sm:$0xff]
    %v3177 = vld [vmem:[%s2699 + $0x178] sm:$0xff]
    %3178 = vmatprep.subr.mxu0 %v3131
    %3179 = vmatpush1.msra.mxu0 %v3130
    %3180 = vmatprep.subr.mxu0 %v3134
    %3181 = vmatpush1.msra.mxu0 %v3133
    %3182 = vmatprep.subr.mxu0 %v3137
    %3183 = vmatpush1.msra.mxu0 %v3136
    %3184 = vmatprep.subr.mxu0 %v3140
    %3185 = vmatpush1.msra.mxu0 %v3139
    %3186 = vmatprep.subr.mxu0 %v3143
    %3187 = vmatpush1.msra.mxu0 %v3142
    %3188 = vmatprep.subr.mxu0 %v3146
    %3189 = vmatpush1.msra.mxu0 %v3145
    %3190 = vmatprep.subr.mxu0 %v3149
    %3191 = vmatpush1.msra.mxu0 %v3148
    %3192 = vmatprep.subr.mxu0 %v3152
    %3193 = vmatpush1.msra.mxu0 %v3151
    %3194 = vmatprep.subr.mxu0 %v3155
    %3195 = vmatpush1.msra.mxu0 %v3154
    %3196 = vmatprep.subr.mxu0 %v3158
    %3197 = vmatpush1.msra.mxu0 %v3157
    %3198 = vmatprep.subr.mxu0 %v3161
    %3199 = vmatpush1.msra.mxu0 %v3160
    %3200 = vmatprep.subr.mxu0 %v3164
    %3201 = vmatpush1.msra.mxu0 %v3163
    %3202 = vmatprep.subr.mxu0 %v3167
    %3203 = vmatpush1.msra.mxu0 %v3166
    %3204 = vmatprep.subr.mxu0 %v3170
    %3205 = vmatpush1.msra.mxu0 %v3169
    %3206 = vmatprep.subr.mxu0 %v3173
    %3207 = vmatpush1.msra.mxu0 %v3172
    %3208 = vmatprep.subr.mxu0 %v3176
    %3209 = vmatpush1.msra.mxu0 %v3175
    %3210 = vmatprep.subr.mxu0 0.0
    %3211 = vmatpush1.msra.mxu0 0.0
    %3212 = vmatprep.subr.mxu0 0.0
    %3213 = vmatpush1.msra.mxu0 0.0
    %3214 = vmatprep.subr.mxu0 0.0
    %3215 = vmatpush1.msra.mxu0 0.0
    %3216 = vmatprep.subr.mxu0 0.0
    %3217 = vmatpush1.msra.mxu0 0.0
    %3218 = vmatprep.subr.mxu0 0.0
    %3219 = vmatpush1.msra.mxu0 0.0
    %3220 = vmatprep.subr.mxu0 0.0
    %3221 = vmatpush1.msra.mxu0 0.0
    %3222 = vmatprep.subr.mxu0 0.0
    %3223 = vmatpush1.msra.mxu0 0.0
    %3224 = vmatprep.subr.mxu0 0.0
    %3225 = vmatpush1.msra.mxu0 0.0
    %3226 = vmatprep.subr.mxu0 0.0
    %3227 = vmatpush1.msra.mxu0 0.0
    %3228 = vmatprep.subr.mxu0 0.0
    %3229 = vmatpush1.msra.mxu0 0.0
    %3230 = vmatprep.subr.mxu0 0.0
    %3231 = vmatpush1.msra.mxu0 0.0
    %3232 = vmatprep.subr.mxu0 0.0
    %3233 = vmatpush1.msra.mxu0 0.0
    %3234 = vmatprep.subr.mxu0 0.0
    %3235 = vmatpush1.msra.mxu0 0.0
    %3236 = vmatprep.subr.mxu0 0.0
    %3237 = vmatpush1.msra.mxu0 0.0
    %3238 = vmatprep.subr.mxu0 0.0
    %3239 = vmatpush1.msra.mxu0 0.0
    %3240 = vmatprep.subr.mxu0 0.0
    %3241 = vmatpush1.msra.mxu0 0.0
    %3242 = vmatprep.mubr.f32.mxu0 0.0
    %3243 = vmatmul.mubr.f32.gmra.mrb[0].mxu0 %v3125
    %v3244 = vpop.f32.mrb[0].mxu0
    %v3245 = vadd.f32 0.0, %v3244
    %v3246 = vpop.f32.mrb[0].mxu0
    %v3247 = vadd.f32 0.0, %v3246
    %3248 = vdwg.mxu0
    %3249 = vmatprep.subr.mxu0 0.0
    %3250 = vmatpush1.msra.mxu0 %v3132
    %3251 = vmatprep.subr.mxu0 0.0
    %3252 = vmatpush1.msra.mxu0 %v3135
    %3253 = vmatprep.subr.mxu0 0.0
    %3254 = vmatpush1.msra.mxu0 %v3138
    %3255 = vmatprep.subr.mxu0 0.0
    %3256 = vmatpush1.msra.mxu0 %v3141
    %3257 = vmatprep.subr.mxu0 0.0
    %3258 = vmatpush1.msra.mxu0 %v3144
    %3259 = vmatprep.subr.mxu0 0.0
    %3260 = vmatpush1.msra.mxu0 %v3147
    %3261 = vmatprep.subr.mxu0 0.0
    %3262 = vmatpush1.msra.mxu0 %v3150
    %3263 = vmatprep.subr.mxu0 0.0
    %3264 = vmatpush1.msra.mxu0 %v3153
    %3265 = vmatprep.subr.mxu0 0.0
    %3266 = vmatpush1.msra.mxu0 %v3156
    %3267 = vmatprep.subr.mxu0 0.0
    %3268 = vmatpush1.msra.mxu0 %v3159
    %3269 = vmatprep.subr.mxu0 0.0
    %3270 = vmatpush1.msra.mxu0 %v3162
    %3271 = vmatprep.subr.mxu0 0.0
    %3272 = vmatpush1.msra.mxu0 %v3165
    %3273 = vmatprep.subr.mxu0 0.0
    %3274 = vmatpush1.msra.mxu0 %v3168
    %3275 = vmatprep.subr.mxu0 0.0
    %3276 = vmatpush1.msra.mxu0 %v3171
    %3277 = vmatprep.subr.mxu0 0.0
    %3278 = vmatpush1.msra.mxu0 %v3174
    %3279 = vmatprep.subr.mxu0 0.0
    %3280 = vmatpush1.msra.mxu0 %v3177
    %3281 = vmatprep.subr.mxu0 0.0
    %3282 = vmatpush1.msra.mxu0 0.0
    %3283 = vmatprep.subr.mxu0 0.0
    %3284 = vmatpush1.msra.mxu0 0.0
    %3285 = vmatprep.subr.mxu0 0.0
    %3286 = vmatpush1.msra.mxu0 0.0
    %3287 = vmatprep.subr.mxu0 0.0
    %3288 = vmatpush1.msra.mxu0 0.0
    %3289 = vmatprep.subr.mxu0 0.0
    %3290 = vmatpush1.msra.mxu0 0.0
    %3291 = vmatprep.subr.mxu0 0.0
    %3292 = vmatpush1.msra.mxu0 0.0
    %3293 = vmatprep.subr.mxu0 0.0
    %3294 = vmatpush1.msra.mxu0 0.0
    %3295 = vmatprep.subr.mxu0 0.0
    %3296 = vmatpush1.msra.mxu0 0.0
    %3297 = vmatprep.subr.mxu0 0.0
    %3298 = vmatpush1.msra.mxu0 0.0
    %3299 = vmatprep.subr.mxu0 0.0
    %3300 = vmatpush1.msra.mxu0 0.0
    %3301 = vmatprep.subr.mxu0 0.0
    %3302 = vmatpush1.msra.mxu0 0.0
    %3303 = vmatprep.subr.mxu0 0.0
    %3304 = vmatpush1.msra.mxu0 0.0
    %3305 = vmatprep.subr.mxu0 0.0
    %3306 = vmatpush1.msra.mxu0 0.0
    %3307 = vmatprep.subr.mxu0 0.0
    %3308 = vmatpush1.msra.mxu0 0.0
    %3309 = vmatprep.subr.mxu0 0.0
    %3310 = vmatpush1.msra.mxu0 0.0
    %3311 = vmatprep.subr.mxu0 0.0
    %3312 = vmatpush1.msra.mxu0 0.0
    %3313 = vmatprep.mubr.f32.mxu0 0.0
    %3314 = vmatmul.mubr.f32.gmra.mrb[0].mxu0 %v3125
    %v3315 = vpop.f32.mrb[0].mxu0
    %v3316 = vadd.f32 0.0, %v3315
    %v3317 = vpop.f32.mrb[0].mxu0
    %3318 = vdwg.mxu0
    %v3319 = vadd.f32 %v3127, %v3245
    %v3320 = vxor.u32 %v3319, 2147483648
    %v3321 = vmul.f32 %v3320, 1.442695
    %v3322 = vpow.pop %v3321
    %v3323 = vadd.f32 %v3322, 1.0
    %v3324 = vrcp.pop %v3323
    %v3325 = vmul.f32 1.0, %v3324
    %v3326 = vadd.f32 %v3128, %v3247
    %v3327 = vxor.u32 %v3326, 2147483648
    %v3328 = vmul.f32 %v3327, 1.442695
    %v3329 = vpow.pop %v3328
    %v3330 = vadd.f32 %v3329, 1.0
    %v3331 = vrcp.pop %v3330
    %v3332 = vmul.f32 1.0, %v3331
    %v3333 = vadd.f32 %v3316, %v2692
    %v3334 = vmul.f32 %v3325, %v3333
    %v3335 = vadd.f32 %v3129, %v3334
    %v3336 = vtanh.pop %v3335
    %v3337 = vsub.f32 1.0, %v3332
    %v3338 = vmul.f32 %v3337, %v3336
    %v3339 = vmul.f32 %v3332, %v3125
    %v3340 = vadd.f32 %v3338, %v3339
    %3341 = vst [vmem:[%s1271] sm:$0xff] %v3340
    %v3342 = vld [vmem:[%s1275] sm:$0xff]
    %v3343 = vld [vmem:[%s1275 + $0x8] sm:$0xff]
    %v3344 = vld [vmem:[%s1275 + $0x10] sm:$0xff]
    %v3345 = vld [vmem:[%s2699] sm:$0xff]
    %v3346 = vld [vmem:[%s2699 + $0x8] sm:$0xff]
    %v3347 = vld [vmem:[%s2699 + $0x10] sm:$0xff]
    %v3348 = vld [vmem:[%s2699 + $0x18] sm:$0xff]
    %v3349 = vld [vmem:[%s2699 + $0x20] sm:$0xff]
    %v3350 = vld [vmem:[%s2699 + $0x28] sm:$0xff]
    %v3351 = vld [vmem:[%s2699 + $0x30] sm:$0xff]
    %v3352 = vld [vmem:[%s2699 + $0x38] sm:$0xff]
    %v3353 = vld [vmem:[%s2699 + $0x40] sm:$0xff]
    %v3354 = vld [vmem:[%s2699 + $0x48] sm:$0xff]
    %v3355 = vld [vmem:[%s2699 + $0x50] sm:$0xff]
    %v3356 = vld [vmem:[%s2699 + $0x58] sm:$0xff]
    %v3357 = vld [vmem:[%s2699 + $0x60] sm:$0xff]
    %v3358 = vld [vmem:[%s2699 + $0x68] sm:$0xff]
    %v3359 = vld [vmem:[%s2699 + $0x70] sm:$0xff]
    %v3360 = vld [vmem:[%s2699 + $0x78] sm:$0xff]
    %v3361 = vld [vmem:[%s2699 + $0x80] sm:$0xff]
    %v3362 = vld [vmem:[%s2699 + $0x88] sm:$0xff]
    %v3363 = vld [vmem:[%s2699 + $0x90] sm:$0xff]
    %v3364 = vld [vmem:[%s2699 + $0x98] sm:$0xff]
    %v3365 = vld [vmem:[%s2699 + $0xa0] sm:$0xff]
    %v3366 = vld [vmem:[%s2699 + $0xa8] sm:$0xff]
    %v3367 = vld [vmem:[%s2699 + $0xb0] sm:$0xff]
    %v3368 = vld [vmem:[%s2699 + $0xb8] sm:$0xff]
    %v3369 = vld [vmem:[%s2699 + $0xc0] sm:$0xff]
    %v3370 = vld [vmem:[%s2699 + $0xc8] sm:$0xff]
    %v3371 = vld [vmem:[%s2699 + $0xd0] sm:$0xff]
    %v3372 = vld [vmem:[%s2699 + $0xd8] sm:$0xff]
    %v3373 = vld [vmem:[%s2699 + $0xe0] sm:$0xff]
    %v3374 = vld [vmem:[%s2699 + $0xe8] sm:$0xff]
    %v3375 = vld [vmem:[%s2699 + $0xf0] sm:$0xff]
    %v3376 = vld [vmem:[%s2699 + $0xf8] sm:$0xff]
    %v3377 = vld [vmem:[%s2699 + $0x100] sm:$0xff]
    %v3378 = vld [vmem:[%s2699 + $0x108] sm:$0xff]
    %v3379 = vld [vmem:[%s2699 + $0x110] sm:$0xff]
    %v3380 = vld [vmem:[%s2699 + $0x118] sm:$0xff]
    %v3381 = vld [vmem:[%s2699 + $0x120] sm:$0xff]
    %v3382 = vld [vmem:[%s2699 + $0x128] sm:$0xff]
    %v3383 = vld [vmem:[%s2699 + $0x130] sm:$0xff]
    %v3384 = vld [vmem:[%s2699 + $0x138] sm:$0xff]
    %v3385 = vld [vmem:[%s2699 + $0x140] sm:$0xff]
    %v3386 = vld [vmem:[%s2699 + $0x148] sm:$0xff]
    %v3387 = vld [vmem:[%s2699 + $0x150] sm:$0xff]
    %v3388 = vld [vmem:[%s2699 + $0x158] sm:$0xff]
    %v3389 = vld [vmem:[%s2699 + $0x160] sm:$0xff]
    %v3390 = vld [vmem:[%s2699 + $0x168] sm:$0xff]
    %v3391 = vld [vmem:[%s2699 + $0x170] sm:$0xff]
    %v3392 = vld [vmem:[%s2699 + $0x178] sm:$0xff]
    %3393 = vmatprep.subr.mxu0 %v3346
    %3394 = vmatpush1.msra.mxu0 %v3345
    %3395 = vmatprep.subr.mxu0 %v3349
    %3396 = vmatpush1.msra.mxu0 %v3348
    %3397 = vmatprep.subr.mxu0 %v3352
    %3398 = vmatpush1.msra.mxu0 %v3351
    %3399 = vmatprep.subr.mxu0 %v3355
    %3400 = vmatpush1.msra.mxu0 %v3354
    %3401 = vmatprep.subr.mxu0 %v3358
    %3402 = vmatpush1.msra.mxu0 %v3357
    %3403 = vmatprep.subr.mxu0 %v3361
    %3404 = vmatpush1.msra.mxu0 %v3360
    %3405 = vmatprep.subr.mxu0 %v3364
    %3406 = vmatpush1.msra.mxu0 %v3363
    %3407 = vmatprep.subr.mxu0 %v3367
    %3408 = vmatpush1.msra.mxu0 %v3366
    %3409 = vmatprep.subr.mxu0 %v3370
    %3410 = vmatpush1.msra.mxu0 %v3369
    %3411 = vmatprep.subr.mxu0 %v3373
    %3412 = vmatpush1.msra.mxu0 %v3372
    %3413 = vmatprep.subr.mxu0 %v3376
    %3414 = vmatpush1.msra.mxu0 %v3375
    %3415 = vmatprep.subr.mxu0 %v3379
    %3416 = vmatpush1.msra.mxu0 %v3378
    %3417 = vmatprep.subr.mxu0 %v3382
    %3418 = vmatpush1.msra.mxu0 %v3381
    %3419 = vmatprep.subr.mxu0 %v3385
    %3420 = vmatpush1.msra.mxu0 %v3384
    %3421 = vmatprep.subr.mxu0 %v3388
    %3422 = vmatpush1.msra.mxu0 %v3387
    %3423 = vmatprep.subr.mxu0 %v3391
    %3424 = vmatpush1.msra.mxu0 %v3390
    %3425 = vmatprep.subr.mxu0 0.0
    %3426 = vmatpush1.msra.mxu0 0.0
    %3427 = vmatprep.subr.mxu0 0.0
    %3428 = vmatpush1.msra.mxu0 0.0
    %3429 = vmatprep.subr.mxu0 0.0
    %3430 = vmatpush1.msra.mxu0 0.0
    %3431 = vmatprep.subr.mxu0 0.0
    %3432 = vmatpush1.msra.mxu0 0.0
    %3433 = vmatprep.subr.mxu0 0.0
    %3434 = vmatpush1.msra.mxu0 0.0
    %3435 = vmatprep.subr.mxu0 0.0
    %3436 = vmatpush1.msra.mxu0 0.0
    %3437 = vmatprep.subr.mxu0 0.0
    %3438 = vmatpush1.msra.mxu0 0.0
    %3439 = vmatprep.subr.mxu0 0.0
    %3440 = vmatpush1.msra.mxu0 0.0
    %3441 = vmatprep.subr.mxu0 0.0
    %3442 = vmatpush1.msra.mxu0 0.0
    %3443 = vmatprep.subr.mxu0 0.0
    %3444 = vmatpush1.msra.mxu0 0.0
    %3445 = vmatprep.subr.mxu0 0.0
    %3446 = vmatpush1.msra.mxu0 0.0
    %3447 = vmatprep.subr.mxu0 0.0
    %3448 = vmatpush1.msra.mxu0 0.0
    %3449 = vmatprep.subr.mxu0 0.0
    %3450 = vmatpush1.msra.mxu0 0.0
    %3451 = vmatprep.subr.mxu0 0.0
    %3452 = vmatpush1.msra.mxu0 0.0
    %3453 = vmatprep.subr.mxu0 0.0
    %3454 = vmatpush1.msra.mxu0 0.0
    %3455 = vmatprep.subr.mxu0 0.0
    %3456 = vmatpush1.msra.mxu0 0.0
    %3457 = vmatprep.mubr.f32.mxu0 0.0
    %3458 = vmatmul.mubr.f32.gmra.mrb[0].mxu0 %v3340
    %v3459 = vpop.f32.mrb[0].mxu0
    %v3460 = vadd.f32 0.0, %v3459
    %v3461 = vpop.f32.mrb[0].mxu0
    %v3462 = vadd.f32 0.0, %v3461
    %3463 = vdwg.mxu0
    %3464 = vmatprep.subr.mxu0 0.0
    %3465 = vmatpush1.msra.mxu0 %v3347
    %3466 = vmatprep.subr.mxu0 0.0
    %3467 = vmatpush1.msra.mxu0 %v3350
    %3468 = vmatprep.subr.mxu0 0.0
    %3469 = vmatpush1.msra.mxu0 %v3353
    %3470 = vmatprep.subr.mxu0 0.0
    %3471 = vmatpush1.msra.mxu0 %v3356
    %3472 = vmatprep.subr.mxu0 0.0
    %3473 = vmatpush1.msra.mxu0 %v3359
    %3474 = vmatprep.subr.mxu0 0.0
    %3475 = vmatpush1.msra.mxu0 %v3362
    %3476 = vmatprep.subr.mxu0 0.0
    %3477 = vmatpush1.msra.mxu0 %v3365
    %3478 = vmatprep.subr.mxu0 0.0
    %3479 = vmatpush1.msra.mxu0 %v3368
    %3480 = vmatprep.subr.mxu0 0.0
    %3481 = vmatpush1.msra.mxu0 %v3371
    %3482 = vmatprep.subr.mxu0 0.0
    %3483 = vmatpush1.msra.mxu0 %v3374
    %3484 = vmatprep.subr.mxu0 0.0
    %3485 = vmatpush1.msra.mxu0 %v3377
    %3486 = vmatprep.subr.mxu0 0.0
    %3487 = vmatpush1.msra.mxu0 %v3380
    %3488 = vmatprep.subr.mxu0 0.0
    %3489 = vmatpush1.msra.mxu0 %v3383
    %3490 = vmatprep.subr.mxu0 0.0
    %3491 = vmatpush1.msra.mxu0 %v3386
    %3492 = vmatprep.subr.mxu0 0.0
    %3493 = vmatpush1.msra.mxu0 %v3389
    %3494 = vmatprep.subr.mxu0 0.0
    %3495 = vmatpush1.msra.mxu0 %v3392
    %3496 = vmatprep.subr.mxu0 0.0
    %3497 = vmatpush1.msra.mxu0 0.0
    %3498 = vmatprep.subr.mxu0 0.0
    %3499 = vmatpush1.msra.mxu0 0.0
    %3500 = vmatprep.subr.mxu0 0.0
    %3501 = vmatpush1.msra.mxu0 0.0
    %3502 = vmatprep.subr.mxu0 0.0
    %3503 = vmatpush1.msra.mxu0 0.0
    %3504 = vmatprep.subr.mxu0 0.0
    %3505 = vmatpush1.msra.mxu0 0.0
    %3506 = vmatprep.subr.mxu0 0.0
    %3507 = vmatpush1.msra.mxu0 0.0
    %3508 = vmatprep.subr.mxu0 0.0
    %3509 = vmatpush1.msra.mxu0 0.0
    %3510 = vmatprep.subr.mxu0 0.0
    %3511 = vmatpush1.msra.mxu0 0.0
    %3512 = vmatprep.subr.mxu0 0.0
    %3513 = vmatpush1.msra.mxu0 0.0
    %3514 = vmatprep.subr.mxu0 0.0
    %3515 = vmatpush1.msra.mxu0 0.0
    %3516 = vmatprep.subr.mxu0 0.0
    %3517 = vmatpush1.msra.mxu0 0.0
    %3518 = vmatprep.subr.mxu0 0.0
    %3519 = vmatpush1.msra.mxu0 0.0
    %3520 = vmatprep.subr.mxu0 0.0
    %3521 = vmatpush1.msra.mxu0 0.0
    %3522 = vmatprep.subr.mxu0 0.0
    %3523 = vmatpush1.msra.mxu0 0.0
    %3524 = vmatprep.subr.mxu0 0.0
    %3525 = vmatpush1.msra.mxu0 0.0
    %3526 = vmatprep.subr.mxu0 0.0
    %3527 = vmatpush1.msra.mxu0 0.0
    %3528 = vmatprep.mubr.f32.mxu0 0.0
    %3529 = vmatmul.mubr.f32.gmra.mrb[0].mxu0 %v3340
    %v3530 = vpop.f32.mrb[0].mxu0
    %v3531 = vadd.f32 0.0, %v3530
    %v3532 = vpop.f32.mrb[0].mxu0
    %3533 = vdwg.mxu0
    %v3534 = vadd.f32 %v3342, %v3460
    %v3535 = vxor.u32 %v3534, 2147483648
    %v3536 = vmul.f32 %v3535, 1.442695
    %v3537 = vpow.pop %v3536
    %v3538 = vadd.f32 %v3537, 1.0
    %v3539 = vrcp.pop %v3538
    %v3540 = vmul.f32 1.0, %v3539
    %v3541 = vadd.f32 %v3343, %v3462
    %v3542 = vxor.u32 %v3541, 2147483648
    %v3543 = vmul.f32 %v3542, 1.442695
    %v3544 = vpow.pop %v3543
    %v3545 = vadd.f32 %v3544, 1.0
    %v3546 = vrcp.pop %v3545
    %v3547 = vmul.f32 1.0, %v3546
    %v3548 = vadd.f32 %v3531, %v2692
    %v3549 = vmul.f32 %v3540, %v3548
    %v3550 = vadd.f32 %v3344, %v3549
    %v3551 = vtanh.pop %v3550
    %v3552 = vsub.f32 1.0, %v3547
    %v3553 = vmul.f32 %v3552, %v3551
    %v3554 = vmul.f32 %v3547, %v3340
    %v3555 = vadd.f32 %v3553, %v3554
    %3556 = vst [vmem:[%s1490] sm:$0xff] %v3555
    %v3557 = vld [vmem:[%s1494] sm:$0xff]
    %v3558 = vld [vmem:[%s1494 + $0x8] sm:$0xff]
    %v3559 = vld [vmem:[%s1494 + $0x10] sm:$0xff]
    %v3560 = vld [vmem:[%s2699] sm:$0xff]
    %v3561 = vld [vmem:[%s2699 + $0x8] sm:$0xff]
    %v3562 = vld [vmem:[%s2699 + $0x10] sm:$0xff]
    %v3563 = vld [vmem:[%s2699 + $0x18] sm:$0xff]
    %v3564 = vld [vmem:[%s2699 + $0x20] sm:$0xff]
    %v3565 = vld [vmem:[%s2699 + $0x28] sm:$0xff]
    %v3566 = vld [vmem:[%s2699 + $0x30] sm:$0xff]
    %v3567 = vld [vmem:[%s2699 + $0x38] sm:$0xff]
    %v3568 = vld [vmem:[%s2699 + $0x40] sm:$0xff]
    %v3569 = vld [vmem:[%s2699 + $0x48] sm:$0xff]
    %v3570 = vld [vmem:[%s2699 + $0x50] sm:$0xff]
    %v3571 = vld [vmem:[%s2699 + $0x58] sm:$0xff]
    %v3572 = vld [vmem:[%s2699 + $0x60] sm:$0xff]
    %v3573 = vld [vmem:[%s2699 + $0x68] sm:$0xff]
    %v3574 = vld [vmem:[%s2699 + $0x70] sm:$0xff]
    %v3575 = vld [vmem:[%s2699 + $0x78] sm:$0xff]
    %v3576 = vld [vmem:[%s2699 + $0x80] sm:$0xff]
    %v3577 = vld [vmem:[%s2699 + $0x88] sm:$0xff]
    %v3578 = vld [vmem:[%s2699 + $0x90] sm:$0xff]
    %v3579 = vld [vmem:[%s2699 + $0x98] sm:$0xff]
    %v3580 = vld [vmem:[%s2699 + $0xa0] sm:$0xff]
    %v3581 = vld [vmem:[%s2699 + $0xa8] sm:$0xff]
    %v3582 = vld [vmem:[%s2699 + $0xb0] sm:$0xff]
    %v3583 = vld [vmem:[%s2699 + $0xb8] sm:$0xff]
    %v3584 = vld [vmem:[%s2699 + $0xc0] sm:$0xff]
    %v3585 = vld [vmem:[%s2699 + $0xc8] sm:$0xff]
    %v3586 = vld [vmem:[%s2699 + $0xd0] sm:$0xff]
    %v3587 = vld [vmem:[%s2699 + $0xd8] sm:$0xff]
    %v3588 = vld [vmem:[%s2699 + $0xe0] sm:$0xff]
    %v3589 = vld [vmem:[%s2699 + $0xe8] sm:$0xff]
    %v3590 = vld [vmem:[%s2699 + $0xf0] sm:$0xff]
    %v3591 = vld [vmem:[%s2699 + $0xf8] sm:$0xff]
    %v3592 = vld [vmem:[%s2699 + $0x100] sm:$0xff]
    %v3593 = vld [vmem:[%s2699 + $0x108] sm:$0xff]
    %v3594 = vld [vmem:[%s2699 + $0x110] sm:$0xff]
    %v3595 = vld [vmem:[%s2699 + $0x118] sm:$0xff]
    %v3596 = vld [vmem:[%s2699 + $0x120] sm:$0xff]
    %v3597 = vld [vmem:[%s2699 + $0x128] sm:$0xff]
    %v3598 = vld [vmem:[%s2699 + $0x130] sm:$0xff]
    %v3599 = vld [vmem:[%s2699 + $0x138] sm:$0xff]
    %v3600 = vld [vmem:[%s2699 + $0x140] sm:$0xff]
    %v3601 = vld [vmem:[%s2699 + $0x148] sm:$0xff]
    %v3602 = vld [vmem:[%s2699 + $0x150] sm:$0xff]
    %v3603 = vld [vmem:[%s2699 + $0x158] sm:$0xff]
    %v3604 = vld [vmem:[%s2699 + $0x160] sm:$0xff]
    %v3605 = vld [vmem:[%s2699 + $0x168] sm:$0xff]
    %v3606 = vld [vmem:[%s2699 + $0x170] sm:$0xff]
    %v3607 = vld [vmem:[%s2699 + $0x178] sm:$0xff]
    %3608 = vmatprep.subr.mxu0 %v3561
    %3609 = vmatpush1.msra.mxu0 %v3560
    %3610 = vmatprep.subr.mxu0 %v3564
    %3611 = vmatpush1.msra.mxu0 %v3563
    %3612 = vmatprep.subr.mxu0 %v3567
    %3613 = vmatpush1.msra.mxu0 %v3566
    %3614 = vmatprep.subr.mxu0 %v3570
    %3615 = vmatpush1.msra.mxu0 %v3569
    %3616 = vmatprep.subr.mxu0 %v3573
    %3617 = vmatpush1.msra.mxu0 %v3572
    %3618 = vmatprep.subr.mxu0 %v3576
    %3619 = vmatpush1.msra.mxu0 %v3575
    %3620 = vmatprep.subr.mxu0 %v3579
    %3621 = vmatpush1.msra.mxu0 %v3578
    %3622 = vmatprep.subr.mxu0 %v3582
    %3623 = vmatpush1.msra.mxu0 %v3581
    %3624 = vmatprep.subr.mxu0 %v3585
    %3625 = vmatpush1.msra.mxu0 %v3584
    %3626 = vmatprep.subr.mxu0 %v3588
    %3627 = vmatpush1.msra.mxu0 %v3587
    %3628 = vmatprep.subr.mxu0 %v3591
    %3629 = vmatpush1.msra.mxu0 %v3590
    %3630 = vmatprep.subr.mxu0 %v3594
    %3631 = vmatpush1.msra.mxu0 %v3593
    %3632 = vmatprep.subr.mxu0 %v3597
    %3633 = vmatpush1.msra.mxu0 %v3596
    %3634 = vmatprep.subr.mxu0 %v3600
    %3635 = vmatpush1.msra.mxu0 %v3599
    %3636 = vmatprep.subr.mxu0 %v3603
    %3637 = vmatpush1.msra.mxu0 %v3602
    %3638 = vmatprep.subr.mxu0 %v3606
    %3639 = vmatpush1.msra.mxu0 %v3605
    %3640 = vmatprep.subr.mxu0 0.0
    %3641 = vmatpush1.msra.mxu0 0.0
    %3642 = vmatprep.subr.mxu0 0.0
    %3643 = vmatpush1.msra.mxu0 0.0
    %3644 = vmatprep.subr.mxu0 0.0
    %3645 = vmatpush1.msra.mxu0 0.0
    %3646 = vmatprep.subr.mxu0 0.0
    %3647 = vmatpush1.msra.mxu0 0.0
    %3648 = vmatprep.subr.mxu0 0.0
    %3649 = vmatpush1.msra.mxu0 0.0
    %3650 = vmatprep.subr.mxu0 0.0
    %3651 = vmatpush1.msra.mxu0 0.0
    %3652 = vmatprep.subr.mxu0 0.0
    %3653 = vmatpush1.msra.mxu0 0.0
    %3654 = vmatprep.subr.mxu0 0.0
    %3655 = vmatpush1.msra.mxu0 0.0
    %3656 = vmatprep.subr.mxu0 0.0
    %3657 = vmatpush1.msra.mxu0 0.0
    %3658 = vmatprep.subr.mxu0 0.0
    %3659 = vmatpush1.msra.mxu0 0.0
    %3660 = vmatprep.subr.mxu0 0.0
    %3661 = vmatpush1.msra.mxu0 0.0
    %3662 = vmatprep.subr.mxu0 0.0
    %3663 = vmatpush1.msra.mxu0 0.0
    %3664 = vmatprep.subr.mxu0 0.0
    %3665 = vmatpush1.msra.mxu0 0.0
    %3666 = vmatprep.subr.mxu0 0.0
    %3667 = vmatpush1.msra.mxu0 0.0
    %3668 = vmatprep.subr.mxu0 0.0
    %3669 = vmatpush1.msra.mxu0 0.0
    %3670 = vmatprep.subr.mxu0 0.0
    %3671 = vmatpush1.msra.mxu0 0.0
    %3672 = vmatprep.mubr.f32.mxu0 0.0
    %3673 = vmatmul.mubr.f32.gmra.mrb[0].mxu0 %v3555
    %v3674 = vpop.f32.mrb[0].mxu0
    %v3675 = vadd.f32 0.0, %v3674
    %v3676 = vpop.f32.mrb[0].mxu0
    %v3677 = vadd.f32 0.0, %v3676
    %3678 = vdwg.mxu0
    %3679 = vmatprep.subr.mxu0 0.0
    %3680 = vmatpush1.msra.mxu0 %v3562
    %3681 = vmatprep.subr.mxu0 0.0
    %3682 = vmatpush1.msra.mxu0 %v3565
    %3683 = vmatprep.subr.mxu0 0.0
    %3684 = vmatpush1.msra.mxu0 %v3568
    %3685 = vmatprep.subr.mxu0 0.0
    %3686 = vmatpush1.msra.mxu0 %v3571
    %3687 = vmatprep.subr.mxu0 0.0
    %3688 = vmatpush1.msra.mxu0 %v3574
    %3689 = vmatprep.subr.mxu0 0.0
    %3690 = vmatpush1.msra.mxu0 %v3577
    %3691 = vmatprep.subr.mxu0 0.0
    %3692 = vmatpush1.msra.mxu0 %v3580
    %3693 = vmatprep.subr.mxu0 0.0
    %3694 = vmatpush1.msra.mxu0 %v3583
    %3695 = vmatprep.subr.mxu0 0.0
    %3696 = vmatpush1.msra.mxu0 %v3586
    %3697 = vmatprep.subr.mxu0 0.0
    %3698 = vmatpush1.msra.mxu0 %v3589
    %3699 = vmatprep.subr.mxu0 0.0
    %3700 = vmatpush1.msra.mxu0 %v3592
    %3701 = vmatprep.subr.mxu0 0.0
    %3702 = vmatpush1.msra.mxu0 %v3595
    %3703 = vmatprep.subr.mxu0 0.0
    %3704 = vmatpush1.msra.mxu0 %v3598
    %3705 = vmatprep.subr.mxu0 0.0
    %3706 = vmatpush1.msra.mxu0 %v3601
    %3707 = vmatprep.subr.mxu0 0.0
    %3708 = vmatpush1.msra.mxu0 %v3604
    %3709 = vmatprep.subr.mxu0 0.0
    %3710 = vmatpush1.msra.mxu0 %v3607
    %3711 = vmatprep.subr.mxu0 0.0
    %3712 = vmatpush1.msra.mxu0 0.0
    %3713 = vmatprep.subr.mxu0 0.0
    %3714 = vmatpush1.msra.mxu0 0.0
    %3715 = vmatprep.subr.mxu0 0.0
    %3716 = vmatpush1.msra.mxu0 0.0
    %3717 = vmatprep.subr.mxu0 0.0
    %3718 = vmatpush1.msra.mxu0 0.0
    %3719 = vmatprep.subr.mxu0 0.0
    %3720 = vmatpush1.msra.mxu0 0.0
    %3721 = vmatprep.subr.mxu0 0.0
    %3722 = vmatpush1.msra.mxu0 0.0
    %3723 = vmatprep.subr.mxu0 0.0
    %3724 = vmatpush1.msra.mxu0 0.0
    %3725 = vmatprep.subr.mxu0 0.0
    %3726 = vmatpush1.msra.mxu0 0.0
    %3727 = vmatprep.subr.mxu0 0.0
    %3728 = vmatpush1.msra.mxu0 0.0
    %3729 = vmatprep.subr.mxu0 0.0
    %3730 = vmatpush1.msra.mxu0 0.0
    %3731 = vmatprep.subr.mxu0 0.0
    %3732 = vmatpush1.msra.mxu0 0.0
    %3733 = vmatprep.subr.mxu0 0.0
    %3734 = vmatpush1.msra.mxu0 0.0
    %3735 = vmatprep.subr.mxu0 0.0
    %3736 = vmatpush1.msra.mxu0 0.0
    %3737 = vmatprep.subr.mxu0 0.0
    %3738 = vmatpush1.msra.mxu0 0.0
    %3739 = vmatprep.subr.mxu0 0.0
    %3740 = vmatpush1.msra.mxu0 0.0
    %3741 = vmatprep.subr.mxu0 0.0
    %3742 = vmatpush1.msra.mxu0 0.0
    %3743 = vmatprep.mubr.f32.mxu0 0.0
    %3744 = vmatmul.mubr.f32.gmra.mrb[0].mxu0 %v3555
    %v3745 = vpop.f32.mrb[0].mxu0
    %v3746 = vadd.f32 0.0, %v3745
    %v3747 = vpop.f32.mrb[0].mxu0
    %3748 = vdwg.mxu0
    %v3749 = vadd.f32 %v3557, %v3675
    %v3750 = vxor.u32 %v3749, 2147483648
    %v3751 = vmul.f32 %v3750, 1.442695
    %v3752 = vpow.pop %v3751
    %v3753 = vadd.f32 %v3752, 1.0
    %v3754 = vrcp.pop %v3753
    %v3755 = vmul.f32 1.0, %v3754
    %v3756 = vadd.f32 %v3558, %v3677
    %v3757 = vxor.u32 %v3756, 2147483648
    %v3758 = vmul.f32 %v3757, 1.442695
    %v3759 = vpow.pop %v3758
    %v3760 = vadd.f32 %v3759, 1.0
    %v3761 = vrcp.pop %v3760
    %v3762 = vmul.f32 1.0, %v3761
    %v3763 = vadd.f32 %v3746, %v2692
    %v3764 = vmul.f32 %v3755, %v3763
    %v3765 = vadd.f32 %v3559, %v3764
    %v3766 = vtanh.pop %v3765
    %v3767 = vsub.f32 1.0, %v3762
    %v3768 = vmul.f32 %v3767, %v3766
    %v3769 = vmul.f32 %v3762, %v3555
    %v3770 = vadd.f32 %v3768, %v3769
    %3771 = vst [vmem:[%s1709] sm:$0xff] %v3770
    %v3772 = vld [vmem:[%s1713] sm:$0xff]
    %v3773 = vld [vmem:[%s1713 + $0x8] sm:$0xff]
    %v3774 = vld [vmem:[%s1713 + $0x10] sm:$0xff]
    %v3775 = vld [vmem:[%s2699] sm:$0xff]
    %v3776 = vld [vmem:[%s2699 + $0x8] sm:$0xff]
    %v3777 = vld [vmem:[%s2699 + $0x10] sm:$0xff]
    %v3778 = vld [vmem:[%s2699 + $0x18] sm:$0xff]
    %v3779 = vld [vmem:[%s2699 + $0x20] sm:$0xff]
    %v3780 = vld [vmem:[%s2699 + $0x28] sm:$0xff]
    %v3781 = vld [vmem:[%s2699 + $0x30] sm:$0xff]
    %v3782 = vld [vmem:[%s2699 + $0x38] sm:$0xff]
    %v3783 = vld [vmem:[%s2699 + $0x40] sm:$0xff]
    %v3784 = vld [vmem:[%s2699 + $0x48] sm:$0xff]
    %v3785 = vld [vmem:[%s2699 + $0x50] sm:$0xff]
    %v3786 = vld [vmem:[%s2699 + $0x58] sm:$0xff]
    %v3787 = vld [vmem:[%s2699 + $0x60] sm:$0xff]
    %v3788 = vld [vmem:[%s2699 + $0x68] sm:$0xff]
    %v3789 = vld [vmem:[%s2699 + $0x70] sm:$0xff]
    %v3790 = vld [vmem:[%s2699 + $0x78] sm:$0xff]
    %v3791 = vld [vmem:[%s2699 + $0x80] sm:$0xff]
    %v3792 = vld [vmem:[%s2699 + $0x88] sm:$0xff]
    %v3793 = vld [vmem:[%s2699 + $0x90] sm:$0xff]
    %v3794 = vld [vmem:[%s2699 + $0x98] sm:$0xff]
    %v3795 = vld [vmem:[%s2699 + $0xa0] sm:$0xff]
    %v3796 = vld [vmem:[%s2699 + $0xa8] sm:$0xff]
    %v3797 = vld [vmem:[%s2699 + $0xb0] sm:$0xff]
    %v3798 = vld [vmem:[%s2699 + $0xb8] sm:$0xff]
    %v3799 = vld [vmem:[%s2699 + $0xc0] sm:$0xff]
    %v3800 = vld [vmem:[%s2699 + $0xc8] sm:$0xff]
    %v3801 = vld [vmem:[%s2699 + $0xd0] sm:$0xff]
    %v3802 = vld [vmem:[%s2699 + $0xd8] sm:$0xff]
    %v3803 = vld [vmem:[%s2699 + $0xe0] sm:$0xff]
    %v3804 = vld [vmem:[%s2699 + $0xe8] sm:$0xff]
    %v3805 = vld [vmem:[%s2699 + $0xf0] sm:$0xff]
    %v3806 = vld [vmem:[%s2699 + $0xf8] sm:$0xff]
    %v3807 = vld [vmem:[%s2699 + $0x100] sm:$0xff]
    %v3808 = vld [vmem:[%s2699 + $0x108] sm:$0xff]
    %v3809 = vld [vmem:[%s2699 + $0x110] sm:$0xff]
    %v3810 = vld [vmem:[%s2699 + $0x118] sm:$0xff]
    %v3811 = vld [vmem:[%s2699 + $0x120] sm:$0xff]
    %v3812 = vld [vmem:[%s2699 + $0x128] sm:$0xff]
    %v3813 = vld [vmem:[%s2699 + $0x130] sm:$0xff]
    %v3814 = vld [vmem:[%s2699 + $0x138] sm:$0xff]
    %v3815 = vld [vmem:[%s2699 + $0x140] sm:$0xff]
    %v3816 = vld [vmem:[%s2699 + $0x148] sm:$0xff]
    %v3817 = vld [vmem:[%s2699 + $0x150] sm:$0xff]
    %v3818 = vld [vmem:[%s2699 + $0x158] sm:$0xff]
    %v3819 = vld [vmem:[%s2699 + $0x160] sm:$0xff]
    %v3820 = vld [vmem:[%s2699 + $0x168] sm:$0xff]
    %v3821 = vld [vmem:[%s2699 + $0x170] sm:$0xff]
    %v3822 = vld [vmem:[%s2699 + $0x178] sm:$0xff]
    %3823 = vmatprep.subr.mxu0 %v3776
    %3824 = vmatpush1.msra.mxu0 %v3775
    %3825 = vmatprep.subr.mxu0 %v3779
    %3826 = vmatpush1.msra.mxu0 %v3778
    %3827 = vmatprep.subr.mxu0 %v3782
    %3828 = vmatpush1.msra.mxu0 %v3781
    %3829 = vmatprep.subr.mxu0 %v3785
    %3830 = vmatpush1.msra.mxu0 %v3784
    %3831 = vmatprep.subr.mxu0 %v3788
    %3832 = vmatpush1.msra.mxu0 %v3787
    %3833 = vmatprep.subr.mxu0 %v3791
    %3834 = vmatpush1.msra.mxu0 %v3790
    %3835 = vmatprep.subr.mxu0 %v3794
    %3836 = vmatpush1.msra.mxu0 %v3793
    %3837 = vmatprep.subr.mxu0 %v3797
    %3838 = vmatpush1.msra.mxu0 %v3796
    %3839 = vmatprep.subr.mxu0 %v3800
    %3840 = vmatpush1.msra.mxu0 %v3799
    %3841 = vmatprep.subr.mxu0 %v3803
    %3842 = vmatpush1.msra.mxu0 %v3802
    %3843 = vmatprep.subr.mxu0 %v3806
    %3844 = vmatpush1.msra.mxu0 %v3805
    %3845 = vmatprep.subr.mxu0 %v3809
    %3846 = vmatpush1.msra.mxu0 %v3808
    %3847 = vmatprep.subr.mxu0 %v3812
    %3848 = vmatpush1.msra.mxu0 %v3811
    %3849 = vmatprep.subr.mxu0 %v3815
    %3850 = vmatpush1.msra.mxu0 %v3814
    %3851 = vmatprep.subr.mxu0 %v3818
    %3852 = vmatpush1.msra.mxu0 %v3817
    %3853 = vmatprep.subr.mxu0 %v3821
    %3854 = vmatpush1.msra.mxu0 %v3820
    %3855 = vmatprep.subr.mxu0 0.0
    %3856 = vmatpush1.msra.mxu0 0.0
    %3857 = vmatprep.subr.mxu0 0.0
    %3858 = vmatpush1.msra.mxu0 0.0
    %3859 = vmatprep.subr.mxu0 0.0
    %3860 = vmatpush1.msra.mxu0 0.0
    %3861 = vmatprep.subr.mxu0 0.0
    %3862 = vmatpush1.msra.mxu0 0.0
    %3863 = vmatprep.subr.mxu0 0.0
    %3864 = vmatpush1.msra.mxu0 0.0
    %3865 = vmatprep.subr.mxu0 0.0
    %3866 = vmatpush1.msra.mxu0 0.0
    %3867 = vmatprep.subr.mxu0 0.0
    %3868 = vmatpush1.msra.mxu0 0.0
    %3869 = vmatprep.subr.mxu0 0.0
    %3870 = vmatpush1.msra.mxu0 0.0
    %3871 = vmatprep.subr.mxu0 0.0
    %3872 = vmatpush1.msra.mxu0 0.0
    %3873 = vmatprep.subr.mxu0 0.0
    %3874 = vmatpush1.msra.mxu0 0.0
    %3875 = vmatprep.subr.mxu0 0.0
    %3876 = vmatpush1.msra.mxu0 0.0
    %3877 = vmatprep.subr.mxu0 0.0
    %3878 = vmatpush1.msra.mxu0 0.0
    %3879 = vmatprep.subr.mxu0 0.0
    %3880 = vmatpush1.msra.mxu0 0.0
    %3881 = vmatprep.subr.mxu0 0.0
    %3882 = vmatpush1.msra.mxu0 0.0
    %3883 = vmatprep.subr.mxu0 0.0
    %3884 = vmatpush1.msra.mxu0 0.0
    %3885 = vmatprep.subr.mxu0 0.0
    %3886 = vmatpush1.msra.mxu0 0.0
    %3887 = vmatprep.mubr.f32.mxu0 0.0
    %3888 = vmatmul.mubr.f32.gmra.mrb[0].mxu0 %v3770
    %v3889 = vpop.f32.mrb[0].mxu0
    %v3890 = vadd.f32 0.0, %v3889
    %v3891 = vpop.f32.mrb[0].mxu0
    %v3892 = vadd.f32 0.0, %v3891
    %3893 = vdwg.mxu0
    %3894 = vmatprep.subr.mxu0 0.0
    %3895 = vmatpush1.msra.mxu0 %v3777
    %3896 = vmatprep.subr.mxu0 0.0
    %3897 = vmatpush1.msra.mxu0 %v3780
    %3898 = vmatprep.subr.mxu0 0.0
    %3899 = vmatpush1.msra.mxu0 %v3783
    %3900 = vmatprep.subr.mxu0 0.0
    %3901 = vmatpush1.msra.mxu0 %v3786
    %3902 = vmatprep.subr.mxu0 0.0
    %3903 = vmatpush1.msra.mxu0 %v3789
    %3904 = vmatprep.subr.mxu0 0.0
    %3905 = vmatpush1.msra.mxu0 %v3792
    %3906 = vmatprep.subr.mxu0 0.0
    %3907 = vmatpush1.msra.mxu0 %v3795
    %3908 = vmatprep.subr.mxu0 0.0
    %3909 = vmatpush1.msra.mxu0 %v3798
    %3910 = vmatprep.subr.mxu0 0.0
    %3911 = vmatpush1.msra.mxu0 %v3801
    %3912 = vmatprep.subr.mxu0 0.0
    %3913 = vmatpush1.msra.mxu0 %v3804
    %3914 = vmatprep.subr.mxu0 0.0
    %3915 = vmatpush1.msra.mxu0 %v3807
    %3916 = vmatprep.subr.mxu0 0.0
    %3917 = vmatpush1.msra.mxu0 %v3810
    %3918 = vmatprep.subr.mxu0 0.0
    %3919 = vmatpush1.msra.mxu0 %v3813
    %3920 = vmatprep.subr.mxu0 0.0
    %3921 = vmatpush1.msra.mxu0 %v3816
    %3922 = vmatprep.subr.mxu0 0.0
    %3923 = vmatpush1.msra.mxu0 %v3819
    %3924 = vmatprep.subr.mxu0 0.0
    %3925 = vmatpush1.msra.mxu0 %v3822
    %3926 = vmatprep.subr.mxu0 0.0
    %3927 = vmatpush1.msra.mxu0 0.0
    %3928 = vmatprep.subr.mxu0 0.0
    %3929 = vmatpush1.msra.mxu0 0.0
    %3930 = vmatprep.subr.mxu0 0.0
    %3931 = vmatpush1.msra.mxu0 0.0
    %3932 = vmatprep.subr.mxu0 0.0
    %3933 = vmatpush1.msra.mxu0 0.0
    %3934 = vmatprep.subr.mxu0 0.0
    %3935 = vmatpush1.msra.mxu0 0.0
    %3936 = vmatprep.subr.mxu0 0.0
    %3937 = vmatpush1.msra.mxu0 0.0
    %3938 = vmatprep.subr.mxu0 0.0
    %3939 = vmatpush1.msra.mxu0 0.0
    %3940 = vmatprep.subr.mxu0 0.0
    %3941 = vmatpush1.msra.mxu0 0.0
    %3942 = vmatprep.subr.mxu0 0.0
    %3943 = vmatpush1.msra.mxu0 0.0
    %3944 = vmatprep.subr.mxu0 0.0
    %3945 = vmatpush1.msra.mxu0 0.0
    %3946 = vmatprep.subr.mxu0 0.0
    %3947 = vmatpush1.msra.mxu0 0.0
    %3948 = vmatprep.subr.mxu0 0.0
    %3949 = vmatpush1.msra.mxu0 0.0
    %3950 = vmatprep.subr.mxu0 0.0
    %3951 = vmatpush1.msra.mxu0 0.0
    %3952 = vmatprep.subr.mxu0 0.0
    %3953 = vmatpush1.msra.mxu0 0.0
    %3954 = vmatprep.subr.mxu0 0.0
    %3955 = vmatpush1.msra.mxu0 0.0
    %3956 = vmatprep.subr.mxu0 0.0
    %3957 = vmatpush1.msra.mxu0 0.0
    %3958 = vmatprep.mubr.f32.mxu0 0.0
    %3959 = vmatmul.mubr.f32.gmra.mrb[0].mxu0 %v3770
    %v3960 = vpop.f32.mrb[0].mxu0
    %v3961 = vadd.f32 0.0, %v3960
    %v3962 = vpop.f32.mrb[0].mxu0
    %3963 = vdwg.mxu0
    %v3964 = vadd.f32 %v3772, %v3890
    %v3965 = vxor.u32 %v3964, 2147483648
    %v3966 = vmul.f32 %v3965, 1.442695
    %v3967 = vpow.pop %v3966
    %v3968 = vadd.f32 %v3967, 1.0
    %v3969 = vrcp.pop %v3968
    %v3970 = vmul.f32 1.0, %v3969
    %v3971 = vadd.f32 %v3773, %v3892
    %v3972 = vxor.u32 %v3971, 2147483648
    %v3973 = vmul.f32 %v3972, 1.442695
    %v3974 = vpow.pop %v3973
    %v3975 = vadd.f32 %v3974, 1.0
    %v3976 = vrcp.pop %v3975
    %v3977 = vmul.f32 1.0, %v3976
    %v3978 = vadd.f32 %v3961, %v2692
    %v3979 = vmul.f32 %v3970, %v3978
    %v3980 = vadd.f32 %v3774, %v3979
    %v3981 = vtanh.pop %v3980
    %v3982 = vsub.f32 1.0, %v3977
    %v3983 = vmul.f32 %v3982, %v3981
    %v3984 = vmul.f32 %v3977, %v3770
    %v3985 = vadd.f32 %v3983, %v3984
    %3986 = vst [vmem:[%s1928] sm:$0xff] %v3985
    %v3987 = vld [vmem:[%s1932] sm:$0xff]
    %v3988 = vld [vmem:[%s1932 + $0x8] sm:$0xff]
    %v3989 = vld [vmem:[%s1932 + $0x10] sm:$0xff]
    %v3990 = vld [vmem:[%s2699] sm:$0xff]
    %v3991 = vld [vmem:[%s2699 + $0x8] sm:$0xff]
    %v3992 = vld [vmem:[%s2699 + $0x10] sm:$0xff]
    %v3993 = vld [vmem:[%s2699 + $0x18] sm:$0xff]
    %v3994 = vld [vmem:[%s2699 + $0x20] sm:$0xff]
    %v3995 = vld [vmem:[%s2699 + $0x28] sm:$0xff]
    %v3996 = vld [vmem:[%s2699 + $0x30] sm:$0xff]
    %v3997 = vld [vmem:[%s2699 + $0x38] sm:$0xff]
    %v3998 = vld [vmem:[%s2699 + $0x40] sm:$0xff]
    %v3999 = vld [vmem:[%s2699 + $0x48] sm:$0xff]
    %v4000 = vld [vmem:[%s2699 + $0x50] sm:$0xff]
    %v4001 = vld [vmem:[%s2699 + $0x58] sm:$0xff]
    %v4002 = vld [vmem:[%s2699 + $0x60] sm:$0xff]
    %v4003 = vld [vmem:[%s2699 + $0x68] sm:$0xff]
    %v4004 = vld [vmem:[%s2699 + $0x70] sm:$0xff]
    %v4005 = vld [vmem:[%s2699 + $0x78] sm:$0xff]
    %v4006 = vld [vmem:[%s2699 + $0x80] sm:$0xff]
    %v4007 = vld [vmem:[%s2699 + $0x88] sm:$0xff]
    %v4008 = vld [vmem:[%s2699 + $0x90] sm:$0xff]
    %v4009 = vld [vmem:[%s2699 + $0x98] sm:$0xff]
    %v4010 = vld [vmem:[%s2699 + $0xa0] sm:$0xff]
    %v4011 = vld [vmem:[%s2699 + $0xa8] sm:$0xff]
    %v4012 = vld [vmem:[%s2699 + $0xb0] sm:$0xff]
    %v4013 = vld [vmem:[%s2699 + $0xb8] sm:$0xff]
    %v4014 = vld [vmem:[%s2699 + $0xc0] sm:$0xff]
    %v4015 = vld [vmem:[%s2699 + $0xc8] sm:$0xff]
    %v4016 = vld [vmem:[%s2699 + $0xd0] sm:$0xff]
    %v4017 = vld [vmem:[%s2699 + $0xd8] sm:$0xff]
    %v4018 = vld [vmem:[%s2699 + $0xe0] sm:$0xff]
    %v4019 = vld [vmem:[%s2699 + $0xe8] sm:$0xff]
    %v4020 = vld [vmem:[%s2699 + $0xf0] sm:$0xff]
    %v4021 = vld [vmem:[%s2699 + $0xf8] sm:$0xff]
    %v4022 = vld [vmem:[%s2699 + $0x100] sm:$0xff]
    %v4023 = vld [vmem:[%s2699 + $0x108] sm:$0xff]
    %v4024 = vld [vmem:[%s2699 + $0x110] sm:$0xff]
    %v4025 = vld [vmem:[%s2699 + $0x118] sm:$0xff]
    %v4026 = vld [vmem:[%s2699 + $0x120] sm:$0xff]
    %v4027 = vld [vmem:[%s2699 + $0x128] sm:$0xff]
    %v4028 = vld [vmem:[%s2699 + $0x130] sm:$0xff]
    %v4029 = vld [vmem:[%s2699 + $0x138] sm:$0xff]
    %v4030 = vld [vmem:[%s2699 + $0x140] sm:$0xff]
    %v4031 = vld [vmem:[%s2699 + $0x148] sm:$0xff]
    %v4032 = vld [vmem:[%s2699 + $0x150] sm:$0xff]
    %v4033 = vld [vmem:[%s2699 + $0x158] sm:$0xff]
    %v4034 = vld [vmem:[%s2699 + $0x160] sm:$0xff]
    %v4035 = vld [vmem:[%s2699 + $0x168] sm:$0xff]
    %v4036 = vld [vmem:[%s2699 + $0x170] sm:$0xff]
    %v4037 = vld [vmem:[%s2699 + $0x178] sm:$0xff]
    %4038 = vmatprep.subr.mxu0 %v3991
    %4039 = vmatpush1.msra.mxu0 %v3990
    %4040 = vmatprep.subr.mxu0 %v3994
    %4041 = vmatpush1.msra.mxu0 %v3993
    %4042 = vmatprep.subr.mxu0 %v3997
    %4043 = vmatpush1.msra.mxu0 %v3996
    %4044 = vmatprep.subr.mxu0 %v4000
    %4045 = vmatpush1.msra.mxu0 %v3999
    %4046 = vmatprep.subr.mxu0 %v4003
    %4047 = vmatpush1.msra.mxu0 %v4002
    %4048 = vmatprep.subr.mxu0 %v4006
    %4049 = vmatpush1.msra.mxu0 %v4005
    %4050 = vmatprep.subr.mxu0 %v4009
    %4051 = vmatpush1.msra.mxu0 %v4008
    %4052 = vmatprep.subr.mxu0 %v4012
    %4053 = vmatpush1.msra.mxu0 %v4011
    %4054 = vmatprep.subr.mxu0 %v4015
    %4055 = vmatpush1.msra.mxu0 %v4014
    %4056 = vmatprep.subr.mxu0 %v4018
    %4057 = vmatpush1.msra.mxu0 %v4017
    %4058 = vmatprep.subr.mxu0 %v4021
    %4059 = vmatpush1.msra.mxu0 %v4020
    %4060 = vmatprep.subr.mxu0 %v4024
    %4061 = vmatpush1.msra.mxu0 %v4023
    %4062 = vmatprep.subr.mxu0 %v4027
    %4063 = vmatpush1.msra.mxu0 %v4026
    %4064 = vmatprep.subr.mxu0 %v4030
    %4065 = vmatpush1.msra.mxu0 %v4029
    %4066 = vmatprep.subr.mxu0 %v4033
    %4067 = vmatpush1.msra.mxu0 %v4032
    %4068 = vmatprep.subr.mxu0 %v4036
    %4069 = vmatpush1.msra.mxu0 %v4035
    %4070 = vmatprep.subr.mxu0 0.0
    %4071 = vmatpush1.msra.mxu0 0.0
    %4072 = vmatprep.subr.mxu0 0.0
    %4073 = vmatpush1.msra.mxu0 0.0
    %4074 = vmatprep.subr.mxu0 0.0
    %4075 = vmatpush1.msra.mxu0 0.0
    %4076 = vmatprep.subr.mxu0 0.0
    %4077 = vmatpush1.msra.mxu0 0.0
    %4078 = vmatprep.subr.mxu0 0.0
    %4079 = vmatpush1.msra.mxu0 0.0
    %4080 = vmatprep.subr.mxu0 0.0
    %4081 = vmatpush1.msra.mxu0 0.0
    %4082 = vmatprep.subr.mxu0 0.0
    %4083 = vmatpush1.msra.mxu0 0.0
    %4084 = vmatprep.subr.mxu0 0.0
    %4085 = vmatpush1.msra.mxu0 0.0
    %4086 = vmatprep.subr.mxu0 0.0
    %4087 = vmatpush1.msra.mxu0 0.0
    %4088 = vmatprep.subr.mxu0 0.0
    %4089 = vmatpush1.msra.mxu0 0.0
    %4090 = vmatprep.subr.mxu0 0.0
    %4091 = vmatpush1.msra.mxu0 0.0
    %4092 = vmatprep.subr.mxu0 0.0
    %4093 = vmatpush1.msra.mxu0 0.0
    %4094 = vmatprep.subr.mxu0 0.0
    %4095 = vmatpush1.msra.mxu0 0.0
    %4096 = vmatprep.subr.mxu0 0.0
    %4097 = vmatpush1.msra.mxu0 0.0
    %4098 = vmatprep.subr.mxu0 0.0
    %4099 = vmatpush1.msra.mxu0 0.0
    %4100 = vmatprep.subr.mxu0 0.0
    %4101 = vmatpush1.msra.mxu0 0.0
    %4102 = vmatprep.mubr.f32.mxu0 0.0
    %4103 = vmatmul.mubr.f32.gmra.mrb[0].mxu0 %v3985
    %v4104 = vpop.f32.mrb[0].mxu0
    %v4105 = vadd.f32 0.0, %v4104
    %v4106 = vpop.f32.mrb[0].mxu0
    %v4107 = vadd.f32 0.0, %v4106
    %4108 = vdwg.mxu0
    %4109 = vmatprep.subr.mxu0 0.0
    %4110 = vmatpush1.msra.mxu0 %v3992
    %4111 = vmatprep.subr.mxu0 0.0
    %4112 = vmatpush1.msra.mxu0 %v3995
    %4113 = vmatprep.subr.mxu0 0.0
    %4114 = vmatpush1.msra.mxu0 %v3998
    %4115 = vmatprep.subr.mxu0 0.0
    %4116 = vmatpush1.msra.mxu0 %v4001
    %4117 = vmatprep.subr.mxu0 0.0
    %4118 = vmatpush1.msra.mxu0 %v4004
    %4119 = vmatprep.subr.mxu0 0.0
    %4120 = vmatpush1.msra.mxu0 %v4007
    %4121 = vmatprep.subr.mxu0 0.0
    %4122 = vmatpush1.msra.mxu0 %v4010
    %4123 = vmatprep.subr.mxu0 0.0
    %4124 = vmatpush1.msra.mxu0 %v4013
    %4125 = vmatprep.subr.mxu0 0.0
    %4126 = vmatpush1.msra.mxu0 %v4016
    %4127 = vmatprep.subr.mxu0 0.0
    %4128 = vmatpush1.msra.mxu0 %v4019
    %4129 = vmatprep.subr.mxu0 0.0
    %4130 = vmatpush1.msra.mxu0 %v4022
    %4131 = vmatprep.subr.mxu0 0.0
    %4132 = vmatpush1.msra.mxu0 %v4025
    %4133 = vmatprep.subr.mxu0 0.0
    %4134 = vmatpush1.msra.mxu0 %v4028
    %4135 = vmatprep.subr.mxu0 0.0
    %4136 = vmatpush1.msra.mxu0 %v4031
    %4137 = vmatprep.subr.mxu0 0.0
    %4138 = vmatpush1.msra.mxu0 %v4034
    %4139 = vmatprep.subr.mxu0 0.0
    %4140 = vmatpush1.msra.mxu0 %v4037
    %4141 = vmatprep.subr.mxu0 0.0
    %4142 = vmatpush1.msra.mxu0 0.0
    %4143 = vmatprep.subr.mxu0 0.0
    %4144 = vmatpush1.msra.mxu0 0.0
    %4145 = vmatprep.subr.mxu0 0.0
    %4146 = vmatpush1.msra.mxu0 0.0
    %4147 = vmatprep.subr.mxu0 0.0
    %4148 = vmatpush1.msra.mxu0 0.0
    %4149 = vmatprep.subr.mxu0 0.0
    %4150 = vmatpush1.msra.mxu0 0.0
    %4151 = vmatprep.subr.mxu0 0.0
    %4152 = vmatpush1.msra.mxu0 0.0
    %4153 = vmatprep.subr.mxu0 0.0
    %4154 = vmatpush1.msra.mxu0 0.0
    %4155 = vmatprep.subr.mxu0 0.0
    %4156 = vmatpush1.msra.mxu0 0.0
    %4157 = vmatprep.subr.mxu0 0.0
    %4158 = vmatpush1.msra.mxu0 0.0
    %4159 = vmatprep.subr.mxu0 0.0
    %4160 = vmatpush1.msra.mxu0 0.0
    %4161 = vmatprep.subr.mxu0 0.0
    %4162 = vmatpush1.msra.mxu0 0.0
    %4163 = vmatprep.subr.mxu0 0.0
    %4164 = vmatpush1.msra.mxu0 0.0
    %4165 = vmatprep.subr.mxu0 0.0
    %4166 = vmatpush1.msra.mxu0 0.0
    %4167 = vmatprep.subr.mxu0 0.0
    %4168 = vmatpush1.msra.mxu0 0.0
    %4169 = vmatprep.subr.mxu0 0.0
    %4170 = vmatpush1.msra.mxu0 0.0
    %4171 = vmatprep.subr.mxu0 0.0
    %4172 = vmatpush1.msra.mxu0 0.0
    %4173 = vmatprep.mubr.f32.mxu0 0.0
    %4174 = vmatmul.mubr.f32.gmra.mrb[0].mxu0 %v3985
    %v4175 = vpop.f32.mrb[0].mxu0
    %v4176 = vadd.f32 0.0, %v4175
    %v4177 = vpop.f32.mrb[0].mxu0
    %4178 = vdwg.mxu0
    %v4179 = vadd.f32 %v3987, %v4105
    %v4180 = vxor.u32 %v4179, 2147483648
    %v4181 = vmul.f32 %v4180, 1.442695
    %v4182 = vpow.pop %v4181
    %v4183 = vadd.f32 %v4182, 1.0
    %v4184 = vrcp.pop %v4183
    %v4185 = vmul.f32 1.0, %v4184
    %v4186 = vadd.f32 %v3988, %v4107
    %v4187 = vxor.u32 %v4186, 2147483648
    %v4188 = vmul.f32 %v4187, 1.442695
    %v4189 = vpow.pop %v4188
    %v4190 = vadd.f32 %v4189, 1.0
    %v4191 = vrcp.pop %v4190
    %v4192 = vmul.f32 1.0, %v4191
    %v4193 = vadd.f32 %v4176, %v2692
    %v4194 = vmul.f32 %v4185, %v4193
    %v4195 = vadd.f32 %v3989, %v4194
    %v4196 = vtanh.pop %v4195
    %v4197 = vsub.f32 1.0, %v4192
    %v4198 = vmul.f32 %v4197, %v4196
    %v4199 = vmul.f32 %v4192, %v3985
    %v4200 = vadd.f32 %v4198, %v4199
    %4201 = vst [vmem:[%s2147] sm:$0xff] %v4200
    %v4202 = vld [vmem:[%s2151] sm:$0xff]
    %v4203 = vld [vmem:[%s2151 + $0x8] sm:$0xff]
    %v4204 = vld [vmem:[%s2151 + $0x10] sm:$0xff]
    %v4205 = vld [vmem:[%s2699] sm:$0xff]
    %v4206 = vld [vmem:[%s2699 + $0x8] sm:$0xff]
    %v4207 = vld [vmem:[%s2699 + $0x10] sm:$0xff]
    %v4208 = vld [vmem:[%s2699 + $0x18] sm:$0xff]
    %v4209 = vld [vmem:[%s2699 + $0x20] sm:$0xff]
    %v4210 = vld [vmem:[%s2699 + $0x28] sm:$0xff]
    %v4211 = vld [vmem:[%s2699 + $0x30] sm:$0xff]
    %v4212 = vld [vmem:[%s2699 + $0x38] sm:$0xff]
    %v4213 = vld [vmem:[%s2699 + $0x40] sm:$0xff]
    %v4214 = vld [vmem:[%s2699 + $0x48] sm:$0xff]
    %v4215 = vld [vmem:[%s2699 + $0x50] sm:$0xff]
    %v4216 = vld [vmem:[%s2699 + $0x58] sm:$0xff]
    %v4217 = vld [vmem:[%s2699 + $0x60] sm:$0xff]
    %v4218 = vld [vmem:[%s2699 + $0x68] sm:$0xff]
    %v4219 = vld [vmem:[%s2699 + $0x70] sm:$0xff]
    %v4220 = vld [vmem:[%s2699 + $0x78] sm:$0xff]
    %v4221 = vld [vmem:[%s2699 + $0x80] sm:$0xff]
    %v4222 = vld [vmem:[%s2699 + $0x88] sm:$0xff]
    %v4223 = vld [vmem:[%s2699 + $0x90] sm:$0xff]
    %v4224 = vld [vmem:[%s2699 + $0x98] sm:$0xff]
    %v4225 = vld [vmem:[%s2699 + $0xa0] sm:$0xff]
    %v4226 = vld [vmem:[%s2699 + $0xa8] sm:$0xff]
    %v4227 = vld [vmem:[%s2699 + $0xb0] sm:$0xff]
    %v4228 = vld [vmem:[%s2699 + $0xb8] sm:$0xff]
    %v4229 = vld [vmem:[%s2699 + $0xc0] sm:$0xff]
    %v4230 = vld [vmem:[%s2699 + $0xc8] sm:$0xff]
    %v4231 = vld [vmem:[%s2699 + $0xd0] sm:$0xff]
    %v4232 = vld [vmem:[%s2699 + $0xd8] sm:$0xff]
    %v4233 = vld [vmem:[%s2699 + $0xe0] sm:$0xff]
    %v4234 = vld [vmem:[%s2699 + $0xe8] sm:$0xff]
    %v4235 = vld [vmem:[%s2699 + $0xf0] sm:$0xff]
    %v4236 = vld [vmem:[%s2699 + $0xf8] sm:$0xff]
    %v4237 = vld [vmem:[%s2699 + $0x100] sm:$0xff]
    %v4238 = vld [vmem:[%s2699 + $0x108] sm:$0xff]
    %v4239 = vld [vmem:[%s2699 + $0x110] sm:$0xff]
    %v4240 = vld [vmem:[%s2699 + $0x118] sm:$0xff]
    %v4241 = vld [vmem:[%s2699 + $0x120] sm:$0xff]
    %v4242 = vld [vmem:[%s2699 + $0x128] sm:$0xff]
    %v4243 = vld [vmem:[%s2699 + $0x130] sm:$0xff]
    %v4244 = vld [vmem:[%s2699 + $0x138] sm:$0xff]
    %v4245 = vld [vmem:[%s2699 + $0x140] sm:$0xff]
    %v4246 = vld [vmem:[%s2699 + $0x148] sm:$0xff]
    %v4247 = vld [vmem:[%s2699 + $0x150] sm:$0xff]
    %v4248 = vld [vmem:[%s2699 + $0x158] sm:$0xff]
    %v4249 = vld [vmem:[%s2699 + $0x160] sm:$0xff]
    %v4250 = vld [vmem:[%s2699 + $0x168] sm:$0xff]
    %v4251 = vld [vmem:[%s2699 + $0x170] sm:$0xff]
    %v4252 = vld [vmem:[%s2699 + $0x178] sm:$0xff]
    %4253 = vmatprep.subr.mxu0 %v4206
    %4254 = vmatpush1.msra.mxu0 %v4205
    %4255 = vmatprep.subr.mxu0 %v4209
    %4256 = vmatpush1.msra.mxu0 %v4208
    %4257 = vmatprep.subr.mxu0 %v4212
    %4258 = vmatpush1.msra.mxu0 %v4211
    %4259 = vmatprep.subr.mxu0 %v4215
    %4260 = vmatpush1.msra.mxu0 %v4214
    %4261 = vmatprep.subr.mxu0 %v4218
    %4262 = vmatpush1.msra.mxu0 %v4217
    %4263 = vmatprep.subr.mxu0 %v4221
    %4264 = vmatpush1.msra.mxu0 %v4220
    %4265 = vmatprep.subr.mxu0 %v4224
    %4266 = vmatpush1.msra.mxu0 %v4223
    %4267 = vmatprep.subr.mxu0 %v4227
    %4268 = vmatpush1.msra.mxu0 %v4226
    %4269 = vmatprep.subr.mxu0 %v4230
    %4270 = vmatpush1.msra.mxu0 %v4229
    %4271 = vmatprep.subr.mxu0 %v4233
    %4272 = vmatpush1.msra.mxu0 %v4232
    %4273 = vmatprep.subr.mxu0 %v4236
    %4274 = vmatpush1.msra.mxu0 %v4235
    %4275 = vmatprep.subr.mxu0 %v4239
    %4276 = vmatpush1.msra.mxu0 %v4238
    %4277 = vmatprep.subr.mxu0 %v4242
    %4278 = vmatpush1.msra.mxu0 %v4241
    %4279 = vmatprep.subr.mxu0 %v4245
    %4280 = vmatpush1.msra.mxu0 %v4244
    %4281 = vmatprep.subr.mxu0 %v4248
    %4282 = vmatpush1.msra.mxu0 %v4247
    %4283 = vmatprep.subr.mxu0 %v4251
    %4284 = vmatpush1.msra.mxu0 %v4250
    %4285 = vmatprep.subr.mxu0 0.0
    %4286 = vmatpush1.msra.mxu0 0.0
    %4287 = vmatprep.subr.mxu0 0.0
    %4288 = vmatpush1.msra.mxu0 0.0
    %4289 = vmatprep.subr.mxu0 0.0
    %4290 = vmatpush1.msra.mxu0 0.0
    %4291 = vmatprep.subr.mxu0 0.0
    %4292 = vmatpush1.msra.mxu0 0.0
    %4293 = vmatprep.subr.mxu0 0.0
    %4294 = vmatpush1.msra.mxu0 0.0
    %4295 = vmatprep.subr.mxu0 0.0
    %4296 = vmatpush1.msra.mxu0 0.0
    %4297 = vmatprep.subr.mxu0 0.0
    %4298 = vmatpush1.msra.mxu0 0.0
    %4299 = vmatprep.subr.mxu0 0.0
    %4300 = vmatpush1.msra.mxu0 0.0
    %4301 = vmatprep.subr.mxu0 0.0
    %4302 = vmatpush1.msra.mxu0 0.0
    %4303 = vmatprep.subr.mxu0 0.0
    %4304 = vmatpush1.msra.mxu0 0.0
    %4305 = vmatprep.subr.mxu0 0.0
    %4306 = vmatpush1.msra.mxu0 0.0
    %4307 = vmatprep.subr.mxu0 0.0
    %4308 = vmatpush1.msra.mxu0 0.0
    %4309 = vmatprep.subr.mxu0 0.0
    %4310 = vmatpush1.msra.mxu0 0.0
    %4311 = vmatprep.subr.mxu0 0.0
    %4312 = vmatpush1.msra.mxu0 0.0
    %4313 = vmatprep.subr.mxu0 0.0
    %4314 = vmatpush1.msra.mxu0 0.0
    %4315 = vmatprep.subr.mxu0 0.0
    %4316 = vmatpush1.msra.mxu0 0.0
    %4317 = vmatprep.mubr.f32.mxu0 0.0
    %4318 = vmatmul.mubr.f32.gmra.mrb[0].mxu0 %v4200
    %v4319 = vpop.f32.mrb[0].mxu0
    %v4320 = vadd.f32 0.0, %v4319
    %v4321 = vpop.f32.mrb[0].mxu0
    %v4322 = vadd.f32 0.0, %v4321
    %4323 = vdwg.mxu0
    %4324 = vmatprep.subr.mxu0 0.0
    %4325 = vmatpush1.msra.mxu0 %v4207
    %4326 = vmatprep.subr.mxu0 0.0
    %4327 = vmatpush1.msra.mxu0 %v4210
    %4328 = vmatprep.subr.mxu0 0.0
    %4329 = vmatpush1.msra.mxu0 %v4213
    %4330 = vmatprep.subr.mxu0 0.0
    %4331 = vmatpush1.msra.mxu0 %v4216
    %4332 = vmatprep.subr.mxu0 0.0
    %4333 = vmatpush1.msra.mxu0 %v4219
    %4334 = vmatprep.subr.mxu0 0.0
    %4335 = vmatpush1.msra.mxu0 %v4222
    %4336 = vmatprep.subr.mxu0 0.0
    %4337 = vmatpush1.msra.mxu0 %v4225
    %4338 = vmatprep.subr.mxu0 0.0
    %4339 = vmatpush1.msra.mxu0 %v4228
    %4340 = vmatprep.subr.mxu0 0.0
    %4341 = vmatpush1.msra.mxu0 %v4231
    %4342 = vmatprep.subr.mxu0 0.0
    %4343 = vmatpush1.msra.mxu0 %v4234
    %4344 = vmatprep.subr.mxu0 0.0
    %4345 = vmatpush1.msra.mxu0 %v4237
    %4346 = vmatprep.subr.mxu0 0.0
    %4347 = vmatpush1.msra.mxu0 %v4240
    %4348 = vmatprep.subr.mxu0 0.0
    %4349 = vmatpush1.msra.mxu0 %v4243
    %4350 = vmatprep.subr.mxu0 0.0
    %4351 = vmatpush1.msra.mxu0 %v4246
    %4352 = vmatprep.subr.mxu0 0.0
    %4353 = vmatpush1.msra.mxu0 %v4249
    %4354 = vmatprep.subr.mxu0 0.0
    %4355 = vmatpush1.msra.mxu0 %v4252
    %4356 = vmatprep.subr.mxu0 0.0
    %4357 = vmatpush1.msra.mxu0 0.0
    %4358 = vmatprep.subr.mxu0 0.0
    %4359 = vmatpush1.msra.mxu0 0.0
    %4360 = vmatprep.subr.mxu0 0.0
    %4361 = vmatpush1.msra.mxu0 0.0
    %4362 = vmatprep.subr.mxu0 0.0
    %4363 = vmatpush1.msra.mxu0 0.0
    %4364 = vmatprep.subr.mxu0 0.0
    %4365 = vmatpush1.msra.mxu0 0.0
    %4366 = vmatprep.subr.mxu0 0.0
    %4367 = vmatpush1.msra.mxu0 0.0
    %4368 = vmatprep.subr.mxu0 0.0
    %4369 = vmatpush1.msra.mxu0 0.0
    %4370 = vmatprep.subr.mxu0 0.0
    %4371 = vmatpush1.msra.mxu0 0.0
    %4372 = vmatprep.subr.mxu0 0.0
    %4373 = vmatpush1.msra.mxu0 0.0
    %4374 = vmatprep.subr.mxu0 0.0
    %4375 = vmatpush1.msra.mxu0 0.0
    %4376 = vmatprep.subr.mxu0 0.0
    %4377 = vmatpush1.msra.mxu0 0.0
    %4378 = vmatprep.subr.mxu0 0.0
    %4379 = vmatpush1.msra.mxu0 0.0
    %4380 = vmatprep.subr.mxu0 0.0
    %4381 = vmatpush1.msra.mxu0 0.0
    %4382 = vmatprep.subr.mxu0 0.0
    %4383 = vmatpush1.msra.mxu0 0.0
    %4384 = vmatprep.subr.mxu0 0.0
    %4385 = vmatpush1.msra.mxu0 0.0
    %4386 = vmatprep.subr.mxu0 0.0
    %4387 = vmatpush1.msra.mxu0 0.0
    %4388 = vmatprep.mubr.f32.mxu0 0.0
    %4389 = vmatmul.mubr.f32.gmra.mrb[0].mxu0 %v4200
    %v4390 = vpop.f32.mrb[0].mxu0
    %v4391 = vadd.f32 0.0, %v4390
    %v4392 = vpop.f32.mrb[0].mxu0
    %4393 = vdwg.mxu0
    %v4394 = vadd.f32 %v4202, %v4320
    %v4395 = vxor.u32 %v4394, 2147483648
    %v4396 = vmul.f32 %v4395, 1.442695
    %v4397 = vpow.pop %v4396
    %v4398 = vadd.f32 %v4397, 1.0
    %v4399 = vrcp.pop %v4398
    %v4400 = vmul.f32 1.0, %v4399
    %v4401 = vadd.f32 %v4203, %v4322
    %v4402 = vxor.u32 %v4401, 2147483648
    %v4403 = vmul.f32 %v4402, 1.442695
    %v4404 = vpow.pop %v4403
    %v4405 = vadd.f32 %v4404, 1.0
    %v4406 = vrcp.pop %v4405
    %v4407 = vmul.f32 1.0, %v4406
    %v4408 = vadd.f32 %v4391, %v2692
    %v4409 = vmul.f32 %v4400, %v4408
    %v4410 = vadd.f32 %v4204, %v4409
    %v4411 = vtanh.pop %v4410
    %v4412 = vsub.f32 1.0, %v4407
    %v4413 = vmul.f32 %v4412, %v4411
    %v4414 = vmul.f32 %v4407, %v4200
    %v4415 = vadd.f32 %v4413, %v4414
    %4416 = vst [vmem:[%s2366] sm:$0xff] %v4415
    %s4417 = scalar_lea.vmem [#allocation11], 8
    %4418 = vst [vmem:[%s4417] sm:$0xff] %v4415
    %v4419 = vld [vmem:[#allocation2] sm:$0xff]
    %v4420 = vld [vmem:[#allocation2 + $0x8] sm:$0xff]
    %v4421 = vld [vmem:[#allocation2 + $0x10] sm:$0xff]
    %v4422 = vld [vmem:[#allocation2 + $0x18] sm:$0xff]
    %v4423 = vld [vmem:[#allocation2 + $0x20] sm:$0xff]
    %v4424 = vld [vmem:[#allocation2 + $0x28] sm:$0xff]
    %v4425 = vld [vmem:[#allocation2 + $0x30] sm:$0xff]
    %v4426 = vld [vmem:[#allocation2 + $0x38] sm:$0xff]
    %v4427 = vld [vmem:[#allocation9] sm:$0xff]
    %v4428 = vld [vmem:[#allocation9 + $0x8] sm:$0xff]
    %v4429 = vld [vmem:[#allocation9 + $0x10] sm:$0xff]
    %v4430 = vld [vmem:[#allocation9 + $0x18] sm:$0xff]
    %v4431 = vld [vmem:[#allocation9 + $0x20] sm:$0xff]
    %v4432 = vld [vmem:[#allocation9 + $0x28] sm:$0xff]
    %v4433 = vld [vmem:[#allocation9 + $0x30] sm:$0xff]
    %v4434 = vld [vmem:[#allocation9 + $0x38] sm:$0xff]
    %v4435 = vld [vmem:[#allocation9 + $0x40] sm:$0xff]
    %v4436 = vld [vmem:[#allocation9 + $0x48] sm:$0xff]
    %v4437 = vld [vmem:[#allocation9 + $0x50] sm:$0xff]
    %v4438 = vld [vmem:[#allocation9 + $0x58] sm:$0xff]
    %v4439 = vld [vmem:[#allocation9 + $0x60] sm:$0xff]
    %v4440 = vld [vmem:[#allocation9 + $0x68] sm:$0xff]
    %v4441 = vld [vmem:[#allocation9 + $0x70] sm:$0xff]
    %v4442 = vld [vmem:[#allocation9 + $0x78] sm:$0xff]
    %v4443 = vld [vmem:[%s9] sm:$0x1]
    %v4445 = vlaneseq
    %v4446 = vshrl.u32 %v4445, 7
    %v4447 = vsub.s32 0, %v4446
    %v4448 = vrot.slane %v4443, %v4447
    %4450 = vmatprep.subr.mxu0 0.0
    %4451 = vmatpush1.msra.mxu0 %v4427
    %4452 = vmatprep.subr.mxu0 0.0
    %4453 = vmatpush1.msra.mxu0 %v4428
    %4454 = vmatprep.subr.mxu0 0.0
    %4455 = vmatpush1.msra.mxu0 %v4429
    %4456 = vmatprep.subr.mxu0 0.0
    %4457 = vmatpush1.msra.mxu0 %v4430
    %4458 = vmatprep.subr.mxu0 0.0
    %4459 = vmatpush1.msra.mxu0 %v4431
    %4460 = vmatprep.subr.mxu0 0.0
    %4461 = vmatpush1.msra.mxu0 %v4432
    %4462 = vmatprep.subr.mxu0 0.0
    %4463 = vmatpush1.msra.mxu0 %v4433
    %4464 = vmatprep.subr.mxu0 0.0
    %4465 = vmatpush1.msra.mxu0 %v4434
    %4466 = vmatprep.subr.mxu0 0.0
    %4467 = vmatpush1.msra.mxu0 %v4435
    %4468 = vmatprep.subr.mxu0 0.0
    %4469 = vmatpush1.msra.mxu0 %v4436
    %4470 = vmatprep.subr.mxu0 0.0
    %4471 = vmatpush1.msra.mxu0 %v4437
    %4472 = vmatprep.subr.mxu0 0.0
    %4473 = vmatpush1.msra.mxu0 %v4438
    %4474 = vmatprep.subr.mxu0 0.0
    %4475 = vmatpush1.msra.mxu0 %v4439
    %4476 = vmatprep.subr.mxu0 0.0
    %4477 = vmatpush1.msra.mxu0 %v4440
    %4478 = vmatprep.subr.mxu0 0.0
    %4479 = vmatpush1.msra.mxu0 %v4441
    %4480 = vmatprep.subr.mxu0 0.0
    %4481 = vmatpush1.msra.mxu0 %v4442
    %4482 = vmatprep.subr.mxu0 0.0
    %4483 = vmatpush1.msra.mxu0 0.0
    %4484 = vmatprep.subr.mxu0 0.0
    %4485 = vmatpush1.msra.mxu0 0.0
    %4486 = vmatprep.subr.mxu0 0.0
    %4487 = vmatpush1.msra.mxu0 0.0
    %4488 = vmatprep.subr.mxu0 0.0
    %4489 = vmatpush1.msra.mxu0 0.0
    %4490 = vmatprep.subr.mxu0 0.0
    %4491 = vmatpush1.msra.mxu0 0.0
    %4492 = vmatprep.subr.mxu0 0.0
    %4493 = vmatpush1.msra.mxu0 0.0
    %4494 = vmatprep.subr.mxu0 0.0
    %4495 = vmatpush1.msra.mxu0 0.0
    %4496 = vmatprep.subr.mxu0 0.0
    %4497 = vmatpush1.msra.mxu0 0.0
    %4498 = vmatprep.subr.mxu0 0.0
    %4499 = vmatpush1.msra.mxu0 0.0
    %4500 = vmatprep.subr.mxu0 0.0
    %4501 = vmatpush1.msra.mxu0 0.0
    %4502 = vmatprep.subr.mxu0 0.0
    %4503 = vmatpush1.msra.mxu0 0.0
    %4504 = vmatprep.subr.mxu0 0.0
    %4505 = vmatpush1.msra.mxu0 0.0
    %4506 = vmatprep.subr.mxu0 0.0
    %4507 = vmatpush1.msra.mxu0 0.0
    %4508 = vmatprep.subr.mxu0 0.0
    %4509 = vmatpush1.msra.mxu0 0.0
    %4510 = vmatprep.subr.mxu0 0.0
    %4511 = vmatpush1.msra.mxu0 0.0
    %4512 = vmatprep.subr.mxu0 0.0
    %4513 = vmatpush1.msra.mxu0 0.0
    %4514 = vmatprep.mubr.f32.mxu0 0.0
    %4515 = vmatmul.mubr.f32.gmra.mrb[0].mxu0 %v4419
    %v4516 = vpop.f32.mrb[0].mxu0
    %v4517 = vadd.f32 %v4448, %v4516
    %v4518 = vpop.f32.mrb[0].mxu0
    %4519 = vmatprep.mubr.f32.mxu0 0.0
    %4520 = vmatmul.mubr.f32.gmra.mrb[0].mxu0 %v4420
    %v4521 = vpop.f32.mrb[0].mxu0
    %v4522 = vadd.f32 %v4448, %v4521
    %v4523 = vpop.f32.mrb[0].mxu0
    %4524 = vmatprep.mubr.f32.mxu0 0.0
    %4525 = vmatmul.mubr.f32.gmra.mrb[0].mxu0 %v4421
    %v4526 = vpop.f32.mrb[0].mxu0
    %v4527 = vadd.f32 %v4448, %v4526
    %v4528 = vpop.f32.mrb[0].mxu0
    %4529 = vmatprep.mubr.f32.mxu0 0.0
    %4530 = vmatmul.mubr.f32.gmra.mrb[0].mxu0 %v4422
    %v4531 = vpop.f32.mrb[0].mxu0
    %v4532 = vadd.f32 %v4448, %v4531
    %v4533 = vpop.f32.mrb[0].mxu0
    %4534 = vmatprep.mubr.f32.mxu0 0.0
    %4535 = vmatmul.mubr.f32.gmra.mrb[0].mxu0 %v4423
    %v4536 = vpop.f32.mrb[0].mxu0
    %v4537 = vadd.f32 %v4448, %v4536
    %v4538 = vpop.f32.mrb[0].mxu0
    %4539 = vmatprep.mubr.f32.mxu0 0.0
    %4540 = vmatmul.mubr.f32.gmra.mrb[0].mxu0 %v4424
    %v4541 = vpop.f32.mrb[0].mxu0
    %v4542 = vadd.f32 %v4448, %v4541
    %v4543 = vpop.f32.mrb[0].mxu0
    %4544 = vmatprep.mubr.f32.mxu0 0.0
    %4545 = vmatmul.mubr.f32.gmra.mrb[0].mxu0 %v4425
    %v4546 = vpop.f32.mrb[0].mxu0
    %v4547 = vadd.f32 %v4448, %v4546
    %v4548 = vpop.f32.mrb[0].mxu0
    %4549 = vmatprep.mubr.f32.mxu0 0.0
    %4550 = vmatmul.mubr.f32.gmra.mrb[0].mxu0 %v4426
    %v4551 = vpop.f32.mrb[0].mxu0
    %v4552 = vadd.f32 %v4448, %v4551
    %v4553 = vpop.f32.mrb[0].mxu0
    %4554 = vdwg.mxu0
    %v4555 = vxor.u32 %v4517, 2147483648
    %v4556 = vxor.u32 %v4522, 2147483648
    %v4557 = vxor.u32 %v4527, 2147483648
    %v4558 = vxor.u32 %v4532, 2147483648
    %v4559 = vxor.u32 %v4537, 2147483648
    %v4560 = vxor.u32 %v4542, 2147483648
    %v4561 = vxor.u32 %v4547, 2147483648
    %v4562 = vxor.u32 %v4552, 2147483648
    %v4563 = vmul.f32 %v4555, 1.442695
    %v4564 = vpow.pop %v4563
    %v4565 = vmul.f32 %v4556, 1.442695
    %v4566 = vpow.pop %v4565
    %v4567 = vmul.f32 %v4557, 1.442695
    %v4568 = vpow.pop %v4567
    %v4569 = vmul.f32 %v4558, 1.442695
    %v4570 = vpow.pop %v4569
    %v4571 = vmul.f32 %v4559, 1.442695
    %v4572 = vpow.pop %v4571
    %v4573 = vmul.f32 %v4560, 1.442695
    %v4574 = vpow.pop %v4573
    %v4575 = vmul.f32 %v4561, 1.442695
    %v4576 = vpow.pop %v4575
    %v4577 = vmul.f32 %v4562, 1.442695
    %v4578 = vpow.pop %v4577
    %v4579 = vadd.f32 %v4564, 1.0
    %v4580 = vadd.f32 %v4566, 1.0
    %v4581 = vadd.f32 %v4568, 1.0
    %v4582 = vadd.f32 %v4570, 1.0
    %v4583 = vadd.f32 %v4572, 1.0
    %v4584 = vadd.f32 %v4574, 1.0
    %v4585 = vadd.f32 %v4576, 1.0
    %v4586 = vadd.f32 %v4578, 1.0
    %v4587 = vrcp.pop %v4579
    %v4588 = vmul.f32 1.0, %v4587
    %v4589 = vrcp.pop %v4580
    %v4590 = vmul.f32 1.0, %v4589
    %v4591 = vrcp.pop %v4581
    %v4592 = vmul.f32 1.0, %v4591
    %v4593 = vrcp.pop %v4582
    %v4594 = vmul.f32 1.0, %v4593
    %v4595 = vrcp.pop %v4583
    %v4596 = vmul.f32 1.0, %v4595
    %v4597 = vrcp.pop %v4584
    %v4598 = vmul.f32 1.0, %v4597
    %v4599 = vrcp.pop %v4585
    %v4600 = vmul.f32 1.0, %v4599
    %v4601 = vrcp.pop %v4586
    %v4602 = vmul.f32 1.0, %v4601
    %v4603 = vld [vmem:[#allocation10] sm:$0xff]
    %v4604 = vld [vmem:[#allocation10 + $0x8] sm:$0xff]
    %v4605 = vld [vmem:[#allocation10 + $0x10] sm:$0xff]
    %v4606 = vld [vmem:[#allocation10 + $0x18] sm:$0xff]
    %v4607 = vld [vmem:[#allocation10 + $0x20] sm:$0xff]
    %v4608 = vld [vmem:[#allocation10 + $0x28] sm:$0xff]
    %v4609 = vld [vmem:[#allocation10 + $0x30] sm:$0xff]
    %v4610 = vld [vmem:[#allocation10 + $0x38] sm:$0xff]
    %v4611 = vadd.f32 %v4588, %v4603
    %v4612 = vadd.f32 %v4590, %v4604
    %v4613 = vadd.f32 %v4592, %v4605
    %v4614 = vadd.f32 %v4594, %v4606
    %v4615 = vadd.f32 %v4596, %v4607
    %v4616 = vadd.f32 %v4598, %v4608
    %v4617 = vadd.f32 %v4600, %v4609
    %v4618 = vadd.f32 %v4602, %v4610
    %4619 = vst [vmem:[#allocation10] sm:$0xff] %v4611
    %4620 = vst [vmem:[#allocation10 + $0x8] sm:$0xff] %v4612
    %4621 = vst [vmem:[#allocation10 + $0x10] sm:$0xff] %v4613
    %4622 = vst [vmem:[#allocation10 + $0x18] sm:$0xff] %v4614
    %4623 = vst [vmem:[#allocation10 + $0x20] sm:$0xff] %v4615
    %4624 = vst [vmem:[#allocation10 + $0x28] sm:$0xff] %v4616
    %4625 = vst [vmem:[#allocation10 + $0x30] sm:$0xff] %v4617
    %4626 = vst [vmem:[#allocation10 + $0x38] sm:$0xff] %v4618
    // Predicated region
    $region54: #{tpu_custom_call.1} parent=1 // pred_check
      _
    $region55: #{tpu_custom_call.1} parent=1 // pred_check_branch
      %4628 = sbr.rel (0) target = $region57
    $region56: #{tpu_custom_call.1} parent=1 // pred_region
      %s4630 = ssub.s32 1024, 1024
      %4631 = vsyncadd [#allocation6], %s4630
      %s4632 = sshll.u32 [#allocation10], 4
      %s4633 = int_to_ptr.vmem [resolvable:$true] %s4632
      %4638 = dma.vmem_to_hbm [thread:$0]  %s4633, 1024, %s10, [#allocation6], 128, 128, 8
    $region57: #{tpu_custom_call.1} parent=1 // pred_fallthru
      _
    // Predicated region
    $region58: #{tpu_custom_call.1} parent=1 // pred_check
      _
    $region59: #{tpu_custom_call.1} parent=1 // pred_check_branch
      %4640 = sbr.rel (0) target = $region61
    $region60: #{tpu_custom_call.1} parent=1 // pred_region
      %s4642 = ssub.s32 256, 256
      %4643 = vsyncadd [#allocation12], %s4642
      %s4644 = sshll.u32 [#allocation11], 4
      %s4645 = int_to_ptr.vmem [resolvable:$true] %s4644
      %4650 = dma.vmem_to_hbm [thread:$0]  %s4645, 256, %s11, [#allocation12], 128, 128, 8
    $region61: #{tpu_custom_call.1} parent=1 // pred_fallthru
      _
    // Predicated region
    $region62: #{tpu_custom_call.1} parent=1 // pred_check
      _
    $region63: #{tpu_custom_call.1} parent=1 // pred_check_branch
      %4652 = sbr.rel (0) target = $region65
    $region64: #{tpu_custom_call.1} parent=1 // pred_region
      %4653 = dma.done [#allocation6], 1024
    $region65: #{tpu_custom_call.1} parent=1 // pred_fallthru
      _
    // Predicated region
    $region66: #{tpu_custom_call.1} parent=1 // pred_check
      _
    $region67: #{tpu_custom_call.1} parent=1 // pred_check_branch
      %4655 = sbr.rel (0) target = $region69
    $region68: #{tpu_custom_call.1} parent=1 // pred_region
      %4656 = dma.done [#allocation12], 256
    $region69: #{tpu_custom_call.1} parent=1 // pred_fallthru
      _
    %4657 = vsyncpa [#allocation5], 1
    %4658 = vsyncpa [#allocation8], 1
    %4659 = vsyncpa [#allocation6], 1
    %4660 = vsyncpa [#allocation12], 1

</llo_original>
